<compile_context>
chip_gen: v7x
topology: tpu7x:2x2x1
jax: 0.10.0
libtpu: 0.0.40
codegen_flags: <defaults>
</compile_context>

<pallas_src>
import jax
import jax.numpy as jnp
from jax.experimental import pallas as pl
from jax.experimental.pallas import tpu as pltpu

IN_DIM = 32 * 32       # 1024
HID_DIM = 18 * 18      # 324  (padded to 384 inside the kernel)
CODE_DIM = 30          # padded to 128 inside the kernel
HID_PAD = 384          # 3 * 128
CODE_PAD = 128


def _round_up(n, m):
    return ((n + m - 1) // m) * m


def autoencoder_kernel(x_ref,
                       w1_ref, b1_ref,   # (1024, 384) bf16, (1, 384) f32
                       w2_ref, b2_ref,   # (384, 128)  bf16, (1, 128) f32
                       w3_ref, b3_ref,   # (128, 384)  bf16, (1, 384) f32
                       w4_ref, b4_ref,   # (384, 1024) bf16, (1, 1024) f32
                       enc_ref, dec_ref):
    # In-kernel f32 -> bf16 cast: VPU has slack, avoids a wrapper-side HBM pass.
    x = x_ref[...].astype(jnp.bfloat16)                                   # (TB, 1024)

    # ----- encoder -----
    h1 = jnp.dot(x, w1_ref[...], preferred_element_type=jnp.float32) + b1_ref[...]
    h1 = jnp.tanh(h1).astype(jnp.bfloat16)                                # (TB, 384)
    enc = jnp.dot(h1, w2_ref[...], preferred_element_type=jnp.float32) + b2_ref[...]
    enc_bf = enc.astype(jnp.bfloat16)
    enc_ref[...] = enc_bf                                                 # (TB, 128) bf16

    # ----- decoder (consumes exactly the bf16 code that is returned) -----
    h2 = jnp.dot(enc_bf, w3_ref[...], preferred_element_type=jnp.float32) + b3_ref[...]
    h2 = jnp.tanh(h2).astype(jnp.bfloat16)                                # (TB, 384)
    dec = jnp.dot(h2, w4_ref[...], preferred_element_type=jnp.float32) + b4_ref[...]
    # sigmoid(x) = 0.5 * tanh(0.5 x) + 0.5  -> EUP (idle slot), not a VPU divide.
    dec_ref[...] = (0.5 * jnp.tanh(0.5 * dec) + 0.5).astype(dec_ref.dtype)


def _choose_tile(B):
    """Batch tile: 16-row aligned (bf16 sublane packing), >= 2 grid steps when
    B > 16 (v7x megacore), capped at 512 rows (HBM-roofline sweet spot)."""
    if B <= 16:
        return _round_up(B, 8)
    return min(512, _round_up(-(-B // 2), 16))


@jax.jit
def autoencoder_forward(x, padded_params):
    """x: (B, 1024) float32.
    Returns (encoded (B, 30) f32, decoded (B, 1024) bf16)."""
    B, D = x.shape
    (w1, b1), (w2, b2), (w3, b3), (w4, b4) = padded_params

    TB = _choose_tile(B)
    grid = (pl.cdiv(B, TB),)        # ragged last block handled by Pallas

    def act_spec(n):                # batch-tiled activations/outputs (pipelined)
        return pl.BlockSpec((TB, n), lambda i: (i, 0))

    def resident(a):                # same block every step -> stays VMEM-resident
        return pl.BlockSpec(a.shape, lambda i: (0, 0))

    enc_pad, dec = pl.pallas_call(
        autoencoder_kernel,
        grid=grid,
        in_specs=[act_spec(D),
                  resident(w1), resident(b1),
                  resident(w2), resident(b2),
                  resident(w3), resident(b3),
                  resident(w4), resident(b4)],
        out_specs=(act_spec(CODE_PAD), act_spec(D)),
        out_shape=(jax.ShapeDtypeStruct((B, CODE_PAD), jnp.bfloat16),
                   jax.ShapeDtypeStruct((B, D), jnp.bfloat16)),
        compiler_params=pltpu.CompilerParams(
            dimension_semantics=("parallel",),
            vmem_limit_bytes=32 << 20),
    )(x, w1, b1, w2, b2, w3, b3, w4, b4)

    # Tiny (B, 30) upcast; decoded stays bf16 (callers can cast downstream).
    return enc_pad[:, :CODE_DIM].astype(jnp.float32), dec


def init_linear(key, in_f, out_f):
    """PyTorch nn.Linear default init: U(-1/sqrt(in), 1/sqrt(in)).
    Weight returned pre-transposed to (in, out); bias as (1, out)."""
    kw, kb = jax.random.split(key)
    bound = 1.0 / jnp.sqrt(jnp.float32(in_f))
    w = jax.random.uniform(kw, (in_f, out_f), jnp.float32, -bound, bound)
    b = jax.random.uniform(kb, (1, out_f), jnp.float32, -bound, bound)
    return w, b


def init_params(key):
    k1, k2, k3, k4 = jax.random.split(key, 4)
    return (
        init_linear(k1, IN_DIM, HID_DIM),    # encoder Linear(1024, 324)
        init_linear(k2, HID_DIM, CODE_DIM),  # encoder Linear(324, 30)
        init_linear(k3, CODE_DIM, HID_DIM),  # decoder Linear(30, 324)
        init_linear(k4, HID_DIM, IN_DIM),    # decoder Linear(324, 1024)
    )


def prep_params(params):
    """Zero-pad hidden 324->384 and code 30->128 (lane-dense), cast weights to bf16.
    Padded rows/cols are zero, so padded lanes stay exactly zero through tanh and
    never affect the real outputs."""
    (w1, b1), (w2, b2), (w3, b3), (w4, b4) = params

    def pad(a, shape):
        out = jnp.zeros(shape, a.dtype)
        return out.at[:a.shape[0], :a.shape[1]].set(a)

    w1p = pad(w1, (IN_DIM, HID_PAD)).astype(jnp.bfloat16)
    b1p = pad(b1, (1, HID_PAD))
    w2p = pad(w2, (HID_PAD, CODE_PAD)).astype(jnp.bfloat16)
    b2p = pad(b2, (1, CODE_PAD))
    w3p = pad(w3, (CODE_PAD, HID_PAD)).astype(jnp.bfloat16)
    b3p = pad(b3, (1, HID_PAD))
    w4p = pad(w4, (HID_PAD, IN_DIM)).astype(jnp.bfloat16)
    b4p = pad(b4, (1, IN_DIM))
    return (w1p, b1p), (w2p, b2p), (w3p, b3p), (w4p, b4p)


if __name__ == "__main__":
    key = jax.random.PRNGKey(0)
    k_params, k_x = jax.random.split(key)

    params = init_params(k_params)
    padded = prep_params(params)

    batch = 8
    x = jax.random.uniform(k_x, (batch, IN_DIM), jnp.float32)  # flattened 32x32 images

    encoded, decoded = autoencoder_forward(x, padded)
    jax.block_until_ready((encoded, decoded))

    assert encoded.shape == (batch, CODE_DIM)
    assert decoded.shape == (batch, IN_DIM)
    assert encoded.dtype == jnp.float32 and decoded.dtype == jnp.bfloat16

    # plain-JAX reference mirroring the kernel's bf16 / f32-accumulate math
    (w1p, b1p), (w2p, b2p), (w3p, b3p), (w4p, b4p) = padded
    xb = x.astype(jnp.bfloat16)
    h1 = jnp.tanh(jnp.dot(xb, w1p, preferred_element_type=jnp.float32) + b1p)
    h1 = h1.astype(jnp.bfloat16)
    enc_bf = (jnp.dot(h1, w2p, preferred_element_type=jnp.float32) + b2p).astype(jnp.bfloat16)
    h2 = jnp.tanh(jnp.dot(enc_bf, w3p, preferred_element_type=jnp.float32) + b3p)
    h2 = h2.astype(jnp.bfloat16)
    dec_logits = jnp.dot(h2, w4p, preferred_element_type=jnp.float32) + b4p
    dec_ref = 0.5 * jnp.tanh(0.5 * dec_logits) + 0.5

    assert jnp.allclose(encoded, enc_bf[:, :CODE_DIM].astype(jnp.float32),
                        atol=1e-2, rtol=1e-2)
    assert jnp.allclose(decoded.astype(jnp.float32), dec_ref, atol=1e-2, rtol=1e-2)

    # sanity vs. full-f32 math (loose tolerance: bf16 weights/activations/outputs)
    (w1, b1), (w2, b2), (w3, b3), (w4, b4) = params
    enc_f32 = jnp.tanh(x @ w1 + b1) @ w2 + b2
    dec_f32 = jax.nn.sigmoid(jnp.tanh(enc_f32 @ w3 + b3) @ w4 + b4)
    assert jnp.allclose(encoded, enc_f32, atol=5e-2)
    assert jnp.allclose(decoded.astype(jnp.float32), dec_f32, atol=5e-2)

    print("KERNEL_OK")
</pallas_src>

<mosaic_0001>
module attributes {stable_mosaic.version = 11 : i64} {
  func.func @autoencoder_kernel(%arg0: i32, %arg1: memref<8x1024xf32, #tpu.memory_space<vmem>>, %arg2: memref<1024x384xbf16, #tpu.memory_space<vmem>>, %arg3: memref<1x384xf32, #tpu.memory_space<vmem>>, %arg4: memref<384x128xbf16, #tpu.memory_space<vmem>>, %arg5: memref<1x128xf32, #tpu.memory_space<vmem>>, %arg6: memref<128x384xbf16, #tpu.memory_space<vmem>>, %arg7: memref<1x384xf32, #tpu.memory_space<vmem>>, %arg8: memref<384x1024xbf16, #tpu.memory_space<vmem>>, %arg9: memref<1x1024xf32, #tpu.memory_space<vmem>>, %arg10: memref<8x128xbf16, #tpu.memory_space<vmem>>, %arg11: memref<8x1024xbf16, #tpu.memory_space<vmem>>) attributes {dimension_semantics = [#tpu.dimension_semantics<parallel>], iteration_bounds = array<i64: 1>, scalar_prefetch = 0 : i64, scratch_operands = 0 : i64, tpu.core_type = #tpu.core_type<tc>, window_params = [{transform_indices = @transform_0, window_bounds = array<i64: 8, 1024>}, {pipeline_mode = #tpu.pipeline_mode<synchronous>, transform_indices = @transform_1, window_bounds = array<i64: 1024, 384>}, {pipeline_mode = #tpu.pipeline_mode<synchronous>, transform_indices = @transform_2, window_bounds = array<i64: 1, 384>}, {pipeline_mode = #tpu.pipeline_mode<synchronous>, transform_indices = @transform_3, window_bounds = array<i64: 384, 128>}, {pipeline_mode = #tpu.pipeline_mode<synchronous>, transform_indices = @transform_4, window_bounds = array<i64: 1, 128>}, {pipeline_mode = #tpu.pipeline_mode<synchronous>, transform_indices = @transform_5, window_bounds = array<i64: 128, 384>}, {pipeline_mode = #tpu.pipeline_mode<synchronous>, transform_indices = @transform_6, window_bounds = array<i64: 1, 384>}, {pipeline_mode = #tpu.pipeline_mode<synchronous>, transform_indices = @transform_7, window_bounds = array<i64: 384, 1024>}, {pipeline_mode = #tpu.pipeline_mode<synchronous>, transform_indices = @transform_8, window_bounds = array<i64: 1, 1024>}, {transform_indices = @transform_9, window_bounds = array<i64: 8, 128>}, {transform_indices = @transform_10, window_bounds = array<i64: 8, 1024>}]} {
    %c0 = arith.constant 0 : index
    %c0_0 = arith.constant 0 : index
    %0 = vector.load %arg1[%c0, %c0_0] : memref<8x1024xf32, #tpu.memory_space<vmem>>, vector<8x1024xf32>
    %1 = arith.truncf %0 : vector<8x1024xf32> to vector<8x1024xbf16>
    %c0_1 = arith.constant 0 : index
    %c0_2 = arith.constant 0 : index
    %2 = vector.load %arg2[%c0_1, %c0_2] : memref<1024x384xbf16, #tpu.memory_space<vmem>>, vector<1024x384xbf16>
    %cst = arith.constant dense<0.000000e+00> : vector<8x384xf32>
    %3 = tpu.matmul %1, %2, %cst {dimension_numbers = #tpu.dot_dimension_numbers<[1], [0], [0], [1], [0, 0, 1, 1], [], []>} : vector<8x1024xbf16>, vector<1024x384xbf16>, vector<8x384xf32> -> vector<8x384xf32>
    %c0_3 = arith.constant 0 : index
    %c0_4 = arith.constant 0 : index
    %4 = vector.load %arg3[%c0_3, %c0_4] : memref<1x384xf32, #tpu.memory_space<vmem>>, vector<1x384xf32>
    %5 = vector.broadcast %4 : vector<1x384xf32> to vector<8x384xf32>
    %6 = arith.addf %3, %5 : vector<8x384xf32>
    %7 = math.tanh %6 : vector<8x384xf32>
    %8 = arith.truncf %7 : vector<8x384xf32> to vector<8x384xbf16>
    %c0_5 = arith.constant 0 : index
    %c0_6 = arith.constant 0 : index
    %9 = vector.load %arg4[%c0_5, %c0_6] : memref<384x128xbf16, #tpu.memory_space<vmem>>, vector<384x128xbf16>
    %cst_7 = arith.constant dense<0.000000e+00> : vector<8x128xf32>
    %10 = tpu.matmul %8, %9, %cst_7 {dimension_numbers = #tpu.dot_dimension_numbers<[1], [0], [0], [1], [0, 0, 1, 1], [], []>} : vector<8x384xbf16>, vector<384x128xbf16>, vector<8x128xf32> -> vector<8x128xf32>
    %c0_8 = arith.constant 0 : index
    %c0_9 = arith.constant 0 : index
    %11 = vector.load %arg5[%c0_8, %c0_9] : memref<1x128xf32, #tpu.memory_space<vmem>>, vector<1x128xf32>
    %12 = vector.broadcast %11 : vector<1x128xf32> to vector<8x128xf32>
    %13 = arith.addf %10, %12 : vector<8x128xf32>
    %14 = arith.truncf %13 : vector<8x128xf32> to vector<8x128xbf16>
    %c0_10 = arith.constant 0 : index
    %c0_11 = arith.constant 0 : index
    %15 = vector.load %arg10[%c0_10, %c0_11] : memref<8x128xbf16, #tpu.memory_space<vmem>>, vector<8x128xbf16>
    tpu.vector_store %arg10[%c0_10, %c0_11], %14 {strides = array<i32>} : memref<8x128xbf16, #tpu.memory_space<vmem>>, vector<8x128xbf16>,
    %c0_12 = arith.constant 0 : index
    %c0_13 = arith.constant 0 : index
    %16 = vector.load %arg6[%c0_12, %c0_13] : memref<128x384xbf16, #tpu.memory_space<vmem>>, vector<128x384xbf16>
    %cst_14 = arith.constant dense<0.000000e+00> : vector<8x384xf32>
    %17 = tpu.matmul %14, %16, %cst_14 {dimension_numbers = #tpu.dot_dimension_numbers<[1], [0], [0], [1], [0, 0, 1, 1], [], []>} : vector<8x128xbf16>, vector<128x384xbf16>, vector<8x384xf32> -> vector<8x384xf32>
    %c0_15 = arith.constant 0 : index
    %c0_16 = arith.constant 0 : index
    %18 = vector.load %arg7[%c0_15, %c0_16] : memref<1x384xf32, #tpu.memory_space<vmem>>, vector<1x384xf32>
    %19 = vector.broadcast %18 : vector<1x384xf32> to vector<8x384xf32>
    %20 = arith.addf %17, %19 : vector<8x384xf32>
    %21 = math.tanh %20 : vector<8x384xf32>
    %22 = arith.truncf %21 : vector<8x384xf32> to vector<8x384xbf16>
    %c0_17 = arith.constant 0 : index
    %c0_18 = arith.constant 0 : index
    %23 = vector.load %arg8[%c0_17, %c0_18] : memref<384x1024xbf16, #tpu.memory_space<vmem>>, vector<384x1024xbf16>
    %cst_19 = arith.constant dense<0.000000e+00> : vector<8x1024xf32>
    %24 = tpu.matmul %22, %23, %cst_19 {dimension_numbers = #tpu.dot_dimension_numbers<[1], [0], [0], [1], [0, 0, 1, 1], [], []>} : vector<8x384xbf16>, vector<384x1024xbf16>, vector<8x1024xf32> -> vector<8x1024xf32>
    %c0_20 = arith.constant 0 : index
    %c0_21 = arith.constant 0 : index
    %25 = vector.load %arg9[%c0_20, %c0_21] : memref<1x1024xf32, #tpu.memory_space<vmem>>, vector<1x1024xf32>
    %26 = vector.broadcast %25 : vector<1x1024xf32> to vector<8x1024xf32>
    %27 = arith.addf %24, %26 : vector<8x1024xf32>
    %cst_22 = arith.constant 5.000000e-01 : f32
    %28 = vector.broadcast %cst_22 : f32 to vector<8x1024xf32>
    %29 = arith.mulf %28, %27 : vector<8x1024xf32>
    %30 = math.tanh %29 : vector<8x1024xf32>
    %cst_23 = arith.constant 5.000000e-01 : f32
    %31 = vector.broadcast %cst_23 : f32 to vector<8x1024xf32>
    %32 = arith.mulf %31, %30 : vector<8x1024xf32>
    %cst_24 = arith.constant 5.000000e-01 : f32
    %33 = vector.broadcast %cst_24 : f32 to vector<8x1024xf32>
    %34 = arith.addf %32, %33 : vector<8x1024xf32>
    %35 = arith.truncf %34 : vector<8x1024xf32> to vector<8x1024xbf16>
    %c0_25 = arith.constant 0 : index
    %c0_26 = arith.constant 0 : index
    %36 = vector.load %arg11[%c0_25, %c0_26] : memref<8x1024xbf16, #tpu.memory_space<vmem>>, vector<8x1024xbf16>
    tpu.vector_store %arg11[%c0_25, %c0_26], %35 {strides = array<i32>} : memref<8x1024xbf16, #tpu.memory_space<vmem>>, vector<8x1024xbf16>,
    return
  }
  func.func @transform_0(%arg0: i32) -> (i32, i32) {
    %c0_i32 = arith.constant 0 : i32
    %c0_i32_0 = arith.constant 0 : i32
    return %arg0, %c0_i32 : i32, i32
  }
  func.func @transform_1(%arg0: i32) -> (i32, i32) {
    %c0_i32 = arith.constant 0 : i32
    %c0_i32_0 = arith.constant 0 : i32
    %c0_i32_1 = arith.constant 0 : i32
    return %c0_i32, %c0_i32_0 : i32, i32
  }
  func.func @transform_2(%arg0: i32) -> (i32, i32) {
    %c0_i32 = arith.constant 0 : i32
    %c0_i32_0 = arith.constant 0 : i32
    %c0_i32_1 = arith.constant 0 : i32
    return %c0_i32, %c0_i32_0 : i32, i32
  }
  func.func @transform_3(%arg0: i32) -> (i32, i32) {
    %c0_i32 = arith.constant 0 : i32
    %c0_i32_0 = arith.constant 0 : i32
    %c0_i32_1 = arith.constant 0 : i32
    return %c0_i32, %c0_i32_0 : i32, i32
  }
  func.func @transform_4(%arg0: i32) -> (i32, i32) {
    %c0_i32 = arith.constant 0 : i32
    %c0_i32_0 = arith.constant 0 : i32
    %c0_i32_1 = arith.constant 0 : i32
    return %c0_i32, %c0_i32_0 : i32, i32
  }
  func.func @transform_5(%arg0: i32) -> (i32, i32) {
    %c0_i32 = arith.constant 0 : i32
    %c0_i32_0 = arith.constant 0 : i32
    %c0_i32_1 = arith.constant 0 : i32
    return %c0_i32, %c0_i32_0 : i32, i32
  }
  func.func @transform_6(%arg0: i32) -> (i32, i32) {
    %c0_i32 = arith.constant 0 : i32
    %c0_i32_0 = arith.constant 0 : i32
    %c0_i32_1 = arith.constant 0 : i32
    return %c0_i32, %c0_i32_0 : i32, i32
  }
  func.func @transform_7(%arg0: i32) -> (i32, i32) {
    %c0_i32 = arith.constant 0 : i32
    %c0_i32_0 = arith.constant 0 : i32
    %c0_i32_1 = arith.constant 0 : i32
    return %c0_i32, %c0_i32_0 : i32, i32
  }
  func.func @transform_8(%arg0: i32) -> (i32, i32) {
    %c0_i32 = arith.constant 0 : i32
    %c0_i32_0 = arith.constant 0 : i32
    %c0_i32_1 = arith.constant 0 : i32
    return %c0_i32, %c0_i32_0 : i32, i32
  }
  func.func @transform_9(%arg0: i32) -> (i32, i32) {
    %c0_i32 = arith.constant 0 : i32
    %c0_i32_0 = arith.constant 0 : i32
    return %arg0, %c0_i32 : i32, i32
  }
  func.func @transform_10(%arg0: i32) -> (i32, i32) {
    %c0_i32 = arith.constant 0 : i32
    %c0_i32_0 = arith.constant 0 : i32
    return %arg0, %c0_i32 : i32, i32
  }
}

</mosaic_0001>

<llo_original>
// kernel: autoencoder_forward.1
$region0: #{autoencoder_forward.1}
  #allocation0 [shape = 'u32[]', space=smem, size = 0x4, offset = 0x4, fixed_abs, tag = 'smem constant byte address 0x4 - core index']
  #allocation1 [shape = 'u32[144,128]{1,0:T(1,128)}', space=vmem, size = 0x12000, scoped, tag = 'internal scratch']
  %s0 = inlined_call_operand.hbm [shape: f32[8,1024], index: 0, kind: input, shape index: {}]
  %s1 = inlined_call_operand.hbm [shape: bf16[1024,384], index: 1, kind: input, shape index: {}]
  %s2 = inlined_call_operand.vmem [shape: f32[1,384], index: 2, kind: input, shape index: {}]
  %s3 = inlined_call_operand.hbm [shape: bf16[384,128], index: 3, kind: input, shape index: {}]
  %s4 = inlined_call_operand.vmem [shape: f32[1,128], index: 4, kind: input, shape index: {}]
  %s5 = inlined_call_operand.hbm [shape: bf16[128,384], index: 5, kind: input, shape index: {}]
  %s6 = inlined_call_operand.vmem [shape: f32[1,384], index: 6, kind: input, shape index: {}]
  %s7 = inlined_call_operand.hbm [shape: bf16[384,1024], index: 7, kind: input, shape index: {}]
  %s8 = inlined_call_operand.vmem [shape: f32[1,1024], index: 8, kind: input, shape index: {}]
  %s9 = inlined_call_operand.vmem [shape: bf16[8,128], index: 9, kind: output, shape index: {0}]
  %s10 = inlined_call_operand.hbm [shape: bf16[8,1024], index: 10, kind: output, shape index: {1}]
  %11 = xla_tuple %s9, %s10
  %s12 = sld [smem:[#allocation0]]
  $region74: #{autoencoder_forward.1} parent=0
    _
  %s14 = ssub.s32 1, %s12
  %s15 = scalar_select 0, %s14, %s12
  $region1: #{autoencoder_forward.1} parent=0
    #allocation2 [shape = 'u8[32768]{0}', space=vmem, size = 0x8000, scoped, tag = 'input window, operand 0, single buffered']
    #allocation3 [shape = 's32[1]{0}', space=sflag, size = 0x4, scoped, tag = 'scoped memory for autoencoder_forward.1']
    #allocation4 [shape = 's32[1]{0}', space=sflag, size = 0x4, scoped, tag = 'scoped memory for autoencoder_forward.1']
    #allocation5 [shape = 'u8[786432]{0}', space=vmem, size = 0xc0000, scoped, tag = 'input window, operand 1, single buffered']
    #allocation6 [shape = 's32[1]{0}', space=sflag, size = 0x4, scoped, tag = 'scoped memory for autoencoder_forward.1']
    #allocation7 [shape = 'u8[98304]{0}', space=vmem, size = 0x18000, scoped, tag = 'input window, operand 3, single buffered']
    #allocation8 [shape = 'u8[98304]{0}', space=vmem, size = 0x18000, scoped, tag = 'input window, operand 5, single buffered']
    #allocation9 [shape = 's32[1]{0}', space=sflag, size = 0x4, scoped, tag = 'scoped memory for autoencoder_forward.1']
    #allocation10 [shape = 'u8[786432]{0}', space=vmem, size = 0xc0000, scoped, tag = 'input window, operand 7, single buffered']
    #allocation11 [shape = 'u8[16384]{0}', space=vmem, size = 0x4000, scoped, tag = 'output window, operand 1, single buffered']
    %16 = vsyncpa [#allocation3], 0
    %17 = vsyncpa [#allocation6], 0
    %18 = vsyncpa [#allocation9], 0
    %19 = vsyncpa [#allocation4], 0
    // Predicated region
    $region2: #{autoencoder_forward.1} parent=1 // pred_check
      _
    $region3: #{autoencoder_forward.1} parent=1 // pred_check_branch
      %21 = sbr.rel (0) target = $region5
    $region4: #{autoencoder_forward.1} parent=1 // pred_region
      %s23 = ssub.s32 1024, 1024
      %24 = vsyncadd [#allocation3], %s23
      %s26 = sshll.u32 [#allocation2], 4
      %s27 = int_to_ptr.vmem [resolvable:$true] %s26
      %29 = dma.hbm_to_vmem [thread:$0]  %s0, 1024, %s27, [#allocation3]
    $region5: #{autoencoder_forward.1} parent=1 // pred_fallthru
      _
    // Predicated region
    $region6: #{autoencoder_forward.1} parent=1 // pred_check
      _
    $region7: #{autoencoder_forward.1} parent=1 // pred_check_branch
      %31 = sbr.rel (0) target = $region9
    $region8: #{autoencoder_forward.1} parent=1 // pred_region
      %s33 = ssub.s32 24576, 24576
      %34 = vsyncadd [#allocation6], %s33
      %s35 = sshll.u32 [#allocation5], 4
      %s36 = int_to_ptr.vmem [resolvable:$true] %s35
      %41 = dma.hbm_to_vmem [thread:$0]  %s1, 24576, %s36, [#allocation6], 192, 192, 12
    $region9: #{autoencoder_forward.1} parent=1 // pred_fallthru
      _
    // Predicated region
    $region10: #{autoencoder_forward.1} parent=1 // pred_check
      _
    $region11: #{autoencoder_forward.1} parent=1 // pred_check_branch
      %43 = sbr.rel (0) target = $region13
    $region12: #{autoencoder_forward.1} parent=1 // pred_region
      _
    $region13: #{autoencoder_forward.1} parent=1 // pred_fallthru
      _
    // Predicated region
    $region14: #{autoencoder_forward.1} parent=1 // pred_check
      _
    $region15: #{autoencoder_forward.1} parent=1 // pred_check_branch
      %45 = sbr.rel (0) target = $region17
    $region16: #{autoencoder_forward.1} parent=1 // pred_region
      %s47 = ssub.s32 3072, 3072
      %48 = vsyncadd [#allocation6], %s47
      %s49 = sshll.u32 [#allocation7], 4
      %s50 = int_to_ptr.vmem [resolvable:$true] %s49
      %55 = dma.hbm_to_vmem [thread:$0]  %s3, 3072, %s50, [#allocation6], 64, 64, 4
    $region17: #{autoencoder_forward.1} parent=1 // pred_fallthru
      _
    // Predicated region
    $region18: #{autoencoder_forward.1} parent=1 // pred_check
      _
    $region19: #{autoencoder_forward.1} parent=1 // pred_check_branch
      %57 = sbr.rel (0) target = $region21
    $region20: #{autoencoder_forward.1} parent=1 // pred_region
      _
    $region21: #{autoencoder_forward.1} parent=1 // pred_fallthru
      _
    // Predicated region
    $region22: #{autoencoder_forward.1} parent=1 // pred_check
      _
    $region23: #{autoencoder_forward.1} parent=1 // pred_check_branch
      %59 = sbr.rel (0) target = $region25
    $region24: #{autoencoder_forward.1} parent=1 // pred_region
      %s61 = ssub.s32 3072, 3072
      %62 = vsyncadd [#allocation9], %s61
      %s63 = sshll.u32 [#allocation8], 4
      %s64 = int_to_ptr.vmem [resolvable:$true] %s63
      %69 = dma.hbm_to_vmem [thread:$0]  %s5, 3072, %s64, [#allocation9], 192, 192, 12
    $region25: #{autoencoder_forward.1} parent=1 // pred_fallthru
      _
    // Predicated region
    $region26: #{autoencoder_forward.1} parent=1 // pred_check
      _
    $region27: #{autoencoder_forward.1} parent=1 // pred_check_branch
      %71 = sbr.rel (0) target = $region29
    $region28: #{autoencoder_forward.1} parent=1 // pred_region
      _
    $region29: #{autoencoder_forward.1} parent=1 // pred_fallthru
      _
    // Predicated region
    $region30: #{autoencoder_forward.1} parent=1 // pred_check
      _
    $region31: #{autoencoder_forward.1} parent=1 // pred_check_branch
      %73 = sbr.rel (0) target = $region33
    $region32: #{autoencoder_forward.1} parent=1 // pred_region
      %s75 = ssub.s32 24576, 24576
      %76 = vsyncadd [#allocation9], %s75
      %s77 = sshll.u32 [#allocation10], 4
      %s78 = int_to_ptr.vmem [resolvable:$true] %s77
      %83 = dma.hbm_to_vmem [thread:$0]  %s7, 24576, %s78, [#allocation9], 512, 512, 32
    $region33: #{autoencoder_forward.1} parent=1 // pred_fallthru
      _
    // Predicated region
    $region34: #{autoencoder_forward.1} parent=1 // pred_check
      _
    $region35: #{autoencoder_forward.1} parent=1 // pred_check_branch
      %85 = sbr.rel (0) target = $region37
    $region36: #{autoencoder_forward.1} parent=1 // pred_region
      _
    $region37: #{autoencoder_forward.1} parent=1 // pred_fallthru
      _
    // Predicated region
    $region38: #{autoencoder_forward.1} parent=1 // pred_check
      _
    $region39: #{autoencoder_forward.1} parent=1 // pred_check_branch
      %87 = sbr.rel (0) target = $region41
    $region40: #{autoencoder_forward.1} parent=1 // pred_region
      %88 = dma.done [#allocation3], 1024
    $region41: #{autoencoder_forward.1} parent=1 // pred_fallthru
      _
    // Predicated region
    $region42: #{autoencoder_forward.1} parent=1 // pred_check
      _
    $region43: #{autoencoder_forward.1} parent=1 // pred_check_branch
      %90 = sbr.rel (0) target = $region45
    $region44: #{autoencoder_forward.1} parent=1 // pred_region
      %91 = dma.done [#allocation6], 24576
    $region45: #{autoencoder_forward.1} parent=1 // pred_fallthru
      _
    // Predicated region
    $region46: #{autoencoder_forward.1} parent=1 // pred_check
      _
    $region47: #{autoencoder_forward.1} parent=1 // pred_check_branch
      %93 = sbr.rel (0) target = $region49
    $region48: #{autoencoder_forward.1} parent=1 // pred_region
      %94 = dma.done [#allocation6], 3072
    $region49: #{autoencoder_forward.1} parent=1 // pred_fallthru
      _
    // Predicated region
    $region50: #{autoencoder_forward.1} parent=1 // pred_check
      _
    $region51: #{autoencoder_forward.1} parent=1 // pred_check_branch
      %96 = sbr.rel (0) target = $region53
    $region52: #{autoencoder_forward.1} parent=1 // pred_region
      %97 = dma.done [#allocation9], 3072
    $region53: #{autoencoder_forward.1} parent=1 // pred_fallthru
      _
    // Predicated region
    $region54: #{autoencoder_forward.1} parent=1 // pred_check
      _
    $region55: #{autoencoder_forward.1} parent=1 // pred_check_branch
      %99 = sbr.rel (0) target = $region57
    $region56: #{autoencoder_forward.1} parent=1 // pred_region
      %100 = dma.done [#allocation9], 24576
    $region57: #{autoencoder_forward.1} parent=1 // pred_fallthru
      _
    %v102 = vld [vmem:[#allocation2] sm:$0xff]
    %v103 = vld [vmem:[#allocation2 + $0x8] sm:$0xff]
    %v104 = vld [vmem:[#allocation2 + $0x10] sm:$0xff]
    %v105 = vld [vmem:[#allocation2 + $0x18] sm:$0xff]
    %v106 = vld [vmem:[#allocation2 + $0x20] sm:$0xff]
    %v107 = vld [vmem:[#allocation2 + $0x28] sm:$0xff]
    %v108 = vld [vmem:[#allocation2 + $0x30] sm:$0xff]
    %v109 = vld [vmem:[#allocation2 + $0x38] sm:$0xff]
    %v110 = vpack.c.bf16 %v102, %v102
    %v111 = vpack.c.bf16 %v103, %v103
    %v112 = vpack.c.bf16 %v104, %v104
    %v113 = vpack.c.bf16 %v105, %v105
    %v114 = vpack.c.bf16 %v106, %v106
    %v115 = vpack.c.bf16 %v107, %v107
    %v116 = vpack.c.bf16 %v108, %v108
    %v117 = vpack.c.bf16 %v109, %v109
    %v118 = vld [vmem:[#allocation5] sm:$0xff]
    %v119 = vld [vmem:[#allocation5 + $0x8] sm:$0xf]
    %v120 = vld [vmem:[#allocation5 + $0xc] sm:$0xff]
    %v121 = vld [vmem:[#allocation5 + $0x14] sm:$0xf]
    %v122 = vld [vmem:[#allocation5 + $0x18] sm:$0xff]
    %v123 = vld [vmem:[#allocation5 + $0x20] sm:$0xf]
    %v124 = vld [vmem:[#allocation5 + $0x24] sm:$0xff]
    %v125 = vld [vmem:[#allocation5 + $0x2c] sm:$0xf]
    %v126 = vld [vmem:[#allocation5 + $0x30] sm:$0xff]
    %v127 = vld [vmem:[#allocation5 + $0x38] sm:$0xf]
    %v128 = vld [vmem:[#allocation5 + $0x3c] sm:$0xff]
    %v129 = vld [vmem:[#allocation5 + $0x44] sm:$0xf]
    %v130 = vld [vmem:[#allocation5 + $0x48] sm:$0xff]
    %v131 = vld [vmem:[#allocation5 + $0x50] sm:$0xf]
    %v132 = vld [vmem:[#allocation5 + $0x54] sm:$0xff]
    %v133 = vld [vmem:[#allocation5 + $0x5c] sm:$0xf]
    %v134 = vld [vmem:[#allocation5 + $0x60] sm:$0xff]
    %v135 = vld [vmem:[#allocation5 + $0x68] sm:$0xf]
    %v136 = vld [vmem:[#allocation5 + $0x6c] sm:$0xff]
    %v137 = vld [vmem:[#allocation5 + $0x74] sm:$0xf]
    %v138 = vld [vmem:[#allocation5 + $0x78] sm:$0xff]
    %v139 = vld [vmem:[#allocation5 + $0x80] sm:$0xf]
    %v140 = vld [vmem:[#allocation5 + $0x84] sm:$0xff]
    %v141 = vld [vmem:[#allocation5 + $0x8c] sm:$0xf]
    %v142 = vld [vmem:[#allocation5 + $0x90] sm:$0xff]
    %v143 = vld [vmem:[#allocation5 + $0x98] sm:$0xf]
    %v144 = vld [vmem:[#allocation5 + $0x9c] sm:$0xff]
    %v145 = vld [vmem:[#allocation5 + $0xa4] sm:$0xf]
    %v146 = vld [vmem:[#allocation5 + $0xa8] sm:$0xff]
    %v147 = vld [vmem:[#allocation5 + $0xb0] sm:$0xf]
    %v148 = vld [vmem:[#allocation5 + $0xb4] sm:$0xff]
    %v149 = vld [vmem:[#allocation5 + $0xbc] sm:$0xf]
    %v150 = vld [vmem:[#allocation5 + $0xc0] sm:$0xff]
    %v151 = vld [vmem:[#allocation5 + $0xc8] sm:$0xf]
    %v152 = vld [vmem:[#allocation5 + $0xcc] sm:$0xff]
    %v153 = vld [vmem:[#allocation5 + $0xd4] sm:$0xf]
    %v154 = vld [vmem:[#allocation5 + $0xd8] sm:$0xff]
    %v155 = vld [vmem:[#allocation5 + $0xe0] sm:$0xf]
    %v156 = vld [vmem:[#allocation5 + $0xe4] sm:$0xff]
    %v157 = vld [vmem:[#allocation5 + $0xec] sm:$0xf]
    %v158 = vld [vmem:[#allocation5 + $0xf0] sm:$0xff]
    %v159 = vld [vmem:[#allocation5 + $0xf8] sm:$0xf]
    %v160 = vld [vmem:[#allocation5 + $0xfc] sm:$0xff]
    %v161 = vld [vmem:[#allocation5 + $0x104] sm:$0xf]
    %v162 = vld [vmem:[#allocation5 + $0x108] sm:$0xff]
    %v163 = vld [vmem:[#allocation5 + $0x110] sm:$0xf]
    %v164 = vld [vmem:[#allocation5 + $0x114] sm:$0xff]
    %v165 = vld [vmem:[#allocation5 + $0x11c] sm:$0xf]
    %v166 = vld [vmem:[#allocation5 + $0x120] sm:$0xff]
    %v167 = vld [vmem:[#allocation5 + $0x128] sm:$0xf]
    %v168 = vld [vmem:[#allocation5 + $0x12c] sm:$0xff]
    %v169 = vld [vmem:[#allocation5 + $0x134] sm:$0xf]
    %v170 = vld [vmem:[#allocation5 + $0x138] sm:$0xff]
    %v171 = vld [vmem:[#allocation5 + $0x140] sm:$0xf]
    %v172 = vld [vmem:[#allocation5 + $0x144] sm:$0xff]
    %v173 = vld [vmem:[#allocation5 + $0x14c] sm:$0xf]
    %v174 = vld [vmem:[#allocation5 + $0x150] sm:$0xff]
    %v175 = vld [vmem:[#allocation5 + $0x158] sm:$0xf]
    %v176 = vld [vmem:[#allocation5 + $0x15c] sm:$0xff]
    %v177 = vld [vmem:[#allocation5 + $0x164] sm:$0xf]
    %v178 = vld [vmem:[#allocation5 + $0x168] sm:$0xff]
    %v179 = vld [vmem:[#allocation5 + $0x170] sm:$0xf]
    %v180 = vld [vmem:[#allocation5 + $0x174] sm:$0xff]
    %v181 = vld [vmem:[#allocation5 + $0x17c] sm:$0xf]
    %v182 = vld [vmem:[#allocation5 + $0x180] sm:$0xff]
    %v183 = vld [vmem:[#allocation5 + $0x188] sm:$0xf]
    %v184 = vld [vmem:[#allocation5 + $0x18c] sm:$0xff]
    %v185 = vld [vmem:[#allocation5 + $0x194] sm:$0xf]
    %v186 = vld [vmem:[#allocation5 + $0x198] sm:$0xff]
    %v187 = vld [vmem:[#allocation5 + $0x1a0] sm:$0xf]
    %v188 = vld [vmem:[#allocation5 + $0x1a4] sm:$0xff]
    %v189 = vld [vmem:[#allocation5 + $0x1ac] sm:$0xf]
    %v190 = vld [vmem:[#allocation5 + $0x1b0] sm:$0xff]
    %v191 = vld [vmem:[#allocation5 + $0x1b8] sm:$0xf]
    %v192 = vld [vmem:[#allocation5 + $0x1bc] sm:$0xff]
    %v193 = vld [vmem:[#allocation5 + $0x1c4] sm:$0xf]
    %v194 = vld [vmem:[#allocation5 + $0x1c8] sm:$0xff]
    %v195 = vld [vmem:[#allocation5 + $0x1d0] sm:$0xf]
    %v196 = vld [vmem:[#allocation5 + $0x1d4] sm:$0xff]
    %v197 = vld [vmem:[#allocation5 + $0x1dc] sm:$0xf]
    %v198 = vld [vmem:[#allocation5 + $0x1e0] sm:$0xff]
    %v199 = vld [vmem:[#allocation5 + $0x1e8] sm:$0xf]
    %v200 = vld [vmem:[#allocation5 + $0x1ec] sm:$0xff]
    %v201 = vld [vmem:[#allocation5 + $0x1f4] sm:$0xf]
    %v202 = vld [vmem:[#allocation5 + $0x1f8] sm:$0xff]
    %v203 = vld [vmem:[#allocation5 + $0x200] sm:$0xf]
    %v204 = vld [vmem:[#allocation5 + $0x204] sm:$0xff]
    %v205 = vld [vmem:[#allocation5 + $0x20c] sm:$0xf]
    %v206 = vld [vmem:[#allocation5 + $0x210] sm:$0xff]
    %v207 = vld [vmem:[#allocation5 + $0x218] sm:$0xf]
    %v208 = vld [vmem:[#allocation5 + $0x21c] sm:$0xff]
    %v209 = vld [vmem:[#allocation5 + $0x224] sm:$0xf]
    %v210 = vld [vmem:[#allocation5 + $0x228] sm:$0xff]
    %v211 = vld [vmem:[#allocation5 + $0x230] sm:$0xf]
    %v212 = vld [vmem:[#allocation5 + $0x234] sm:$0xff]
    %v213 = vld [vmem:[#allocation5 + $0x23c] sm:$0xf]
    %v214 = vld [vmem:[#allocation5 + $0x240] sm:$0xff]
    %v215 = vld [vmem:[#allocation5 + $0x248] sm:$0xf]
    %v216 = vld [vmem:[#allocation5 + $0x24c] sm:$0xff]
    %v217 = vld [vmem:[#allocation5 + $0x254] sm:$0xf]
    %v218 = vld [vmem:[#allocation5 + $0x258] sm:$0xff]
    %v219 = vld [vmem:[#allocation5 + $0x260] sm:$0xf]
    %v220 = vld [vmem:[#allocation5 + $0x264] sm:$0xff]
    %v221 = vld [vmem:[#allocation5 + $0x26c] sm:$0xf]
    %v222 = vld [vmem:[#allocation5 + $0x270] sm:$0xff]
    %v223 = vld [vmem:[#allocation5 + $0x278] sm:$0xf]
    %v224 = vld [vmem:[#allocation5 + $0x27c] sm:$0xff]
    %v225 = vld [vmem:[#allocation5 + $0x284] sm:$0xf]
    %v226 = vld [vmem:[#allocation5 + $0x288] sm:$0xff]
    %v227 = vld [vmem:[#allocation5 + $0x290] sm:$0xf]
    %v228 = vld [vmem:[#allocation5 + $0x294] sm:$0xff]
    %v229 = vld [vmem:[#allocation5 + $0x29c] sm:$0xf]
    %v230 = vld [vmem:[#allocation5 + $0x2a0] sm:$0xff]
    %v231 = vld [vmem:[#allocation5 + $0x2a8] sm:$0xf]
    %v232 = vld [vmem:[#allocation5 + $0x2ac] sm:$0xff]
    %v233 = vld [vmem:[#allocation5 + $0x2b4] sm:$0xf]
    %v234 = vld [vmem:[#allocation5 + $0x2b8] sm:$0xff]
    %v235 = vld [vmem:[#allocation5 + $0x2c0] sm:$0xf]
    %v236 = vld [vmem:[#allocation5 + $0x2c4] sm:$0xff]
    %v237 = vld [vmem:[#allocation5 + $0x2cc] sm:$0xf]
    %v238 = vld [vmem:[#allocation5 + $0x2d0] sm:$0xff]
    %v239 = vld [vmem:[#allocation5 + $0x2d8] sm:$0xf]
    %v240 = vld [vmem:[#allocation5 + $0x2dc] sm:$0xff]
    %v241 = vld [vmem:[#allocation5 + $0x2e4] sm:$0xf]
    %v242 = vld [vmem:[#allocation5 + $0x2e8] sm:$0xff]
    %v243 = vld [vmem:[#allocation5 + $0x2f0] sm:$0xf]
    %v244 = vld [vmem:[#allocation5 + $0x2f4] sm:$0xff]
    %v245 = vld [vmem:[#allocation5 + $0x2fc] sm:$0xf]
    %v246 = vld [vmem:[#allocation5 + $0x300] sm:$0xff]
    %v247 = vld [vmem:[#allocation5 + $0x308] sm:$0xf]
    %v248 = vld [vmem:[#allocation5 + $0x30c] sm:$0xff]
    %v249 = vld [vmem:[#allocation5 + $0x314] sm:$0xf]
    %v250 = vld [vmem:[#allocation5 + $0x318] sm:$0xff]
    %v251 = vld [vmem:[#allocation5 + $0x320] sm:$0xf]
    %v252 = vld [vmem:[#allocation5 + $0x324] sm:$0xff]
    %v253 = vld [vmem:[#allocation5 + $0x32c] sm:$0xf]
    %v254 = vld [vmem:[#allocation5 + $0x330] sm:$0xff]
    %v255 = vld [vmem:[#allocation5 + $0x338] sm:$0xf]
    %v256 = vld [vmem:[#allocation5 + $0x33c] sm:$0xff]
    %v257 = vld [vmem:[#allocation5 + $0x344] sm:$0xf]
    %v258 = vld [vmem:[#allocation5 + $0x348] sm:$0xff]
    %v259 = vld [vmem:[#allocation5 + $0x350] sm:$0xf]
    %v260 = vld [vmem:[#allocation5 + $0x354] sm:$0xff]
    %v261 = vld [vmem:[#allocation5 + $0x35c] sm:$0xf]
    %v262 = vld [vmem:[#allocation5 + $0x360] sm:$0xff]
    %v263 = vld [vmem:[#allocation5 + $0x368] sm:$0xf]
    %v264 = vld [vmem:[#allocation5 + $0x36c] sm:$0xff]
    %v265 = vld [vmem:[#allocation5 + $0x374] sm:$0xf]
    %v266 = vld [vmem:[#allocation5 + $0x378] sm:$0xff]
    %v267 = vld [vmem:[#allocation5 + $0x380] sm:$0xf]
    %v268 = vld [vmem:[#allocation5 + $0x384] sm:$0xff]
    %v269 = vld [vmem:[#allocation5 + $0x38c] sm:$0xf]
    %v270 = vld [vmem:[#allocation5 + $0x390] sm:$0xff]
    %v271 = vld [vmem:[#allocation5 + $0x398] sm:$0xf]
    %v272 = vld [vmem:[#allocation5 + $0x39c] sm:$0xff]
    %v273 = vld [vmem:[#allocation5 + $0x3a4] sm:$0xf]
    %v274 = vld [vmem:[#allocation5 + $0x3a8] sm:$0xff]
    %v275 = vld [vmem:[#allocation5 + $0x3b0] sm:$0xf]
    %v276 = vld [vmem:[#allocation5 + $0x3b4] sm:$0xff]
    %v277 = vld [vmem:[#allocation5 + $0x3bc] sm:$0xf]
    %v278 = vld [vmem:[#allocation5 + $0x3c0] sm:$0xff]
    %v279 = vld [vmem:[#allocation5 + $0x3c8] sm:$0xf]
    %v280 = vld [vmem:[#allocation5 + $0x3cc] sm:$0xff]
    %v281 = vld [vmem:[#allocation5 + $0x3d4] sm:$0xf]
    %v282 = vld [vmem:[#allocation5 + $0x3d8] sm:$0xff]
    %v283 = vld [vmem:[#allocation5 + $0x3e0] sm:$0xf]
    %v284 = vld [vmem:[#allocation5 + $0x3e4] sm:$0xff]
    %v285 = vld [vmem:[#allocation5 + $0x3ec] sm:$0xf]
    %v286 = vld [vmem:[#allocation5 + $0x3f0] sm:$0xff]
    %v287 = vld [vmem:[#allocation5 + $0x3f8] sm:$0xf]
    %v288 = vld [vmem:[#allocation5 + $0x3fc] sm:$0xff]
    %v289 = vld [vmem:[#allocation5 + $0x404] sm:$0xf]
    %v290 = vld [vmem:[#allocation5 + $0x408] sm:$0xff]
    %v291 = vld [vmem:[#allocation5 + $0x410] sm:$0xf]
    %v292 = vld [vmem:[#allocation5 + $0x414] sm:$0xff]
    %v293 = vld [vmem:[#allocation5 + $0x41c] sm:$0xf]
    %v294 = vld [vmem:[#allocation5 + $0x420] sm:$0xff]
    %v295 = vld [vmem:[#allocation5 + $0x428] sm:$0xf]
    %v296 = vld [vmem:[#allocation5 + $0x42c] sm:$0xff]
    %v297 = vld [vmem:[#allocation5 + $0x434] sm:$0xf]
    %v298 = vld [vmem:[#allocation5 + $0x438] sm:$0xff]
    %v299 = vld [vmem:[#allocation5 + $0x440] sm:$0xf]
    %v300 = vld [vmem:[#allocation5 + $0x444] sm:$0xff]
    %v301 = vld [vmem:[#allocation5 + $0x44c] sm:$0xf]
    %v302 = vld [vmem:[#allocation5 + $0x450] sm:$0xff]
    %v303 = vld [vmem:[#allocation5 + $0x458] sm:$0xf]
    %v304 = vld [vmem:[#allocation5 + $0x45c] sm:$0xff]
    %v305 = vld [vmem:[#allocation5 + $0x464] sm:$0xf]
    %v306 = vld [vmem:[#allocation5 + $0x468] sm:$0xff]
    %v307 = vld [vmem:[#allocation5 + $0x470] sm:$0xf]
    %v308 = vld [vmem:[#allocation5 + $0x474] sm:$0xff]
    %v309 = vld [vmem:[#allocation5 + $0x47c] sm:$0xf]
    %v310 = vld [vmem:[#allocation5 + $0x480] sm:$0xff]
    %v311 = vld [vmem:[#allocation5 + $0x488] sm:$0xf]
    %v312 = vld [vmem:[#allocation5 + $0x48c] sm:$0xff]
    %v313 = vld [vmem:[#allocation5 + $0x494] sm:$0xf]
    %v314 = vld [vmem:[#allocation5 + $0x498] sm:$0xff]
    %v315 = vld [vmem:[#allocation5 + $0x4a0] sm:$0xf]
    %v316 = vld [vmem:[#allocation5 + $0x4a4] sm:$0xff]
    %v317 = vld [vmem:[#allocation5 + $0x4ac] sm:$0xf]
    %v318 = vld [vmem:[#allocation5 + $0x4b0] sm:$0xff]
    %v319 = vld [vmem:[#allocation5 + $0x4b8] sm:$0xf]
    %v320 = vld [vmem:[#allocation5 + $0x4bc] sm:$0xff]
    %v321 = vld [vmem:[#allocation5 + $0x4c4] sm:$0xf]
    %v322 = vld [vmem:[#allocation5 + $0x4c8] sm:$0xff]
    %v323 = vld [vmem:[#allocation5 + $0x4d0] sm:$0xf]
    %v324 = vld [vmem:[#allocation5 + $0x4d4] sm:$0xff]
    %v325 = vld [vmem:[#allocation5 + $0x4dc] sm:$0xf]
    %v326 = vld [vmem:[#allocation5 + $0x4e0] sm:$0xff]
    %v327 = vld [vmem:[#allocation5 + $0x4e8] sm:$0xf]
    %v328 = vld [vmem:[#allocation5 + $0x4ec] sm:$0xff]
    %v329 = vld [vmem:[#allocation5 + $0x4f4] sm:$0xf]
    %v330 = vld [vmem:[#allocation5 + $0x4f8] sm:$0xff]
    %v331 = vld [vmem:[#allocation5 + $0x500] sm:$0xf]
    %v332 = vld [vmem:[#allocation5 + $0x504] sm:$0xff]
    %v333 = vld [vmem:[#allocation5 + $0x50c] sm:$0xf]
    %v334 = vld [vmem:[#allocation5 + $0x510] sm:$0xff]
    %v335 = vld [vmem:[#allocation5 + $0x518] sm:$0xf]
    %v336 = vld [vmem:[#allocation5 + $0x51c] sm:$0xff]
    %v337 = vld [vmem:[#allocation5 + $0x524] sm:$0xf]
    %v338 = vld [vmem:[#allocation5 + $0x528] sm:$0xff]
    %v339 = vld [vmem:[#allocation5 + $0x530] sm:$0xf]
    %v340 = vld [vmem:[#allocation5 + $0x534] sm:$0xff]
    %v341 = vld [vmem:[#allocation5 + $0x53c] sm:$0xf]
    %v342 = vld [vmem:[#allocation5 + $0x540] sm:$0xff]
    %v343 = vld [vmem:[#allocation5 + $0x548] sm:$0xf]
    %v344 = vld [vmem:[#allocation5 + $0x54c] sm:$0xff]
    %v345 = vld [vmem:[#allocation5 + $0x554] sm:$0xf]
    %v346 = vld [vmem:[#allocation5 + $0x558] sm:$0xff]
    %v347 = vld [vmem:[#allocation5 + $0x560] sm:$0xf]
    %v348 = vld [vmem:[#allocation5 + $0x564] sm:$0xff]
    %v349 = vld [vmem:[#allocation5 + $0x56c] sm:$0xf]
    %v350 = vld [vmem:[#allocation5 + $0x570] sm:$0xff]
    %v351 = vld [vmem:[#allocation5 + $0x578] sm:$0xf]
    %v352 = vld [vmem:[#allocation5 + $0x57c] sm:$0xff]
    %v353 = vld [vmem:[#allocation5 + $0x584] sm:$0xf]
    %v354 = vld [vmem:[#allocation5 + $0x588] sm:$0xff]
    %v355 = vld [vmem:[#allocation5 + $0x590] sm:$0xf]
    %v356 = vld [vmem:[#allocation5 + $0x594] sm:$0xff]
    %v357 = vld [vmem:[#allocation5 + $0x59c] sm:$0xf]
    %v358 = vld [vmem:[#allocation5 + $0x5a0] sm:$0xff]
    %v359 = vld [vmem:[#allocation5 + $0x5a8] sm:$0xf]
    %v360 = vld [vmem:[#allocation5 + $0x5ac] sm:$0xff]
    %v361 = vld [vmem:[#allocation5 + $0x5b4] sm:$0xf]
    %v362 = vld [vmem:[#allocation5 + $0x5b8] sm:$0xff]
    %v363 = vld [vmem:[#allocation5 + $0x5c0] sm:$0xf]
    %v364 = vld [vmem:[#allocation5 + $0x5c4] sm:$0xff]
    %v365 = vld [vmem:[#allocation5 + $0x5cc] sm:$0xf]
    %v366 = vld [vmem:[#allocation5 + $0x5d0] sm:$0xff]
    %v367 = vld [vmem:[#allocation5 + $0x5d8] sm:$0xf]
    %v368 = vld [vmem:[#allocation5 + $0x5dc] sm:$0xff]
    %v369 = vld [vmem:[#allocation5 + $0x5e4] sm:$0xf]
    %v370 = vld [vmem:[#allocation5 + $0x5e8] sm:$0xff]
    %v371 = vld [vmem:[#allocation5 + $0x5f0] sm:$0xf]
    %v372 = vld [vmem:[#allocation5 + $0x5f4] sm:$0xff]
    %v373 = vld [vmem:[#allocation5 + $0x5fc] sm:$0xf]
    %v374 = vld [vmem:[%s2] sm:$0x7]
    %v376 = vlaneseq
    %v377 = vshrl.u32 %v376, 7
    %v378 = vsub.s32 0, %v377
    %v379 = vrot.slane %v374, %v378
    %v380 = vlaneseq
    %v381 = vshrl.u32 %v380, 7
    %v382 = vsub.s32 1, %v381
    %v383 = vrot.slane %v374, %v382
    %v384 = vlaneseq
    %v385 = vshrl.u32 %v384, 7
    %v386 = vsub.s32 2, %v385
    %v387 = vrot.slane %v374, %v386
    %v647 = vunpack.c.l.b16 %v118
    %v648 = vunpack.c.h.b16 %v118
    %v649 = vunpack.c.l.b16 %v119
    %v650 = vunpack.c.l.b16 %v120
    %v651 = vunpack.c.h.b16 %v120
    %v652 = vunpack.c.l.b16 %v121
    %v653 = vunpack.c.l.b16 %v122
    %v654 = vunpack.c.h.b16 %v122
    %v655 = vunpack.c.l.b16 %v123
    %v656 = vunpack.c.l.b16 %v124
    %v657 = vunpack.c.h.b16 %v124
    %v658 = vunpack.c.l.b16 %v125
    %v659 = vunpack.c.l.b16 %v126
    %v660 = vunpack.c.h.b16 %v126
    %v661 = vunpack.c.l.b16 %v127
    %v662 = vunpack.c.l.b16 %v128
    %v663 = vunpack.c.h.b16 %v128
    %v664 = vunpack.c.l.b16 %v129
    %v665 = vunpack.c.l.b16 %v130
    %v666 = vunpack.c.h.b16 %v130
    %v667 = vunpack.c.l.b16 %v131
    %v668 = vunpack.c.l.b16 %v132
    %v669 = vunpack.c.h.b16 %v132
    %v670 = vunpack.c.l.b16 %v133
    %v671 = vunpack.c.l.b16 %v134
    %v672 = vunpack.c.h.b16 %v134
    %v673 = vunpack.c.l.b16 %v135
    %v674 = vunpack.c.l.b16 %v136
    %v675 = vunpack.c.h.b16 %v136
    %v676 = vunpack.c.l.b16 %v137
    %v677 = vunpack.c.l.b16 %v138
    %v678 = vunpack.c.h.b16 %v138
    %v679 = vunpack.c.l.b16 %v139
    %v680 = vunpack.c.l.b16 %v140
    %v681 = vunpack.c.h.b16 %v140
    %v682 = vunpack.c.l.b16 %v141
    %v683 = vunpack.c.l.b16 %v142
    %v684 = vunpack.c.h.b16 %v142
    %v685 = vunpack.c.l.b16 %v143
    %v686 = vunpack.c.l.b16 %v144
    %v687 = vunpack.c.h.b16 %v144
    %v688 = vunpack.c.l.b16 %v145
    %v689 = vunpack.c.l.b16 %v146
    %v690 = vunpack.c.h.b16 %v146
    %v691 = vunpack.c.l.b16 %v147
    %v692 = vunpack.c.l.b16 %v148
    %v693 = vunpack.c.h.b16 %v148
    %v694 = vunpack.c.l.b16 %v149
    %v695 = vunpack.c.l.b16 %v150
    %v696 = vunpack.c.h.b16 %v150
    %v697 = vunpack.c.l.b16 %v151
    %v698 = vunpack.c.l.b16 %v152
    %v699 = vunpack.c.h.b16 %v152
    %v700 = vunpack.c.l.b16 %v153
    %v701 = vunpack.c.l.b16 %v154
    %v702 = vunpack.c.h.b16 %v154
    %v703 = vunpack.c.l.b16 %v155
    %v704 = vunpack.c.l.b16 %v156
    %v705 = vunpack.c.h.b16 %v156
    %v706 = vunpack.c.l.b16 %v157
    %v707 = vunpack.c.l.b16 %v158
    %v708 = vunpack.c.h.b16 %v158
    %v709 = vunpack.c.l.b16 %v159
    %v710 = vunpack.c.l.b16 %v160
    %v711 = vunpack.c.h.b16 %v160
    %v712 = vunpack.c.l.b16 %v161
    %v713 = vunpack.c.l.b16 %v162
    %v714 = vunpack.c.h.b16 %v162
    %v715 = vunpack.c.l.b16 %v163
    %v716 = vunpack.c.l.b16 %v164
    %v717 = vunpack.c.h.b16 %v164
    %v718 = vunpack.c.l.b16 %v165
    %v719 = vunpack.c.l.b16 %v166
    %v720 = vunpack.c.h.b16 %v166
    %v721 = vunpack.c.l.b16 %v167
    %v722 = vunpack.c.l.b16 %v168
    %v723 = vunpack.c.h.b16 %v168
    %v724 = vunpack.c.l.b16 %v169
    %v725 = vunpack.c.l.b16 %v170
    %v726 = vunpack.c.h.b16 %v170
    %v727 = vunpack.c.l.b16 %v171
    %v728 = vunpack.c.l.b16 %v172
    %v729 = vunpack.c.h.b16 %v172
    %v730 = vunpack.c.l.b16 %v173
    %v731 = vunpack.c.l.b16 %v174
    %v732 = vunpack.c.h.b16 %v174
    %v733 = vunpack.c.l.b16 %v175
    %v734 = vunpack.c.l.b16 %v176
    %v735 = vunpack.c.h.b16 %v176
    %v736 = vunpack.c.l.b16 %v177
    %v737 = vunpack.c.l.b16 %v178
    %v738 = vunpack.c.h.b16 %v178
    %v739 = vunpack.c.l.b16 %v179
    %v740 = vunpack.c.l.b16 %v180
    %v741 = vunpack.c.h.b16 %v180
    %v742 = vunpack.c.l.b16 %v181
    %v743 = vunpack.c.l.b16 %v182
    %v744 = vunpack.c.h.b16 %v182
    %v745 = vunpack.c.l.b16 %v183
    %v746 = vunpack.c.l.b16 %v184
    %v747 = vunpack.c.h.b16 %v184
    %v748 = vunpack.c.l.b16 %v185
    %v749 = vunpack.c.l.b16 %v186
    %v750 = vunpack.c.h.b16 %v186
    %v751 = vunpack.c.l.b16 %v187
    %v752 = vunpack.c.l.b16 %v188
    %v753 = vunpack.c.h.b16 %v188
    %v754 = vunpack.c.l.b16 %v189
    %v755 = vunpack.c.l.b16 %v190
    %v756 = vunpack.c.h.b16 %v190
    %v757 = vunpack.c.l.b16 %v191
    %v758 = vunpack.c.l.b16 %v192
    %v759 = vunpack.c.h.b16 %v192
    %v760 = vunpack.c.l.b16 %v193
    %v761 = vunpack.c.l.b16 %v194
    %v762 = vunpack.c.h.b16 %v194
    %v763 = vunpack.c.l.b16 %v195
    %v764 = vunpack.c.l.b16 %v196
    %v765 = vunpack.c.h.b16 %v196
    %v766 = vunpack.c.l.b16 %v197
    %v767 = vunpack.c.l.b16 %v198
    %v768 = vunpack.c.h.b16 %v198
    %v769 = vunpack.c.l.b16 %v199
    %v770 = vunpack.c.l.b16 %v200
    %v771 = vunpack.c.h.b16 %v200
    %v772 = vunpack.c.l.b16 %v201
    %v773 = vunpack.c.l.b16 %v202
    %v774 = vunpack.c.h.b16 %v202
    %v775 = vunpack.c.l.b16 %v203
    %v776 = vunpack.c.l.b16 %v204
    %v777 = vunpack.c.h.b16 %v204
    %v778 = vunpack.c.l.b16 %v205
    %v779 = vunpack.c.l.b16 %v206
    %v780 = vunpack.c.h.b16 %v206
    %v781 = vunpack.c.l.b16 %v207
    %v782 = vunpack.c.l.b16 %v208
    %v783 = vunpack.c.h.b16 %v208
    %v784 = vunpack.c.l.b16 %v209
    %v785 = vunpack.c.l.b16 %v210
    %v786 = vunpack.c.h.b16 %v210
    %v787 = vunpack.c.l.b16 %v211
    %v788 = vunpack.c.l.b16 %v212
    %v789 = vunpack.c.h.b16 %v212
    %v790 = vunpack.c.l.b16 %v213
    %v791 = vunpack.c.l.b16 %v214
    %v792 = vunpack.c.h.b16 %v214
    %v793 = vunpack.c.l.b16 %v215
    %v794 = vunpack.c.l.b16 %v216
    %v795 = vunpack.c.h.b16 %v216
    %v796 = vunpack.c.l.b16 %v217
    %v797 = vunpack.c.l.b16 %v218
    %v798 = vunpack.c.h.b16 %v218
    %v799 = vunpack.c.l.b16 %v219
    %v800 = vunpack.c.l.b16 %v220
    %v801 = vunpack.c.h.b16 %v220
    %v802 = vunpack.c.l.b16 %v221
    %v803 = vunpack.c.l.b16 %v222
    %v804 = vunpack.c.h.b16 %v222
    %v805 = vunpack.c.l.b16 %v223
    %v806 = vunpack.c.l.b16 %v224
    %v807 = vunpack.c.h.b16 %v224
    %v808 = vunpack.c.l.b16 %v225
    %v809 = vunpack.c.l.b16 %v226
    %v810 = vunpack.c.h.b16 %v226
    %v811 = vunpack.c.l.b16 %v227
    %v812 = vunpack.c.l.b16 %v228
    %v813 = vunpack.c.h.b16 %v228
    %v814 = vunpack.c.l.b16 %v229
    %v815 = vunpack.c.l.b16 %v230
    %v816 = vunpack.c.h.b16 %v230
    %v817 = vunpack.c.l.b16 %v231
    %v818 = vunpack.c.l.b16 %v232
    %v819 = vunpack.c.h.b16 %v232
    %v820 = vunpack.c.l.b16 %v233
    %v821 = vunpack.c.l.b16 %v234
    %v822 = vunpack.c.h.b16 %v234
    %v823 = vunpack.c.l.b16 %v235
    %v824 = vunpack.c.l.b16 %v236
    %v825 = vunpack.c.h.b16 %v236
    %v826 = vunpack.c.l.b16 %v237
    %v827 = vunpack.c.l.b16 %v238
    %v828 = vunpack.c.h.b16 %v238
    %v829 = vunpack.c.l.b16 %v239
    %v830 = vunpack.c.l.b16 %v240
    %v831 = vunpack.c.h.b16 %v240
    %v832 = vunpack.c.l.b16 %v241
    %v833 = vunpack.c.l.b16 %v242
    %v834 = vunpack.c.h.b16 %v242
    %v835 = vunpack.c.l.b16 %v243
    %v836 = vunpack.c.l.b16 %v244
    %v837 = vunpack.c.h.b16 %v244
    %v838 = vunpack.c.l.b16 %v245
    %v839 = vunpack.c.l.b16 %v246
    %v840 = vunpack.c.h.b16 %v246
    %v841 = vunpack.c.l.b16 %v247
    %v842 = vunpack.c.l.b16 %v248
    %v843 = vunpack.c.h.b16 %v248
    %v844 = vunpack.c.l.b16 %v249
    %v845 = vunpack.c.l.b16 %v250
    %v846 = vunpack.c.h.b16 %v250
    %v847 = vunpack.c.l.b16 %v251
    %v848 = vunpack.c.l.b16 %v252
    %v849 = vunpack.c.h.b16 %v252
    %v850 = vunpack.c.l.b16 %v253
    %v851 = vunpack.c.l.b16 %v254
    %v852 = vunpack.c.h.b16 %v254
    %v853 = vunpack.c.l.b16 %v255
    %v854 = vunpack.c.l.b16 %v256
    %v855 = vunpack.c.h.b16 %v256
    %v856 = vunpack.c.l.b16 %v257
    %v857 = vunpack.c.l.b16 %v258
    %v858 = vunpack.c.h.b16 %v258
    %v859 = vunpack.c.l.b16 %v259
    %v860 = vunpack.c.l.b16 %v260
    %v861 = vunpack.c.h.b16 %v260
    %v862 = vunpack.c.l.b16 %v261
    %v863 = vunpack.c.l.b16 %v262
    %v864 = vunpack.c.h.b16 %v262
    %v865 = vunpack.c.l.b16 %v263
    %v866 = vunpack.c.l.b16 %v264
    %v867 = vunpack.c.h.b16 %v264
    %v868 = vunpack.c.l.b16 %v265
    %v869 = vunpack.c.l.b16 %v266
    %v870 = vunpack.c.h.b16 %v266
    %v871 = vunpack.c.l.b16 %v267
    %v872 = vunpack.c.l.b16 %v268
    %v873 = vunpack.c.h.b16 %v268
    %v874 = vunpack.c.l.b16 %v269
    %v875 = vunpack.c.l.b16 %v270
    %v876 = vunpack.c.h.b16 %v270
    %v877 = vunpack.c.l.b16 %v271
    %v878 = vunpack.c.l.b16 %v272
    %v879 = vunpack.c.h.b16 %v272
    %v880 = vunpack.c.l.b16 %v273
    %v881 = vunpack.c.l.b16 %v274
    %v882 = vunpack.c.h.b16 %v274
    %v883 = vunpack.c.l.b16 %v275
    %v884 = vunpack.c.l.b16 %v276
    %v885 = vunpack.c.h.b16 %v276
    %v886 = vunpack.c.l.b16 %v277
    %v887 = vunpack.c.l.b16 %v278
    %v888 = vunpack.c.h.b16 %v278
    %v889 = vunpack.c.l.b16 %v279
    %v890 = vunpack.c.l.b16 %v280
    %v891 = vunpack.c.h.b16 %v280
    %v892 = vunpack.c.l.b16 %v281
    %v893 = vunpack.c.l.b16 %v282
    %v894 = vunpack.c.h.b16 %v282
    %v895 = vunpack.c.l.b16 %v283
    %v896 = vunpack.c.l.b16 %v284
    %v897 = vunpack.c.h.b16 %v284
    %v898 = vunpack.c.l.b16 %v285
    %v899 = vunpack.c.l.b16 %v286
    %v900 = vunpack.c.h.b16 %v286
    %v901 = vunpack.c.l.b16 %v287
    %v902 = vunpack.c.l.b16 %v288
    %v903 = vunpack.c.h.b16 %v288
    %v904 = vunpack.c.l.b16 %v289
    %v905 = vunpack.c.l.b16 %v290
    %v906 = vunpack.c.h.b16 %v290
    %v907 = vunpack.c.l.b16 %v291
    %v908 = vunpack.c.l.b16 %v292
    %v909 = vunpack.c.h.b16 %v292
    %v910 = vunpack.c.l.b16 %v293
    %v911 = vunpack.c.l.b16 %v294
    %v912 = vunpack.c.h.b16 %v294
    %v913 = vunpack.c.l.b16 %v295
    %v914 = vunpack.c.l.b16 %v296
    %v915 = vunpack.c.h.b16 %v296
    %v916 = vunpack.c.l.b16 %v297
    %v917 = vunpack.c.l.b16 %v298
    %v918 = vunpack.c.h.b16 %v298
    %v919 = vunpack.c.l.b16 %v299
    %v920 = vunpack.c.l.b16 %v300
    %v921 = vunpack.c.h.b16 %v300
    %v922 = vunpack.c.l.b16 %v301
    %v923 = vunpack.c.l.b16 %v302
    %v924 = vunpack.c.h.b16 %v302
    %v925 = vunpack.c.l.b16 %v303
    %v926 = vunpack.c.l.b16 %v304
    %v927 = vunpack.c.h.b16 %v304
    %v928 = vunpack.c.l.b16 %v305
    %v929 = vunpack.c.l.b16 %v306
    %v930 = vunpack.c.h.b16 %v306
    %v931 = vunpack.c.l.b16 %v307
    %v932 = vunpack.c.l.b16 %v308
    %v933 = vunpack.c.h.b16 %v308
    %v934 = vunpack.c.l.b16 %v309
    %v935 = vunpack.c.l.b16 %v310
    %v936 = vunpack.c.h.b16 %v310
    %v937 = vunpack.c.l.b16 %v311
    %v938 = vunpack.c.l.b16 %v312
    %v939 = vunpack.c.h.b16 %v312
    %v940 = vunpack.c.l.b16 %v313
    %v941 = vunpack.c.l.b16 %v314
    %v942 = vunpack.c.h.b16 %v314
    %v943 = vunpack.c.l.b16 %v315
    %v944 = vunpack.c.l.b16 %v316
    %v945 = vunpack.c.h.b16 %v316
    %v946 = vunpack.c.l.b16 %v317
    %v947 = vunpack.c.l.b16 %v318
    %v948 = vunpack.c.h.b16 %v318
    %v949 = vunpack.c.l.b16 %v319
    %v950 = vunpack.c.l.b16 %v320
    %v951 = vunpack.c.h.b16 %v320
    %v952 = vunpack.c.l.b16 %v321
    %v953 = vunpack.c.l.b16 %v322
    %v954 = vunpack.c.h.b16 %v322
    %v955 = vunpack.c.l.b16 %v323
    %v956 = vunpack.c.l.b16 %v324
    %v957 = vunpack.c.h.b16 %v324
    %v958 = vunpack.c.l.b16 %v325
    %v959 = vunpack.c.l.b16 %v326
    %v960 = vunpack.c.h.b16 %v326
    %v961 = vunpack.c.l.b16 %v327
    %v962 = vunpack.c.l.b16 %v328
    %v963 = vunpack.c.h.b16 %v328
    %v964 = vunpack.c.l.b16 %v329
    %v965 = vunpack.c.l.b16 %v330
    %v966 = vunpack.c.h.b16 %v330
    %v967 = vunpack.c.l.b16 %v331
    %v968 = vunpack.c.l.b16 %v332
    %v969 = vunpack.c.h.b16 %v332
    %v970 = vunpack.c.l.b16 %v333
    %v971 = vunpack.c.l.b16 %v334
    %v972 = vunpack.c.h.b16 %v334
    %v973 = vunpack.c.l.b16 %v335
    %v974 = vunpack.c.l.b16 %v336
    %v975 = vunpack.c.h.b16 %v336
    %v976 = vunpack.c.l.b16 %v337
    %v977 = vunpack.c.l.b16 %v338
    %v978 = vunpack.c.h.b16 %v338
    %v979 = vunpack.c.l.b16 %v339
    %v980 = vunpack.c.l.b16 %v340
    %v981 = vunpack.c.h.b16 %v340
    %v982 = vunpack.c.l.b16 %v341
    %v983 = vunpack.c.l.b16 %v342
    %v984 = vunpack.c.h.b16 %v342
    %v985 = vunpack.c.l.b16 %v343
    %v986 = vunpack.c.l.b16 %v344
    %v987 = vunpack.c.h.b16 %v344
    %v988 = vunpack.c.l.b16 %v345
    %v989 = vunpack.c.l.b16 %v346
    %v990 = vunpack.c.h.b16 %v346
    %v991 = vunpack.c.l.b16 %v347
    %v992 = vunpack.c.l.b16 %v348
    %v993 = vunpack.c.h.b16 %v348
    %v994 = vunpack.c.l.b16 %v349
    %v995 = vunpack.c.l.b16 %v350
    %v996 = vunpack.c.h.b16 %v350
    %v997 = vunpack.c.l.b16 %v351
    %v998 = vunpack.c.l.b16 %v352
    %v999 = vunpack.c.h.b16 %v352
    %v1000 = vunpack.c.l.b16 %v353
    %v1001 = vunpack.c.l.b16 %v354
    %v1002 = vunpack.c.h.b16 %v354
    %v1003 = vunpack.c.l.b16 %v355
    %v1004 = vunpack.c.l.b16 %v356
    %v1005 = vunpack.c.h.b16 %v356
    %v1006 = vunpack.c.l.b16 %v357
    %v1007 = vunpack.c.l.b16 %v358
    %v1008 = vunpack.c.h.b16 %v358
    %v1009 = vunpack.c.l.b16 %v359
    %v1010 = vunpack.c.l.b16 %v360
    %v1011 = vunpack.c.h.b16 %v360
    %v1012 = vunpack.c.l.b16 %v361
    %v1013 = vunpack.c.l.b16 %v362
    %v1014 = vunpack.c.h.b16 %v362
    %v1015 = vunpack.c.l.b16 %v363
    %v1016 = vunpack.c.l.b16 %v364
    %v1017 = vunpack.c.h.b16 %v364
    %v1018 = vunpack.c.l.b16 %v365
    %v1019 = vunpack.c.l.b16 %v366
    %v1020 = vunpack.c.h.b16 %v366
    %v1021 = vunpack.c.l.b16 %v367
    %v1022 = vunpack.c.l.b16 %v368
    %v1023 = vunpack.c.h.b16 %v368
    %v1024 = vunpack.c.l.b16 %v369
    %v1025 = vunpack.c.l.b16 %v370
    %v1026 = vunpack.c.h.b16 %v370
    %v1027 = vunpack.c.l.b16 %v371
    %v1028 = vunpack.c.l.b16 %v372
    %v1029 = vunpack.c.h.b16 %v372
    %v1030 = vunpack.c.l.b16 %v373
    %v1031 = vpack.c.b16 %v650, %v647
    %v1032 = vpack.c.b16 %v651, %v648
    %v1033 = vpack.c.b16 %v652, %v649
    %v1034 = vpack.c.b16 %v656, %v653
    %v1035 = vpack.c.b16 %v657, %v654
    %v1036 = vpack.c.b16 %v658, %v655
    %v1037 = vpack.c.b16 %v662, %v659
    %v1038 = vpack.c.b16 %v663, %v660
    %v1039 = vpack.c.b16 %v664, %v661
    %v1040 = vpack.c.b16 %v668, %v665
    %v1041 = vpack.c.b16 %v669, %v666
    %v1042 = vpack.c.b16 %v670, %v667
    %v1043 = vpack.c.b16 %v674, %v671
    %v1044 = vpack.c.b16 %v675, %v672
    %v1045 = vpack.c.b16 %v676, %v673
    %v1046 = vpack.c.b16 %v680, %v677
    %v1047 = vpack.c.b16 %v681, %v678
    %v1048 = vpack.c.b16 %v682, %v679
    %v1049 = vpack.c.b16 %v686, %v683
    %v1050 = vpack.c.b16 %v687, %v684
    %v1051 = vpack.c.b16 %v688, %v685
    %v1052 = vpack.c.b16 %v692, %v689
    %v1053 = vpack.c.b16 %v693, %v690
    %v1054 = vpack.c.b16 %v694, %v691
    %v1055 = vpack.c.b16 %v698, %v695
    %v1056 = vpack.c.b16 %v699, %v696
    %v1057 = vpack.c.b16 %v700, %v697
    %v1058 = vpack.c.b16 %v704, %v701
    %v1059 = vpack.c.b16 %v705, %v702
    %v1060 = vpack.c.b16 %v706, %v703
    %v1061 = vpack.c.b16 %v710, %v707
    %v1062 = vpack.c.b16 %v711, %v708
    %v1063 = vpack.c.b16 %v712, %v709
    %v1064 = vpack.c.b16 %v716, %v713
    %v1065 = vpack.c.b16 %v717, %v714
    %v1066 = vpack.c.b16 %v718, %v715
    %v1067 = vpack.c.b16 %v722, %v719
    %v1068 = vpack.c.b16 %v723, %v720
    %v1069 = vpack.c.b16 %v724, %v721
    %v1070 = vpack.c.b16 %v728, %v725
    %v1071 = vpack.c.b16 %v729, %v726
    %v1072 = vpack.c.b16 %v730, %v727
    %v1073 = vpack.c.b16 %v734, %v731
    %v1074 = vpack.c.b16 %v735, %v732
    %v1075 = vpack.c.b16 %v736, %v733
    %v1076 = vpack.c.b16 %v740, %v737
    %v1077 = vpack.c.b16 %v741, %v738
    %v1078 = vpack.c.b16 %v742, %v739
    %v1079 = vpack.c.b16 %v746, %v743
    %v1080 = vpack.c.b16 %v747, %v744
    %v1081 = vpack.c.b16 %v748, %v745
    %v1082 = vpack.c.b16 %v752, %v749
    %v1083 = vpack.c.b16 %v753, %v750
    %v1084 = vpack.c.b16 %v754, %v751
    %v1085 = vpack.c.b16 %v758, %v755
    %v1086 = vpack.c.b16 %v759, %v756
    %v1087 = vpack.c.b16 %v760, %v757
    %v1088 = vpack.c.b16 %v764, %v761
    %v1089 = vpack.c.b16 %v765, %v762
    %v1090 = vpack.c.b16 %v766, %v763
    %v1091 = vpack.c.b16 %v770, %v767
    %v1092 = vpack.c.b16 %v771, %v768
    %v1093 = vpack.c.b16 %v772, %v769
    %v1094 = vpack.c.b16 %v776, %v773
    %v1095 = vpack.c.b16 %v777, %v774
    %v1096 = vpack.c.b16 %v778, %v775
    %v1097 = vpack.c.b16 %v782, %v779
    %v1098 = vpack.c.b16 %v783, %v780
    %v1099 = vpack.c.b16 %v784, %v781
    %v1100 = vpack.c.b16 %v788, %v785
    %v1101 = vpack.c.b16 %v789, %v786
    %v1102 = vpack.c.b16 %v790, %v787
    %v1103 = vpack.c.b16 %v794, %v791
    %v1104 = vpack.c.b16 %v795, %v792
    %v1105 = vpack.c.b16 %v796, %v793
    %v1106 = vpack.c.b16 %v800, %v797
    %v1107 = vpack.c.b16 %v801, %v798
    %v1108 = vpack.c.b16 %v802, %v799
    %v1109 = vpack.c.b16 %v806, %v803
    %v1110 = vpack.c.b16 %v807, %v804
    %v1111 = vpack.c.b16 %v808, %v805
    %v1112 = vpack.c.b16 %v812, %v809
    %v1113 = vpack.c.b16 %v813, %v810
    %v1114 = vpack.c.b16 %v814, %v811
    %v1115 = vpack.c.b16 %v818, %v815
    %v1116 = vpack.c.b16 %v819, %v816
    %v1117 = vpack.c.b16 %v820, %v817
    %v1118 = vpack.c.b16 %v824, %v821
    %v1119 = vpack.c.b16 %v825, %v822
    %v1120 = vpack.c.b16 %v826, %v823
    %v1121 = vpack.c.b16 %v830, %v827
    %v1122 = vpack.c.b16 %v831, %v828
    %v1123 = vpack.c.b16 %v832, %v829
    %v1124 = vpack.c.b16 %v836, %v833
    %v1125 = vpack.c.b16 %v837, %v834
    %v1126 = vpack.c.b16 %v838, %v835
    %v1127 = vpack.c.b16 %v842, %v839
    %v1128 = vpack.c.b16 %v843, %v840
    %v1129 = vpack.c.b16 %v844, %v841
    %v1130 = vpack.c.b16 %v848, %v845
    %v1131 = vpack.c.b16 %v849, %v846
    %v1132 = vpack.c.b16 %v850, %v847
    %v1133 = vpack.c.b16 %v854, %v851
    %v1134 = vpack.c.b16 %v855, %v852
    %v1135 = vpack.c.b16 %v856, %v853
    %v1136 = vpack.c.b16 %v860, %v857
    %v1137 = vpack.c.b16 %v861, %v858
    %v1138 = vpack.c.b16 %v862, %v859
    %v1139 = vpack.c.b16 %v866, %v863
    %v1140 = vpack.c.b16 %v867, %v864
    %v1141 = vpack.c.b16 %v868, %v865
    %v1142 = vpack.c.b16 %v872, %v869
    %v1143 = vpack.c.b16 %v873, %v870
    %v1144 = vpack.c.b16 %v874, %v871
    %v1145 = vpack.c.b16 %v878, %v875
    %v1146 = vpack.c.b16 %v879, %v876
    %v1147 = vpack.c.b16 %v880, %v877
    %v1148 = vpack.c.b16 %v884, %v881
    %v1149 = vpack.c.b16 %v885, %v882
    %v1150 = vpack.c.b16 %v886, %v883
    %v1151 = vpack.c.b16 %v890, %v887
    %v1152 = vpack.c.b16 %v891, %v888
    %v1153 = vpack.c.b16 %v892, %v889
    %v1154 = vpack.c.b16 %v896, %v893
    %v1155 = vpack.c.b16 %v897, %v894
    %v1156 = vpack.c.b16 %v898, %v895
    %v1157 = vpack.c.b16 %v902, %v899
    %v1158 = vpack.c.b16 %v903, %v900
    %v1159 = vpack.c.b16 %v904, %v901
    %v1160 = vpack.c.b16 %v908, %v905
    %v1161 = vpack.c.b16 %v909, %v906
    %v1162 = vpack.c.b16 %v910, %v907
    %v1163 = vpack.c.b16 %v914, %v911
    %v1164 = vpack.c.b16 %v915, %v912
    %v1165 = vpack.c.b16 %v916, %v913
    %v1166 = vpack.c.b16 %v920, %v917
    %v1167 = vpack.c.b16 %v921, %v918
    %v1168 = vpack.c.b16 %v922, %v919
    %v1169 = vpack.c.b16 %v926, %v923
    %v1170 = vpack.c.b16 %v927, %v924
    %v1171 = vpack.c.b16 %v928, %v925
    %v1172 = vpack.c.b16 %v932, %v929
    %v1173 = vpack.c.b16 %v933, %v930
    %v1174 = vpack.c.b16 %v934, %v931
    %v1175 = vpack.c.b16 %v938, %v935
    %v1176 = vpack.c.b16 %v939, %v936
    %v1177 = vpack.c.b16 %v940, %v937
    %v1178 = vpack.c.b16 %v944, %v941
    %v1179 = vpack.c.b16 %v945, %v942
    %v1180 = vpack.c.b16 %v946, %v943
    %v1181 = vpack.c.b16 %v950, %v947
    %v1182 = vpack.c.b16 %v951, %v948
    %v1183 = vpack.c.b16 %v952, %v949
    %v1184 = vpack.c.b16 %v956, %v953
    %v1185 = vpack.c.b16 %v957, %v954
    %v1186 = vpack.c.b16 %v958, %v955
    %v1187 = vpack.c.b16 %v962, %v959
    %v1188 = vpack.c.b16 %v963, %v960
    %v1189 = vpack.c.b16 %v964, %v961
    %v1190 = vpack.c.b16 %v968, %v965
    %v1191 = vpack.c.b16 %v969, %v966
    %v1192 = vpack.c.b16 %v970, %v967
    %v1193 = vpack.c.b16 %v974, %v971
    %v1194 = vpack.c.b16 %v975, %v972
    %v1195 = vpack.c.b16 %v976, %v973
    %v1196 = vpack.c.b16 %v980, %v977
    %v1197 = vpack.c.b16 %v981, %v978
    %v1198 = vpack.c.b16 %v982, %v979
    %v1199 = vpack.c.b16 %v986, %v983
    %v1200 = vpack.c.b16 %v987, %v984
    %v1201 = vpack.c.b16 %v988, %v985
    %v1202 = vpack.c.b16 %v992, %v989
    %v1203 = vpack.c.b16 %v993, %v990
    %v1204 = vpack.c.b16 %v994, %v991
    %v1205 = vpack.c.b16 %v998, %v995
    %v1206 = vpack.c.b16 %v999, %v996
    %v1207 = vpack.c.b16 %v1000, %v997
    %v1208 = vpack.c.b16 %v1004, %v1001
    %v1209 = vpack.c.b16 %v1005, %v1002
    %v1210 = vpack.c.b16 %v1006, %v1003
    %v1211 = vpack.c.b16 %v1010, %v1007
    %v1212 = vpack.c.b16 %v1011, %v1008
    %v1213 = vpack.c.b16 %v1012, %v1009
    %v1214 = vpack.c.b16 %v1016, %v1013
    %v1215 = vpack.c.b16 %v1017, %v1014
    %v1216 = vpack.c.b16 %v1018, %v1015
    %v1217 = vpack.c.b16 %v1022, %v1019
    %v1218 = vpack.c.b16 %v1023, %v1020
    %v1219 = vpack.c.b16 %v1024, %v1021
    %v1220 = vpack.c.b16 %v1028, %v1025
    %v1221 = vpack.c.b16 %v1029, %v1026
    %v1222 = vpack.c.b16 %v1030, %v1027
    %1415 = vmatprep.subr.bf16.mxu0 %v1032
    %1416 = vmatpush1.bf16.msra.mxu0 %v1031
    %1417 = vmatprep.subr.bf16.mxu0 %v1035
    %1418 = vmatpush1.bf16.msra.mxu0 %v1034
    %1419 = vmatprep.subr.bf16.mxu0 %v1038
    %1420 = vmatpush1.bf16.msra.mxu0 %v1037
    %1421 = vmatprep.subr.bf16.mxu0 %v1041
    %1422 = vmatpush1.bf16.msra.mxu0 %v1040
    %1423 = vmatprep.subr.bf16.mxu0 %v1044
    %1424 = vmatpush1.bf16.msra.mxu0 %v1043
    %1425 = vmatprep.subr.bf16.mxu0 %v1047
    %1426 = vmatpush1.bf16.msra.mxu0 %v1046
    %1427 = vmatprep.subr.bf16.mxu0 %v1050
    %1428 = vmatpush1.bf16.msra.mxu0 %v1049
    %1429 = vmatprep.subr.bf16.mxu0 %v1053
    %1430 = vmatpush1.bf16.msra.mxu0 %v1052
    %1431 = vmatprep.subr.bf16.mxu0 %v1056
    %1432 = vmatpush1.bf16.msra.mxu0 %v1055
    %1433 = vmatprep.subr.bf16.mxu0 %v1059
    %1434 = vmatpush1.bf16.msra.mxu0 %v1058
    %1435 = vmatprep.subr.bf16.mxu0 %v1062
    %1436 = vmatpush1.bf16.msra.mxu0 %v1061
    %1437 = vmatprep.subr.bf16.mxu0 %v1065
    %1438 = vmatpush1.bf16.msra.mxu0 %v1064
    %1439 = vmatprep.subr.bf16.mxu0 %v1068
    %1440 = vmatpush1.bf16.msra.mxu0 %v1067
    %1441 = vmatprep.subr.bf16.mxu0 %v1071
    %1442 = vmatpush1.bf16.msra.mxu0 %v1070
    %1443 = vmatprep.subr.bf16.mxu0 %v1074
    %1444 = vmatpush1.bf16.msra.mxu0 %v1073
    %1445 = vmatprep.subr.bf16.mxu0 %v1077
    %1446 = vmatpush1.bf16.msra.mxu0 %v1076
    %1447 = vmatprep.mubr.bf16.mxu0 %v111
    %1448 = vmatmul.mubr.bf16.gmra.mrb[0].mxu0 %v110
    %v1449 = vpop.f32.mrb[0].mxu0
    %v1450 = vadd.f32 %v379, %v1449
    %v1451 = vpop.f32.mrb[0].mxu0
    %v1452 = vadd.f32 %v383, %v1451
    %v1453 = vpop.f32.mrb[0].mxu0
    %v1454 = vpop.f32.mrb[0].mxu0
    %1455 = vdwg.mxu0
    %1456 = vmatprep.subr.bf16.mxu0 %v1080
    %1457 = vmatpush1.bf16.msra.mxu0 %v1079
    %1458 = vmatprep.subr.bf16.mxu0 %v1083
    %1459 = vmatpush1.bf16.msra.mxu0 %v1082
    %1460 = vmatprep.subr.bf16.mxu0 %v1086
    %1461 = vmatpush1.bf16.msra.mxu0 %v1085
    %1462 = vmatprep.subr.bf16.mxu0 %v1089
    %1463 = vmatpush1.bf16.msra.mxu0 %v1088
    %1464 = vmatprep.subr.bf16.mxu0 %v1092
    %1465 = vmatpush1.bf16.msra.mxu0 %v1091
    %1466 = vmatprep.subr.bf16.mxu0 %v1095
    %1467 = vmatpush1.bf16.msra.mxu0 %v1094
    %1468 = vmatprep.subr.bf16.mxu0 %v1098
    %1469 = vmatpush1.bf16.msra.mxu0 %v1097
    %1470 = vmatprep.subr.bf16.mxu0 %v1101
    %1471 = vmatpush1.bf16.msra.mxu0 %v1100
    %1472 = vmatprep.subr.bf16.mxu0 %v1104
    %1473 = vmatpush1.bf16.msra.mxu0 %v1103
    %1474 = vmatprep.subr.bf16.mxu0 %v1107
    %1475 = vmatpush1.bf16.msra.mxu0 %v1106
    %1476 = vmatprep.subr.bf16.mxu0 %v1110
    %1477 = vmatpush1.bf16.msra.mxu0 %v1109
    %1478 = vmatprep.subr.bf16.mxu0 %v1113
    %1479 = vmatpush1.bf16.msra.mxu0 %v1112
    %1480 = vmatprep.subr.bf16.mxu0 %v1116
    %1481 = vmatpush1.bf16.msra.mxu0 %v1115
    %1482 = vmatprep.subr.bf16.mxu0 %v1119
    %1483 = vmatpush1.bf16.msra.mxu0 %v1118
    %1484 = vmatprep.subr.bf16.mxu0 %v1122
    %1485 = vmatpush1.bf16.msra.mxu0 %v1121
    %1486 = vmatprep.subr.bf16.mxu0 %v1125
    %1487 = vmatpush1.bf16.msra.mxu0 %v1124
    %1488 = vmatprep.mubr.bf16.mxu0 %v113
    %1489 = vmatmul.mubr.bf16.gmra.mrb[0].mxu0 %v112
    %v1490 = vpop.f32.mrb[0].mxu0
    %v1491 = vadd.f32 %v1450, %v1490
    %v1492 = vpop.f32.mrb[0].mxu0
    %v1493 = vadd.f32 %v1452, %v1492
    %v1494 = vpop.f32.mrb[0].mxu0
    %v1495 = vpop.f32.mrb[0].mxu0
    %1496 = vdwg.mxu0
    %1497 = vmatprep.subr.bf16.mxu0 %v1128
    %1498 = vmatpush1.bf16.msra.mxu0 %v1127
    %1499 = vmatprep.subr.bf16.mxu0 %v1131
    %1500 = vmatpush1.bf16.msra.mxu0 %v1130
    %1501 = vmatprep.subr.bf16.mxu0 %v1134
    %1502 = vmatpush1.bf16.msra.mxu0 %v1133
    %1503 = vmatprep.subr.bf16.mxu0 %v1137
    %1504 = vmatpush1.bf16.msra.mxu0 %v1136
    %1505 = vmatprep.subr.bf16.mxu0 %v1140
    %1506 = vmatpush1.bf16.msra.mxu0 %v1139
    %1507 = vmatprep.subr.bf16.mxu0 %v1143
    %1508 = vmatpush1.bf16.msra.mxu0 %v1142
    %1509 = vmatprep.subr.bf16.mxu0 %v1146
    %1510 = vmatpush1.bf16.msra.mxu0 %v1145
    %1511 = vmatprep.subr.bf16.mxu0 %v1149
    %1512 = vmatpush1.bf16.msra.mxu0 %v1148
    %1513 = vmatprep.subr.bf16.mxu0 %v1152
    %1514 = vmatpush1.bf16.msra.mxu0 %v1151
    %1515 = vmatprep.subr.bf16.mxu0 %v1155
    %1516 = vmatpush1.bf16.msra.mxu0 %v1154
    %1517 = vmatprep.subr.bf16.mxu0 %v1158
    %1518 = vmatpush1.bf16.msra.mxu0 %v1157
    %1519 = vmatprep.subr.bf16.mxu0 %v1161
    %1520 = vmatpush1.bf16.msra.mxu0 %v1160
    %1521 = vmatprep.subr.bf16.mxu0 %v1164
    %1522 = vmatpush1.bf16.msra.mxu0 %v1163
    %1523 = vmatprep.subr.bf16.mxu0 %v1167
    %1524 = vmatpush1.bf16.msra.mxu0 %v1166
    %1525 = vmatprep.subr.bf16.mxu0 %v1170
    %1526 = vmatpush1.bf16.msra.mxu0 %v1169
    %1527 = vmatprep.subr.bf16.mxu0 %v1173
    %1528 = vmatpush1.bf16.msra.mxu0 %v1172
    %1529 = vmatprep.mubr.bf16.mxu0 %v115
    %1530 = vmatmul.mubr.bf16.gmra.mrb[0].mxu0 %v114
    %v1531 = vpop.f32.mrb[0].mxu0
    %v1532 = vadd.f32 %v1491, %v1531
    %v1533 = vpop.f32.mrb[0].mxu0
    %v1534 = vadd.f32 %v1493, %v1533
    %v1535 = vpop.f32.mrb[0].mxu0
    %v1536 = vpop.f32.mrb[0].mxu0
    %1537 = vdwg.mxu0
    %1538 = vmatprep.subr.bf16.mxu0 %v1176
    %1539 = vmatpush1.bf16.msra.mxu0 %v1175
    %1540 = vmatprep.subr.bf16.mxu0 %v1179
    %1541 = vmatpush1.bf16.msra.mxu0 %v1178
    %1542 = vmatprep.subr.bf16.mxu0 %v1182
    %1543 = vmatpush1.bf16.msra.mxu0 %v1181
    %1544 = vmatprep.subr.bf16.mxu0 %v1185
    %1545 = vmatpush1.bf16.msra.mxu0 %v1184
    %1546 = vmatprep.subr.bf16.mxu0 %v1188
    %1547 = vmatpush1.bf16.msra.mxu0 %v1187
    %1548 = vmatprep.subr.bf16.mxu0 %v1191
    %1549 = vmatpush1.bf16.msra.mxu0 %v1190
    %1550 = vmatprep.subr.bf16.mxu0 %v1194
    %1551 = vmatpush1.bf16.msra.mxu0 %v1193
    %1552 = vmatprep.subr.bf16.mxu0 %v1197
    %1553 = vmatpush1.bf16.msra.mxu0 %v1196
    %1554 = vmatprep.subr.bf16.mxu0 %v1200
    %1555 = vmatpush1.bf16.msra.mxu0 %v1199
    %1556 = vmatprep.subr.bf16.mxu0 %v1203
    %1557 = vmatpush1.bf16.msra.mxu0 %v1202
    %1558 = vmatprep.subr.bf16.mxu0 %v1206
    %1559 = vmatpush1.bf16.msra.mxu0 %v1205
    %1560 = vmatprep.subr.bf16.mxu0 %v1209
    %1561 = vmatpush1.bf16.msra.mxu0 %v1208
    %1562 = vmatprep.subr.bf16.mxu0 %v1212
    %1563 = vmatpush1.bf16.msra.mxu0 %v1211
    %1564 = vmatprep.subr.bf16.mxu0 %v1215
    %1565 = vmatpush1.bf16.msra.mxu0 %v1214
    %1566 = vmatprep.subr.bf16.mxu0 %v1218
    %1567 = vmatpush1.bf16.msra.mxu0 %v1217
    %1568 = vmatprep.subr.bf16.mxu0 %v1221
    %1569 = vmatpush1.bf16.msra.mxu0 %v1220
    %1570 = vmatprep.mubr.bf16.mxu0 %v117
    %1571 = vmatmul.mubr.bf16.gmra.mrb[0].mxu0 %v116
    %v1572 = vpop.f32.mrb[0].mxu0
    %v1573 = vadd.f32 %v1532, %v1572
    %v1574 = vpop.f32.mrb[0].mxu0
    %v1575 = vadd.f32 %v1534, %v1574
    %v1576 = vpop.f32.mrb[0].mxu0
    %v1577 = vpop.f32.mrb[0].mxu0
    %1578 = vdwg.mxu0
    %1579 = vmatprep.subr.bf16.mxu0 0
    %1580 = vmatpush1.bf16.msra.mxu0 %v1033
    %1581 = vmatprep.subr.bf16.mxu0 0
    %1582 = vmatpush1.bf16.msra.mxu0 %v1036
    %1583 = vmatprep.subr.bf16.mxu0 0
    %1584 = vmatpush1.bf16.msra.mxu0 %v1039
    %1585 = vmatprep.subr.bf16.mxu0 0
    %1586 = vmatpush1.bf16.msra.mxu0 %v1042
    %1587 = vmatprep.subr.bf16.mxu0 0
    %1588 = vmatpush1.bf16.msra.mxu0 %v1045
    %1589 = vmatprep.subr.bf16.mxu0 0
    %1590 = vmatpush1.bf16.msra.mxu0 %v1048
    %1591 = vmatprep.subr.bf16.mxu0 0
    %1592 = vmatpush1.bf16.msra.mxu0 %v1051
    %1593 = vmatprep.subr.bf16.mxu0 0
    %1594 = vmatpush1.bf16.msra.mxu0 %v1054
    %1595 = vmatprep.subr.bf16.mxu0 0
    %1596 = vmatpush1.bf16.msra.mxu0 %v1057
    %1597 = vmatprep.subr.bf16.mxu0 0
    %1598 = vmatpush1.bf16.msra.mxu0 %v1060
    %1599 = vmatprep.subr.bf16.mxu0 0
    %1600 = vmatpush1.bf16.msra.mxu0 %v1063
    %1601 = vmatprep.subr.bf16.mxu0 0
    %1602 = vmatpush1.bf16.msra.mxu0 %v1066
    %1603 = vmatprep.subr.bf16.mxu0 0
    %1604 = vmatpush1.bf16.msra.mxu0 %v1069
    %1605 = vmatprep.subr.bf16.mxu0 0
    %1606 = vmatpush1.bf16.msra.mxu0 %v1072
    %1607 = vmatprep.subr.bf16.mxu0 0
    %1608 = vmatpush1.bf16.msra.mxu0 %v1075
    %1609 = vmatprep.subr.bf16.mxu0 0
    %1610 = vmatpush1.bf16.msra.mxu0 %v1078
    %1611 = vmatprep.mubr.bf16.mxu0 %v111
    %1612 = vmatmul.mubr.bf16.gmra.mrb[0].mxu0 %v110
    %v1613 = vpop.f32.mrb[0].mxu0
    %v1614 = vadd.f32 %v387, %v1613
    %v1615 = vpop.f32.mrb[0].mxu0
    %v1616 = vpop.f32.mrb[0].mxu0
    %v1617 = vpop.f32.mrb[0].mxu0
    %1618 = vdwg.mxu0
    %1619 = vmatprep.subr.bf16.mxu0 0
    %1620 = vmatpush1.bf16.msra.mxu0 %v1081
    %1621 = vmatprep.subr.bf16.mxu0 0
    %1622 = vmatpush1.bf16.msra.mxu0 %v1084
    %1623 = vmatprep.subr.bf16.mxu0 0
    %1624 = vmatpush1.bf16.msra.mxu0 %v1087
    %1625 = vmatprep.subr.bf16.mxu0 0
    %1626 = vmatpush1.bf16.msra.mxu0 %v1090
    %1627 = vmatprep.subr.bf16.mxu0 0
    %1628 = vmatpush1.bf16.msra.mxu0 %v1093
    %1629 = vmatprep.subr.bf16.mxu0 0
    %1630 = vmatpush1.bf16.msra.mxu0 %v1096
    %1631 = vmatprep.subr.bf16.mxu0 0
    %1632 = vmatpush1.bf16.msra.mxu0 %v1099
    %1633 = vmatprep.subr.bf16.mxu0 0
    %1634 = vmatpush1.bf16.msra.mxu0 %v1102
    %1635 = vmatprep.subr.bf16.mxu0 0
    %1636 = vmatpush1.bf16.msra.mxu0 %v1105
    %1637 = vmatprep.subr.bf16.mxu0 0
    %1638 = vmatpush1.bf16.msra.mxu0 %v1108
    %1639 = vmatprep.subr.bf16.mxu0 0
    %1640 = vmatpush1.bf16.msra.mxu0 %v1111
    %1641 = vmatprep.subr.bf16.mxu0 0
    %1642 = vmatpush1.bf16.msra.mxu0 %v1114
    %1643 = vmatprep.subr.bf16.mxu0 0
    %1644 = vmatpush1.bf16.msra.mxu0 %v1117
    %1645 = vmatprep.subr.bf16.mxu0 0
    %1646 = vmatpush1.bf16.msra.mxu0 %v1120
    %1647 = vmatprep.subr.bf16.mxu0 0
    %1648 = vmatpush1.bf16.msra.mxu0 %v1123
    %1649 = vmatprep.subr.bf16.mxu0 0
    %1650 = vmatpush1.bf16.msra.mxu0 %v1126
    %1651 = vmatprep.mubr.bf16.mxu0 %v113
    %1652 = vmatmul.mubr.bf16.gmra.mrb[0].mxu0 %v112
    %v1653 = vpop.f32.mrb[0].mxu0
    %v1654 = vadd.f32 %v1614, %v1653
    %v1655 = vpop.f32.mrb[0].mxu0
    %v1656 = vpop.f32.mrb[0].mxu0
    %v1657 = vpop.f32.mrb[0].mxu0
    %1658 = vdwg.mxu0
    %1659 = vmatprep.subr.bf16.mxu0 0
    %1660 = vmatpush1.bf16.msra.mxu0 %v1129
    %1661 = vmatprep.subr.bf16.mxu0 0
    %1662 = vmatpush1.bf16.msra.mxu0 %v1132
    %1663 = vmatprep.subr.bf16.mxu0 0
    %1664 = vmatpush1.bf16.msra.mxu0 %v1135
    %1665 = vmatprep.subr.bf16.mxu0 0
    %1666 = vmatpush1.bf16.msra.mxu0 %v1138
    %1667 = vmatprep.subr.bf16.mxu0 0
    %1668 = vmatpush1.bf16.msra.mxu0 %v1141
    %1669 = vmatprep.subr.bf16.mxu0 0
    %1670 = vmatpush1.bf16.msra.mxu0 %v1144
    %1671 = vmatprep.subr.bf16.mxu0 0
    %1672 = vmatpush1.bf16.msra.mxu0 %v1147
    %1673 = vmatprep.subr.bf16.mxu0 0
    %1674 = vmatpush1.bf16.msra.mxu0 %v1150
    %1675 = vmatprep.subr.bf16.mxu0 0
    %1676 = vmatpush1.bf16.msra.mxu0 %v1153
    %1677 = vmatprep.subr.bf16.mxu0 0
    %1678 = vmatpush1.bf16.msra.mxu0 %v1156
    %1679 = vmatprep.subr.bf16.mxu0 0
    %1680 = vmatpush1.bf16.msra.mxu0 %v1159
    %1681 = vmatprep.subr.bf16.mxu0 0
    %1682 = vmatpush1.bf16.msra.mxu0 %v1162
    %1683 = vmatprep.subr.bf16.mxu0 0
    %1684 = vmatpush1.bf16.msra.mxu0 %v1165
    %1685 = vmatprep.subr.bf16.mxu0 0
    %1686 = vmatpush1.bf16.msra.mxu0 %v1168
    %1687 = vmatprep.subr.bf16.mxu0 0
    %1688 = vmatpush1.bf16.msra.mxu0 %v1171
    %1689 = vmatprep.subr.bf16.mxu0 0
    %1690 = vmatpush1.bf16.msra.mxu0 %v1174
    %1691 = vmatprep.mubr.bf16.mxu0 %v115
    %1692 = vmatmul.mubr.bf16.gmra.mrb[0].mxu0 %v114
    %v1693 = vpop.f32.mrb[0].mxu0
    %v1694 = vadd.f32 %v1654, %v1693
    %v1695 = vpop.f32.mrb[0].mxu0
    %v1696 = vpop.f32.mrb[0].mxu0
    %v1697 = vpop.f32.mrb[0].mxu0
    %1698 = vdwg.mxu0
    %1699 = vmatprep.subr.bf16.mxu0 0
    %1700 = vmatpush1.bf16.msra.mxu0 %v1177
    %1701 = vmatprep.subr.bf16.mxu0 0
    %1702 = vmatpush1.bf16.msra.mxu0 %v1180
    %1703 = vmatprep.subr.bf16.mxu0 0
    %1704 = vmatpush1.bf16.msra.mxu0 %v1183
    %1705 = vmatprep.subr.bf16.mxu0 0
    %1706 = vmatpush1.bf16.msra.mxu0 %v1186
    %1707 = vmatprep.subr.bf16.mxu0 0
    %1708 = vmatpush1.bf16.msra.mxu0 %v1189
    %1709 = vmatprep.subr.bf16.mxu0 0
    %1710 = vmatpush1.bf16.msra.mxu0 %v1192
    %1711 = vmatprep.subr.bf16.mxu0 0
    %1712 = vmatpush1.bf16.msra.mxu0 %v1195
    %1713 = vmatprep.subr.bf16.mxu0 0
    %1714 = vmatpush1.bf16.msra.mxu0 %v1198
    %1715 = vmatprep.subr.bf16.mxu0 0
    %1716 = vmatpush1.bf16.msra.mxu0 %v1201
    %1717 = vmatprep.subr.bf16.mxu0 0
    %1718 = vmatpush1.bf16.msra.mxu0 %v1204
    %1719 = vmatprep.subr.bf16.mxu0 0
    %1720 = vmatpush1.bf16.msra.mxu0 %v1207
    %1721 = vmatprep.subr.bf16.mxu0 0
    %1722 = vmatpush1.bf16.msra.mxu0 %v1210
    %1723 = vmatprep.subr.bf16.mxu0 0
    %1724 = vmatpush1.bf16.msra.mxu0 %v1213
    %1725 = vmatprep.subr.bf16.mxu0 0
    %1726 = vmatpush1.bf16.msra.mxu0 %v1216
    %1727 = vmatprep.subr.bf16.mxu0 0
    %1728 = vmatpush1.bf16.msra.mxu0 %v1219
    %1729 = vmatprep.subr.bf16.mxu0 0
    %1730 = vmatpush1.bf16.msra.mxu0 %v1222
    %1731 = vmatprep.mubr.bf16.mxu0 %v117
    %1732 = vmatmul.mubr.bf16.gmra.mrb[0].mxu0 %v116
    %v1733 = vpop.f32.mrb[0].mxu0
    %v1734 = vadd.f32 %v1694, %v1733
    %v1735 = vpop.f32.mrb[0].mxu0
    %v1736 = vpop.f32.mrb[0].mxu0
    %v1737 = vpop.f32.mrb[0].mxu0
    %1738 = vdwg.mxu0
    %v1739 = vtanh.pop %v1573
    %v1740 = vtanh.pop %v1575
    %v1741 = vtanh.pop %v1734
    %v1742 = vpack.c.bf16 %v1739, %v1739
    %v1743 = vpack.c.bf16 %v1740, %v1740
    %v1744 = vpack.c.bf16 %v1741, %v1741
    %v1745 = vld [vmem:[#allocation7] sm:$0xf]
    %v1746 = vld [vmem:[#allocation7 + $0x4] sm:$0xf]
    %v1747 = vld [vmem:[#allocation7 + $0x8] sm:$0xf]
    %v1748 = vld [vmem:[#allocation7 + $0xc] sm:$0xf]
    %v1749 = vld [vmem:[#allocation7 + $0x10] sm:$0xf]
    %v1750 = vld [vmem:[#allocation7 + $0x14] sm:$0xf]
    %v1751 = vld [vmem:[#allocation7 + $0x18] sm:$0xf]
    %v1752 = vld [vmem:[#allocation7 + $0x1c] sm:$0xf]
    %v1753 = vld [vmem:[#allocation7 + $0x20] sm:$0xf]
    %v1754 = vld [vmem:[#allocation7 + $0x24] sm:$0xf]
    %v1755 = vld [vmem:[#allocation7 + $0x28] sm:$0xf]
    %v1756 = vld [vmem:[#allocation7 + $0x2c] sm:$0xf]
    %v1757 = vld [vmem:[#allocation7 + $0x30] sm:$0xf]
    %v1758 = vld [vmem:[#allocation7 + $0x34] sm:$0xf]
    %v1759 = vld [vmem:[#allocation7 + $0x38] sm:$0xf]
    %v1760 = vld [vmem:[#allocation7 + $0x3c] sm:$0xf]
    %v1761 = vld [vmem:[#allocation7 + $0x40] sm:$0xf]
    %v1762 = vld [vmem:[#allocation7 + $0x44] sm:$0xf]
    %v1763 = vld [vmem:[#allocation7 + $0x48] sm:$0xf]
    %v1764 = vld [vmem:[#allocation7 + $0x4c] sm:$0xf]
    %v1765 = vld [vmem:[#allocation7 + $0x50] sm:$0xf]
    %v1766 = vld [vmem:[#allocation7 + $0x54] sm:$0xf]
    %v1767 = vld [vmem:[#allocation7 + $0x58] sm:$0xf]
    %v1768 = vld [vmem:[#allocation7 + $0x5c] sm:$0xf]
    %v1769 = vld [vmem:[#allocation7 + $0x60] sm:$0xf]
    %v1770 = vld [vmem:[#allocation7 + $0x64] sm:$0xf]
    %v1771 = vld [vmem:[#allocation7 + $0x68] sm:$0xf]
    %v1772 = vld [vmem:[#allocation7 + $0x6c] sm:$0xf]
    %v1773 = vld [vmem:[#allocation7 + $0x70] sm:$0xf]
    %v1774 = vld [vmem:[#allocation7 + $0x74] sm:$0xf]
    %v1775 = vld [vmem:[#allocation7 + $0x78] sm:$0xf]
    %v1776 = vld [vmem:[#allocation7 + $0x7c] sm:$0xf]
    %v1777 = vld [vmem:[#allocation7 + $0x80] sm:$0xf]
    %v1778 = vld [vmem:[#allocation7 + $0x84] sm:$0xf]
    %v1779 = vld [vmem:[#allocation7 + $0x88] sm:$0xf]
    %v1780 = vld [vmem:[#allocation7 + $0x8c] sm:$0xf]
    %v1781 = vld [vmem:[#allocation7 + $0x90] sm:$0xf]
    %v1782 = vld [vmem:[#allocation7 + $0x94] sm:$0xf]
    %v1783 = vld [vmem:[#allocation7 + $0x98] sm:$0xf]
    %v1784 = vld [vmem:[#allocation7 + $0x9c] sm:$0xf]
    %v1785 = vld [vmem:[#allocation7 + $0xa0] sm:$0xf]
    %v1786 = vld [vmem:[#allocation7 + $0xa4] sm:$0xf]
    %v1787 = vld [vmem:[#allocation7 + $0xa8] sm:$0xf]
    %v1788 = vld [vmem:[#allocation7 + $0xac] sm:$0xf]
    %v1789 = vld [vmem:[#allocation7 + $0xb0] sm:$0xf]
    %v1790 = vld [vmem:[#allocation7 + $0xb4] sm:$0xf]
    %v1791 = vld [vmem:[#allocation7 + $0xb8] sm:$0xf]
    %v1792 = vld [vmem:[#allocation7 + $0xbc] sm:$0xf]
    %v1793 = vld [vmem:[%s4] sm:$0x1]
    %v1795 = vlaneseq
    %v1796 = vshrl.u32 %v1795, 7
    %v1797 = vsub.s32 0, %v1796
    %v1798 = vrot.slane %v1793, %v1797
    %v1848 = vunpack.c.l.b16 %v1745
    %v1849 = vunpack.c.l.b16 %v1746
    %v1850 = vunpack.c.l.b16 %v1747
    %v1851 = vunpack.c.l.b16 %v1748
    %v1852 = vunpack.c.l.b16 %v1749
    %v1853 = vunpack.c.l.b16 %v1750
    %v1854 = vunpack.c.l.b16 %v1751
    %v1855 = vunpack.c.l.b16 %v1752
    %v1856 = vunpack.c.l.b16 %v1753
    %v1857 = vunpack.c.l.b16 %v1754
    %v1858 = vunpack.c.l.b16 %v1755
    %v1859 = vunpack.c.l.b16 %v1756
    %v1860 = vunpack.c.l.b16 %v1757
    %v1861 = vunpack.c.l.b16 %v1758
    %v1862 = vunpack.c.l.b16 %v1759
    %v1863 = vunpack.c.l.b16 %v1760
    %v1864 = vunpack.c.l.b16 %v1761
    %v1865 = vunpack.c.l.b16 %v1762
    %v1866 = vunpack.c.l.b16 %v1763
    %v1867 = vunpack.c.l.b16 %v1764
    %v1868 = vunpack.c.l.b16 %v1765
    %v1869 = vunpack.c.l.b16 %v1766
    %v1870 = vunpack.c.l.b16 %v1767
    %v1871 = vunpack.c.l.b16 %v1768
    %v1872 = vunpack.c.l.b16 %v1769
    %v1873 = vunpack.c.l.b16 %v1770
    %v1874 = vunpack.c.l.b16 %v1771
    %v1875 = vunpack.c.l.b16 %v1772
    %v1876 = vunpack.c.l.b16 %v1773
    %v1877 = vunpack.c.l.b16 %v1774
    %v1878 = vunpack.c.l.b16 %v1775
    %v1879 = vunpack.c.l.b16 %v1776
    %v1880 = vunpack.c.l.b16 %v1777
    %v1881 = vunpack.c.l.b16 %v1778
    %v1882 = vunpack.c.l.b16 %v1779
    %v1883 = vunpack.c.l.b16 %v1780
    %v1884 = vunpack.c.l.b16 %v1781
    %v1885 = vunpack.c.l.b16 %v1782
    %v1886 = vunpack.c.l.b16 %v1783
    %v1887 = vunpack.c.l.b16 %v1784
    %v1888 = vunpack.c.l.b16 %v1785
    %v1889 = vunpack.c.l.b16 %v1786
    %v1890 = vunpack.c.l.b16 %v1787
    %v1891 = vunpack.c.l.b16 %v1788
    %v1892 = vunpack.c.l.b16 %v1789
    %v1893 = vunpack.c.l.b16 %v1790
    %v1894 = vunpack.c.l.b16 %v1791
    %v1895 = vunpack.c.l.b16 %v1792
    %v1896 = vpack.c.b16 %v1849, %v1848
    %v1897 = vpack.c.b16 %v1851, %v1850
    %v1898 = vpack.c.b16 %v1853, %v1852
    %v1899 = vpack.c.b16 %v1855, %v1854
    %v1900 = vpack.c.b16 %v1857, %v1856
    %v1901 = vpack.c.b16 %v1859, %v1858
    %v1902 = vpack.c.b16 %v1861, %v1860
    %v1903 = vpack.c.b16 %v1863, %v1862
    %v1904 = vpack.c.b16 %v1865, %v1864
    %v1905 = vpack.c.b16 %v1867, %v1866
    %v1906 = vpack.c.b16 %v1869, %v1868
    %v1907 = vpack.c.b16 %v1871, %v1870
    %v1908 = vpack.c.b16 %v1873, %v1872
    %v1909 = vpack.c.b16 %v1875, %v1874
    %v1910 = vpack.c.b16 %v1877, %v1876
    %v1911 = vpack.c.b16 %v1879, %v1878
    %v1912 = vpack.c.b16 %v1881, %v1880
    %v1913 = vpack.c.b16 %v1883, %v1882
    %v1914 = vpack.c.b16 %v1885, %v1884
    %v1915 = vpack.c.b16 %v1887, %v1886
    %v1916 = vpack.c.b16 %v1889, %v1888
    %v1917 = vpack.c.b16 %v1891, %v1890
    %v1918 = vpack.c.b16 %v1893, %v1892
    %v1919 = vpack.c.b16 %v1895, %v1894
    %1944 = vmatprep.subr.bf16.mxu0 0
    %1945 = vmatpush1.bf16.msra.mxu0 %v1896
    %1946 = vmatprep.subr.bf16.mxu0 0
    %1947 = vmatpush1.bf16.msra.mxu0 %v1897
    %1948 = vmatprep.subr.bf16.mxu0 0
    %1949 = vmatpush1.bf16.msra.mxu0 %v1898
    %1950 = vmatprep.subr.bf16.mxu0 0
    %1951 = vmatpush1.bf16.msra.mxu0 %v1899
    %1952 = vmatprep.subr.bf16.mxu0 0
    %1953 = vmatpush1.bf16.msra.mxu0 %v1900
    %1954 = vmatprep.subr.bf16.mxu0 0
    %1955 = vmatpush1.bf16.msra.mxu0 %v1901
    %1956 = vmatprep.subr.bf16.mxu0 0
    %1957 = vmatpush1.bf16.msra.mxu0 %v1902
    %1958 = vmatprep.subr.bf16.mxu0 0
    %1959 = vmatpush1.bf16.msra.mxu0 %v1903
    %1960 = vmatprep.subr.bf16.mxu0 0
    %1961 = vmatpush1.bf16.msra.mxu0 %v1904
    %1962 = vmatprep.subr.bf16.mxu0 0
    %1963 = vmatpush1.bf16.msra.mxu0 %v1905
    %1964 = vmatprep.subr.bf16.mxu0 0
    %1965 = vmatpush1.bf16.msra.mxu0 %v1906
    %1966 = vmatprep.subr.bf16.mxu0 0
    %1967 = vmatpush1.bf16.msra.mxu0 %v1907
    %1968 = vmatprep.subr.bf16.mxu0 0
    %1969 = vmatpush1.bf16.msra.mxu0 %v1908
    %1970 = vmatprep.subr.bf16.mxu0 0
    %1971 = vmatpush1.bf16.msra.mxu0 %v1909
    %1972 = vmatprep.subr.bf16.mxu0 0
    %1973 = vmatpush1.bf16.msra.mxu0 %v1910
    %1974 = vmatprep.subr.bf16.mxu0 0
    %1975 = vmatpush1.bf16.msra.mxu0 %v1911
    %1976 = vmatprep.mubr.bf16.mxu0 %v1743
    %1977 = vmatmul.mubr.bf16.gmra.mrb[0].mxu0 %v1742
    %v1978 = vpop.f32.mrb[0].mxu0
    %v1979 = vadd.f32 %v1798, %v1978
    %v1980 = vpop.f32.mrb[0].mxu0
    %v1981 = vpop.f32.mrb[0].mxu0
    %v1982 = vpop.f32.mrb[0].mxu0
    %1983 = vdwg.mxu0
    %1984 = vmatprep.subr.bf16.mxu0 0
    %1985 = vmatpush1.bf16.msra.mxu0 %v1912
    %1986 = vmatprep.subr.bf16.mxu0 0
    %1987 = vmatpush1.bf16.msra.mxu0 %v1913
    %1988 = vmatprep.subr.bf16.mxu0 0
    %1989 = vmatpush1.bf16.msra.mxu0 %v1914
    %1990 = vmatprep.subr.bf16.mxu0 0
    %1991 = vmatpush1.bf16.msra.mxu0 %v1915
    %1992 = vmatprep.subr.bf16.mxu0 0
    %1993 = vmatpush1.bf16.msra.mxu0 %v1916
    %1994 = vmatprep.subr.bf16.mxu0 0
    %1995 = vmatpush1.bf16.msra.mxu0 %v1917
    %1996 = vmatprep.subr.bf16.mxu0 0
    %1997 = vmatpush1.bf16.msra.mxu0 %v1918
    %1998 = vmatprep.subr.bf16.mxu0 0
    %1999 = vmatpush1.bf16.msra.mxu0 %v1919
    %2000 = vmatprep.subr.bf16.mxu0 0
    %2001 = vmatpush1.bf16.msra.mxu0 0
    %2002 = vmatprep.subr.bf16.mxu0 0
    %2003 = vmatpush1.bf16.msra.mxu0 0
    %2004 = vmatprep.subr.bf16.mxu0 0
    %2005 = vmatpush1.bf16.msra.mxu0 0
    %2006 = vmatprep.subr.bf16.mxu0 0
    %2007 = vmatpush1.bf16.msra.mxu0 0
    %2008 = vmatprep.subr.bf16.mxu0 0
    %2009 = vmatpush1.bf16.msra.mxu0 0
    %2010 = vmatprep.subr.bf16.mxu0 0
    %2011 = vmatpush1.bf16.msra.mxu0 0
    %2012 = vmatprep.subr.bf16.mxu0 0
    %2013 = vmatpush1.bf16.msra.mxu0 0
    %2014 = vmatprep.subr.bf16.mxu0 0
    %2015 = vmatpush1.bf16.msra.mxu0 0
    %2016 = vmatprep.mubr.bf16.mxu0 0
    %2017 = vmatmul.mubr.bf16.gmra.mrb[0].mxu0 %v1744
    %v2018 = vpop.f32.mrb[0].mxu0
    %v2019 = vadd.f32 %v1979, %v2018
    %v2020 = vpop.f32.mrb[0].mxu0
    %v2021 = vpop.f32.mrb[0].mxu0
    %v2022 = vpop.f32.mrb[0].mxu0
    %2023 = vdwg.mxu0
    %v2024 = vpack.c.bf16 %v2019, %v2019
    %2025 = vst [vmem:[%s9] sm:$0xf] %v2024
    %v2026 = vld [vmem:[#allocation8] sm:$0xff]
    %v2027 = vld [vmem:[#allocation8 + $0x8] sm:$0xf]
    %v2028 = vld [vmem:[#allocation8 + $0xc] sm:$0xff]
    %v2029 = vld [vmem:[#allocation8 + $0x14] sm:$0xf]
    %v2030 = vld [vmem:[#allocation8 + $0x18] sm:$0xff]
    %v2031 = vld [vmem:[#allocation8 + $0x20] sm:$0xf]
    %v2032 = vld [vmem:[#allocation8 + $0x24] sm:$0xff]
    %v2033 = vld [vmem:[#allocation8 + $0x2c] sm:$0xf]
    %v2034 = vld [vmem:[#allocation8 + $0x30] sm:$0xff]
    %v2035 = vld [vmem:[#allocation8 + $0x38] sm:$0xf]
    %v2036 = vld [vmem:[#allocation8 + $0x3c] sm:$0xff]
    %v2037 = vld [vmem:[#allocation8 + $0x44] sm:$0xf]
    %v2038 = vld [vmem:[#allocation8 + $0x48] sm:$0xff]
    %v2039 = vld [vmem:[#allocation8 + $0x50] sm:$0xf]
    %v2040 = vld [vmem:[#allocation8 + $0x54] sm:$0xff]
    %v2041 = vld [vmem:[#allocation8 + $0x5c] sm:$0xf]
    %v2042 = vld [vmem:[#allocation8 + $0x60] sm:$0xff]
    %v2043 = vld [vmem:[#allocation8 + $0x68] sm:$0xf]
    %v2044 = vld [vmem:[#allocation8 + $0x6c] sm:$0xff]
    %v2045 = vld [vmem:[#allocation8 + $0x74] sm:$0xf]
    %v2046 = vld [vmem:[#allocation8 + $0x78] sm:$0xff]
    %v2047 = vld [vmem:[#allocation8 + $0x80] sm:$0xf]
    %v2048 = vld [vmem:[#allocation8 + $0x84] sm:$0xff]
    %v2049 = vld [vmem:[#allocation8 + $0x8c] sm:$0xf]
    %v2050 = vld [vmem:[#allocation8 + $0x90] sm:$0xff]
    %v2051 = vld [vmem:[#allocation8 + $0x98] sm:$0xf]
    %v2052 = vld [vmem:[#allocation8 + $0x9c] sm:$0xff]
    %v2053 = vld [vmem:[#allocation8 + $0xa4] sm:$0xf]
    %v2054 = vld [vmem:[#allocation8 + $0xa8] sm:$0xff]
    %v2055 = vld [vmem:[#allocation8 + $0xb0] sm:$0xf]
    %v2056 = vld [vmem:[#allocation8 + $0xb4] sm:$0xff]
    %v2057 = vld [vmem:[#allocation8 + $0xbc] sm:$0xf]
    %v2058 = vld [vmem:[%s6] sm:$0x7]
    %v2060 = vlaneseq
    %v2061 = vshrl.u32 %v2060, 7
    %v2062 = vsub.s32 0, %v2061
    %v2063 = vrot.slane %v2058, %v2062
    %v2064 = vlaneseq
    %v2065 = vshrl.u32 %v2064, 7
    %v2066 = vsub.s32 1, %v2065
    %v2067 = vrot.slane %v2058, %v2066
    %v2068 = vlaneseq
    %v2069 = vshrl.u32 %v2068, 7
    %v2070 = vsub.s32 2, %v2069
    %v2071 = vrot.slane %v2058, %v2070
    %v2107 = vunpack.c.l.b16 %v2026
    %v2108 = vunpack.c.h.b16 %v2026
    %v2109 = vunpack.c.l.b16 %v2027
    %v2110 = vunpack.c.l.b16 %v2028
    %v2111 = vunpack.c.h.b16 %v2028
    %v2112 = vunpack.c.l.b16 %v2029
    %v2113 = vunpack.c.l.b16 %v2030
    %v2114 = vunpack.c.h.b16 %v2030
    %v2115 = vunpack.c.l.b16 %v2031
    %v2116 = vunpack.c.l.b16 %v2032
    %v2117 = vunpack.c.h.b16 %v2032
    %v2118 = vunpack.c.l.b16 %v2033
    %v2119 = vunpack.c.l.b16 %v2034
    %v2120 = vunpack.c.h.b16 %v2034
    %v2121 = vunpack.c.l.b16 %v2035
    %v2122 = vunpack.c.l.b16 %v2036
    %v2123 = vunpack.c.h.b16 %v2036
    %v2124 = vunpack.c.l.b16 %v2037
    %v2125 = vunpack.c.l.b16 %v2038
    %v2126 = vunpack.c.h.b16 %v2038
    %v2127 = vunpack.c.l.b16 %v2039
    %v2128 = vunpack.c.l.b16 %v2040
    %v2129 = vunpack.c.h.b16 %v2040
    %v2130 = vunpack.c.l.b16 %v2041
    %v2131 = vunpack.c.l.b16 %v2042
    %v2132 = vunpack.c.h.b16 %v2042
    %v2133 = vunpack.c.l.b16 %v2043
    %v2134 = vunpack.c.l.b16 %v2044
    %v2135 = vunpack.c.h.b16 %v2044
    %v2136 = vunpack.c.l.b16 %v2045
    %v2137 = vunpack.c.l.b16 %v2046
    %v2138 = vunpack.c.h.b16 %v2046
    %v2139 = vunpack.c.l.b16 %v2047
    %v2140 = vunpack.c.l.b16 %v2048
    %v2141 = vunpack.c.h.b16 %v2048
    %v2142 = vunpack.c.l.b16 %v2049
    %v2143 = vunpack.c.l.b16 %v2050
    %v2144 = vunpack.c.h.b16 %v2050
    %v2145 = vunpack.c.l.b16 %v2051
    %v2146 = vunpack.c.l.b16 %v2052
    %v2147 = vunpack.c.h.b16 %v2052
    %v2148 = vunpack.c.l.b16 %v2053
    %v2149 = vunpack.c.l.b16 %v2054
    %v2150 = vunpack.c.h.b16 %v2054
    %v2151 = vunpack.c.l.b16 %v2055
    %v2152 = vunpack.c.l.b16 %v2056
    %v2153 = vunpack.c.h.b16 %v2056
    %v2154 = vunpack.c.l.b16 %v2057
    %v2155 = vpack.c.b16 %v2110, %v2107
    %v2156 = vpack.c.b16 %v2111, %v2108
    %v2157 = vpack.c.b16 %v2112, %v2109
    %v2158 = vpack.c.b16 %v2116, %v2113
    %v2159 = vpack.c.b16 %v2117, %v2114
    %v2160 = vpack.c.b16 %v2118, %v2115
    %v2161 = vpack.c.b16 %v2122, %v2119
    %v2162 = vpack.c.b16 %v2123, %v2120
    %v2163 = vpack.c.b16 %v2124, %v2121
    %v2164 = vpack.c.b16 %v2128, %v2125
    %v2165 = vpack.c.b16 %v2129, %v2126
    %v2166 = vpack.c.b16 %v2130, %v2127
    %v2167 = vpack.c.b16 %v2134, %v2131
    %v2168 = vpack.c.b16 %v2135, %v2132
    %v2169 = vpack.c.b16 %v2136, %v2133
    %v2170 = vpack.c.b16 %v2140, %v2137
    %v2171 = vpack.c.b16 %v2141, %v2138
    %v2172 = vpack.c.b16 %v2142, %v2139
    %v2173 = vpack.c.b16 %v2146, %v2143
    %v2174 = vpack.c.b16 %v2147, %v2144
    %v2175 = vpack.c.b16 %v2148, %v2145
    %v2176 = vpack.c.b16 %v2152, %v2149
    %v2177 = vpack.c.b16 %v2153, %v2150
    %v2178 = vpack.c.b16 %v2154, %v2151
    %2203 = vmatprep.subr.bf16.mxu0 %v2156
    %2204 = vmatpush1.bf16.msra.mxu0 %v2155
    %2205 = vmatprep.subr.bf16.mxu0 %v2159
    %2206 = vmatpush1.bf16.msra.mxu0 %v2158
    %2207 = vmatprep.subr.bf16.mxu0 %v2162
    %2208 = vmatpush1.bf16.msra.mxu0 %v2161
    %2209 = vmatprep.subr.bf16.mxu0 %v2165
    %2210 = vmatpush1.bf16.msra.mxu0 %v2164
    %2211 = vmatprep.subr.bf16.mxu0 %v2168
    %2212 = vmatpush1.bf16.msra.mxu0 %v2167
    %2213 = vmatprep.subr.bf16.mxu0 %v2171
    %2214 = vmatpush1.bf16.msra.mxu0 %v2170
    %2215 = vmatprep.subr.bf16.mxu0 %v2174
    %2216 = vmatpush1.bf16.msra.mxu0 %v2173
    %2217 = vmatprep.subr.bf16.mxu0 %v2177
    %2218 = vmatpush1.bf16.msra.mxu0 %v2176
    %2219 = vmatprep.subr.bf16.mxu0 0
    %2220 = vmatpush1.bf16.msra.mxu0 0
    %2221 = vmatprep.subr.bf16.mxu0 0
    %2222 = vmatpush1.bf16.msra.mxu0 0
    %2223 = vmatprep.subr.bf16.mxu0 0
    %2224 = vmatpush1.bf16.msra.mxu0 0
    %2225 = vmatprep.subr.bf16.mxu0 0
    %2226 = vmatpush1.bf16.msra.mxu0 0
    %2227 = vmatprep.subr.bf16.mxu0 0
    %2228 = vmatpush1.bf16.msra.mxu0 0
    %2229 = vmatprep.subr.bf16.mxu0 0
    %2230 = vmatpush1.bf16.msra.mxu0 0
    %2231 = vmatprep.subr.bf16.mxu0 0
    %2232 = vmatpush1.bf16.msra.mxu0 0
    %2233 = vmatprep.subr.bf16.mxu0 0
    %2234 = vmatpush1.bf16.msra.mxu0 0
    %2235 = vmatprep.mubr.bf16.mxu0 0
    %2236 = vmatmul.mubr.bf16.gmra.mrb[0].mxu0 %v2024
    %v2237 = vpop.f32.mrb[0].mxu0
    %v2238 = vadd.f32 %v2063, %v2237
    %v2239 = vpop.f32.mrb[0].mxu0
    %v2240 = vadd.f32 %v2067, %v2239
    %v2241 = vpop.f32.mrb[0].mxu0
    %v2242 = vpop.f32.mrb[0].mxu0
    %2243 = vdwg.mxu0
    %2244 = vmatprep.subr.bf16.mxu0 0
    %2245 = vmatpush1.bf16.msra.mxu0 %v2157
    %2246 = vmatprep.subr.bf16.mxu0 0
    %2247 = vmatpush1.bf16.msra.mxu0 %v2160
    %2248 = vmatprep.subr.bf16.mxu0 0
    %2249 = vmatpush1.bf16.msra.mxu0 %v2163
    %2250 = vmatprep.subr.bf16.mxu0 0
    %2251 = vmatpush1.bf16.msra.mxu0 %v2166
    %2252 = vmatprep.subr.bf16.mxu0 0
    %2253 = vmatpush1.bf16.msra.mxu0 %v2169
    %2254 = vmatprep.subr.bf16.mxu0 0
    %2255 = vmatpush1.bf16.msra.mxu0 %v2172
    %2256 = vmatprep.subr.bf16.mxu0 0
    %2257 = vmatpush1.bf16.msra.mxu0 %v2175
    %2258 = vmatprep.subr.bf16.mxu0 0
    %2259 = vmatpush1.bf16.msra.mxu0 %v2178
    %2260 = vmatprep.subr.bf16.mxu0 0
    %2261 = vmatpush1.bf16.msra.mxu0 0
    %2262 = vmatprep.subr.bf16.mxu0 0
    %2263 = vmatpush1.bf16.msra.mxu0 0
    %2264 = vmatprep.subr.bf16.mxu0 0
    %2265 = vmatpush1.bf16.msra.mxu0 0
    %2266 = vmatprep.subr.bf16.mxu0 0
    %2267 = vmatpush1.bf16.msra.mxu0 0
    %2268 = vmatprep.subr.bf16.mxu0 0
    %2269 = vmatpush1.bf16.msra.mxu0 0
    %2270 = vmatprep.subr.bf16.mxu0 0
    %2271 = vmatpush1.bf16.msra.mxu0 0
    %2272 = vmatprep.subr.bf16.mxu0 0
    %2273 = vmatpush1.bf16.msra.mxu0 0
    %2274 = vmatprep.subr.bf16.mxu0 0
    %2275 = vmatpush1.bf16.msra.mxu0 0
    %2276 = vmatprep.mubr.bf16.mxu0 0
    %2277 = vmatmul.mubr.bf16.gmra.mrb[0].mxu0 %v2024
    %v2278 = vpop.f32.mrb[0].mxu0
    %v2279 = vadd.f32 %v2071, %v2278
    %v2280 = vpop.f32.mrb[0].mxu0
    %v2281 = vpop.f32.mrb[0].mxu0
    %v2282 = vpop.f32.mrb[0].mxu0
    %2283 = vdwg.mxu0
    %v2284 = vtanh.pop %v2238
    %v2285 = vtanh.pop %v2240
    %v2286 = vtanh.pop %v2279
    %v2287 = vpack.c.bf16 %v2284, %v2284
    %v2288 = vpack.c.bf16 %v2285, %v2285
    %v2289 = vpack.c.bf16 %v2286, %v2286
    %v2290 = vld [vmem:[#allocation10] sm:$0xff]
    %v2291 = vld [vmem:[#allocation10 + $0x8] sm:$0xff]
    %v2292 = vld [vmem:[#allocation10 + $0x10] sm:$0xff]
    %v2293 = vld [vmem:[#allocation10 + $0x18] sm:$0xff]
    %v2294 = vld [vmem:[#allocation10 + $0x20] sm:$0xff]
    %v2295 = vld [vmem:[#allocation10 + $0x28] sm:$0xff]
    %v2296 = vld [vmem:[#allocation10 + $0x30] sm:$0xff]
    %v2297 = vld [vmem:[#allocation10 + $0x38] sm:$0xff]
    %v2298 = vld [vmem:[#allocation10 + $0x40] sm:$0xff]
    %v2299 = vld [vmem:[#allocation10 + $0x48] sm:$0xff]
    %v2300 = vld [vmem:[#allocation10 + $0x50] sm:$0xff]
    %v2301 = vld [vmem:[#allocation10 + $0x58] sm:$0xff]
    %v2302 = vld [vmem:[#allocation10 + $0x60] sm:$0xff]
    %v2303 = vld [vmem:[#allocation10 + $0x68] sm:$0xff]
    %v2304 = vld [vmem:[#allocation10 + $0x70] sm:$0xff]
    %v2305 = vld [vmem:[#allocation10 + $0x78] sm:$0xff]
    %v2306 = vld [vmem:[#allocation10 + $0x80] sm:$0xff]
    %v2307 = vld [vmem:[#allocation10 + $0x88] sm:$0xff]
    %v2308 = vld [vmem:[#allocation10 + $0x90] sm:$0xff]
    %v2309 = vld [vmem:[#allocation10 + $0x98] sm:$0xff]
    %v2310 = vld [vmem:[#allocation10 + $0xa0] sm:$0xff]
    %v2311 = vld [vmem:[#allocation10 + $0xa8] sm:$0xff]
    %v2312 = vld [vmem:[#allocation10 + $0xb0] sm:$0xff]
    %v2313 = vld [vmem:[#allocation10 + $0xb8] sm:$0xff]
    %v2314 = vld [vmem:[#allocation10 + $0xc0] sm:$0xff]
    %v2315 = vld [vmem:[#allocation10 + $0xc8] sm:$0xff]
    %v2316 = vld [vmem:[#allocation10 + $0xd0] sm:$0xff]
    %v2317 = vld [vmem:[#allocation10 + $0xd8] sm:$0xff]
    %v2318 = vld [vmem:[#allocation10 + $0xe0] sm:$0xff]
    %v2319 = vld [vmem:[#allocation10 + $0xe8] sm:$0xff]
    %v2320 = vld [vmem:[#allocation10 + $0xf0] sm:$0xff]
    %v2321 = vld [vmem:[#allocation10 + $0xf8] sm:$0xff]
    %v2322 = vld [vmem:[#allocation10 + $0x100] sm:$0xff]
    %v2323 = vld [vmem:[#allocation10 + $0x108] sm:$0xff]
    %v2324 = vld [vmem:[#allocation10 + $0x110] sm:$0xff]
    %v2325 = vld [vmem:[#allocation10 + $0x118] sm:$0xff]
    %v2326 = vld [vmem:[#allocation10 + $0x120] sm:$0xff]
    %v2327 = vld [vmem:[#allocation10 + $0x128] sm:$0xff]
    %v2328 = vld [vmem:[#allocation10 + $0x130] sm:$0xff]
    %v2329 = vld [vmem:[#allocation10 + $0x138] sm:$0xff]
    %v2330 = vld [vmem:[#allocation10 + $0x140] sm:$0xff]
    %v2331 = vld [vmem:[#allocation10 + $0x148] sm:$0xff]
    %v2332 = vld [vmem:[#allocation10 + $0x150] sm:$0xff]
    %v2333 = vld [vmem:[#allocation10 + $0x158] sm:$0xff]
    %v2334 = vld [vmem:[#allocation10 + $0x160] sm:$0xff]
    %v2335 = vld [vmem:[#allocation10 + $0x168] sm:$0xff]
    %v2336 = vld [vmem:[#allocation10 + $0x170] sm:$0xff]
    %v2337 = vld [vmem:[#allocation10 + $0x178] sm:$0xff]
    %v2338 = vld [vmem:[#allocation10 + $0x180] sm:$0xff]
    %v2339 = vld [vmem:[#allocation10 + $0x188] sm:$0xff]
    %v2340 = vld [vmem:[#allocation10 + $0x190] sm:$0xff]
    %v2341 = vld [vmem:[#allocation10 + $0x198] sm:$0xff]
    %v2342 = vld [vmem:[#allocation10 + $0x1a0] sm:$0xff]
    %v2343 = vld [vmem:[#allocation10 + $0x1a8] sm:$0xff]
    %v2344 = vld [vmem:[#allocation10 + $0x1b0] sm:$0xff]
    %v2345 = vld [vmem:[#allocation10 + $0x1b8] sm:$0xff]
    %v2346 = vld [vmem:[#allocation10 + $0x1c0] sm:$0xff]
    %v2347 = vld [vmem:[#allocation10 + $0x1c8] sm:$0xff]
    %v2348 = vld [vmem:[#allocation10 + $0x1d0] sm:$0xff]
    %v2349 = vld [vmem:[#allocation10 + $0x1d8] sm:$0xff]
    %v2350 = vld [vmem:[#allocation10 + $0x1e0] sm:$0xff]
    %v2351 = vld [vmem:[#allocation10 + $0x1e8] sm:$0xff]
    %v2352 = vld [vmem:[#allocation10 + $0x1f0] sm:$0xff]
    %v2353 = vld [vmem:[#allocation10 + $0x1f8] sm:$0xff]
    %v2354 = vld [vmem:[#allocation10 + $0x200] sm:$0xff]
    %v2355 = vld [vmem:[#allocation10 + $0x208] sm:$0xff]
    %v2356 = vld [vmem:[#allocation10 + $0x210] sm:$0xff]
    %v2357 = vld [vmem:[#allocation10 + $0x218] sm:$0xff]
    %v2358 = vld [vmem:[#allocation10 + $0x220] sm:$0xff]
    %v2359 = vld [vmem:[#allocation10 + $0x228] sm:$0xff]
    %v2360 = vld [vmem:[#allocation10 + $0x230] sm:$0xff]
    %v2361 = vld [vmem:[#allocation10 + $0x238] sm:$0xff]
    %v2362 = vld [vmem:[#allocation10 + $0x240] sm:$0xff]
    %v2363 = vld [vmem:[#allocation10 + $0x248] sm:$0xff]
    %v2364 = vld [vmem:[#allocation10 + $0x250] sm:$0xff]
    %v2365 = vld [vmem:[#allocation10 + $0x258] sm:$0xff]
    %v2366 = vld [vmem:[#allocation10 + $0x260] sm:$0xff]
    %v2367 = vld [vmem:[#allocation10 + $0x268] sm:$0xff]
    %v2368 = vld [vmem:[#allocation10 + $0x270] sm:$0xff]
    %v2369 = vld [vmem:[#allocation10 + $0x278] sm:$0xff]
    %v2370 = vld [vmem:[#allocation10 + $0x280] sm:$0xff]
    %v2371 = vld [vmem:[#allocation10 + $0x288] sm:$0xff]
    %v2372 = vld [vmem:[#allocation10 + $0x290] sm:$0xff]
    %v2373 = vld [vmem:[#allocation10 + $0x298] sm:$0xff]
    %v2374 = vld [vmem:[#allocation10 + $0x2a0] sm:$0xff]
    %v2375 = vld [vmem:[#allocation10 + $0x2a8] sm:$0xff]
    %v2376 = vld [vmem:[#allocation10 + $0x2b0] sm:$0xff]
    %v2377 = vld [vmem:[#allocation10 + $0x2b8] sm:$0xff]
    %v2378 = vld [vmem:[#allocation10 + $0x2c0] sm:$0xff]
    %v2379 = vld [vmem:[#allocation10 + $0x2c8] sm:$0xff]
    %v2380 = vld [vmem:[#allocation10 + $0x2d0] sm:$0xff]
    %v2381 = vld [vmem:[#allocation10 + $0x2d8] sm:$0xff]
    %v2382 = vld [vmem:[#allocation10 + $0x2e0] sm:$0xff]
    %v2383 = vld [vmem:[#allocation10 + $0x2e8] sm:$0xff]
    %v2384 = vld [vmem:[#allocation10 + $0x2f0] sm:$0xff]
    %v2385 = vld [vmem:[#allocation10 + $0x2f8] sm:$0xff]
    %v2386 = vld [vmem:[#allocation10 + $0x300] sm:$0xff]
    %v2387 = vld [vmem:[#allocation10 + $0x308] sm:$0xff]
    %v2388 = vld [vmem:[#allocation10 + $0x310] sm:$0xff]
    %v2389 = vld [vmem:[#allocation10 + $0x318] sm:$0xff]
    %v2390 = vld [vmem:[#allocation10 + $0x320] sm:$0xff]
    %v2391 = vld [vmem:[#allocation10 + $0x328] sm:$0xff]
    %v2392 = vld [vmem:[#allocation10 + $0x330] sm:$0xff]
    %v2393 = vld [vmem:[#allocation10 + $0x338] sm:$0xff]
    %v2394 = vld [vmem:[#allocation10 + $0x340] sm:$0xff]
    %v2395 = vld [vmem:[#allocation10 + $0x348] sm:$0xff]
    %v2396 = vld [vmem:[#allocation10 + $0x350] sm:$0xff]
    %v2397 = vld [vmem:[#allocation10 + $0x358] sm:$0xff]
    %v2398 = vld [vmem:[#allocation10 + $0x360] sm:$0xff]
    %v2399 = vld [vmem:[#allocation10 + $0x368] sm:$0xff]
    %v2400 = vld [vmem:[#allocation10 + $0x370] sm:$0xff]
    %v2401 = vld [vmem:[#allocation10 + $0x378] sm:$0xff]
    %v2402 = vld [vmem:[#allocation10 + $0x380] sm:$0xff]
    %v2403 = vld [vmem:[#allocation10 + $0x388] sm:$0xff]
    %v2404 = vld [vmem:[#allocation10 + $0x390] sm:$0xff]
    %v2405 = vld [vmem:[#allocation10 + $0x398] sm:$0xff]
    %v2406 = vld [vmem:[#allocation10 + $0x3a0] sm:$0xff]
    %v2407 = vld [vmem:[#allocation10 + $0x3a8] sm:$0xff]
    %v2408 = vld [vmem:[#allocation10 + $0x3b0] sm:$0xff]
    %v2409 = vld [vmem:[#allocation10 + $0x3b8] sm:$0xff]
    %v2410 = vld [vmem:[#allocation10 + $0x3c0] sm:$0xff]
    %v2411 = vld [vmem:[#allocation10 + $0x3c8] sm:$0xff]
    %v2412 = vld [vmem:[#allocation10 + $0x3d0] sm:$0xff]
    %v2413 = vld [vmem:[#allocation10 + $0x3d8] sm:$0xff]
    %v2414 = vld [vmem:[#allocation10 + $0x3e0] sm:$0xff]
    %v2415 = vld [vmem:[#allocation10 + $0x3e8] sm:$0xff]
    %v2416 = vld [vmem:[#allocation10 + $0x3f0] sm:$0xff]
    %v2417 = vld [vmem:[#allocation10 + $0x3f8] sm:$0xff]
    %v2418 = vld [vmem:[#allocation10 + $0x400] sm:$0xff]
    %v2419 = vld [vmem:[#allocation10 + $0x408] sm:$0xff]
    %v2420 = vld [vmem:[#allocation10 + $0x410] sm:$0xff]
    %v2421 = vld [vmem:[#allocation10 + $0x418] sm:$0xff]
    %v2422 = vld [vmem:[#allocation10 + $0x420] sm:$0xff]
    %v2423 = vld [vmem:[#allocation10 + $0x428] sm:$0xff]
    %v2424 = vld [vmem:[#allocation10 + $0x430] sm:$0xff]
    %v2425 = vld [vmem:[#allocation10 + $0x438] sm:$0xff]
    %v2426 = vld [vmem:[#allocation10 + $0x440] sm:$0xff]
    %v2427 = vld [vmem:[#allocation10 + $0x448] sm:$0xff]
    %v2428 = vld [vmem:[#allocation10 + $0x450] sm:$0xff]
    %v2429 = vld [vmem:[#allocation10 + $0x458] sm:$0xff]
    %v2430 = vld [vmem:[#allocation10 + $0x460] sm:$0xff]
    %v2431 = vld [vmem:[#allocation10 + $0x468] sm:$0xff]
    %v2432 = vld [vmem:[#allocation10 + $0x470] sm:$0xff]
    %v2433 = vld [vmem:[#allocation10 + $0x478] sm:$0xff]
    %v2434 = vld [vmem:[#allocation10 + $0x480] sm:$0xff]
    %v2435 = vld [vmem:[#allocation10 + $0x488] sm:$0xff]
    %v2436 = vld [vmem:[#allocation10 + $0x490] sm:$0xff]
    %v2437 = vld [vmem:[#allocation10 + $0x498] sm:$0xff]
    %v2438 = vld [vmem:[#allocation10 + $0x4a0] sm:$0xff]
    %v2439 = vld [vmem:[#allocation10 + $0x4a8] sm:$0xff]
    %v2440 = vld [vmem:[#allocation10 + $0x4b0] sm:$0xff]
    %v2441 = vld [vmem:[#allocation10 + $0x4b8] sm:$0xff]
    %v2442 = vld [vmem:[#allocation10 + $0x4c0] sm:$0xff]
    %v2443 = vld [vmem:[#allocation10 + $0x4c8] sm:$0xff]
    %v2444 = vld [vmem:[#allocation10 + $0x4d0] sm:$0xff]
    %v2445 = vld [vmem:[#allocation10 + $0x4d8] sm:$0xff]
    %v2446 = vld [vmem:[#allocation10 + $0x4e0] sm:$0xff]
    %v2447 = vld [vmem:[#allocation10 + $0x4e8] sm:$0xff]
    %v2448 = vld [vmem:[#allocation10 + $0x4f0] sm:$0xff]
    %v2449 = vld [vmem:[#allocation10 + $0x4f8] sm:$0xff]
    %v2450 = vld [vmem:[#allocation10 + $0x500] sm:$0xff]
    %v2451 = vld [vmem:[#allocation10 + $0x508] sm:$0xff]
    %v2452 = vld [vmem:[#allocation10 + $0x510] sm:$0xff]
    %v2453 = vld [vmem:[#allocation10 + $0x518] sm:$0xff]
    %v2454 = vld [vmem:[#allocation10 + $0x520] sm:$0xff]
    %v2455 = vld [vmem:[#allocation10 + $0x528] sm:$0xff]
    %v2456 = vld [vmem:[#allocation10 + $0x530] sm:$0xff]
    %v2457 = vld [vmem:[#allocation10 + $0x538] sm:$0xff]
    %v2458 = vld [vmem:[#allocation10 + $0x540] sm:$0xff]
    %v2459 = vld [vmem:[#allocation10 + $0x548] sm:$0xff]
    %v2460 = vld [vmem:[#allocation10 + $0x550] sm:$0xff]
    %v2461 = vld [vmem:[#allocation10 + $0x558] sm:$0xff]
    %v2462 = vld [vmem:[#allocation10 + $0x560] sm:$0xff]
    %v2463 = vld [vmem:[#allocation10 + $0x568] sm:$0xff]
    %v2464 = vld [vmem:[#allocation10 + $0x570] sm:$0xff]
    %v2465 = vld [vmem:[#allocation10 + $0x578] sm:$0xff]
    %v2466 = vld [vmem:[#allocation10 + $0x580] sm:$0xff]
    %v2467 = vld [vmem:[#allocation10 + $0x588] sm:$0xff]
    %v2468 = vld [vmem:[#allocation10 + $0x590] sm:$0xff]
    %v2469 = vld [vmem:[#allocation10 + $0x598] sm:$0xff]
    %v2470 = vld [vmem:[#allocation10 + $0x5a0] sm:$0xff]
    %v2471 = vld [vmem:[#allocation10 + $0x5a8] sm:$0xff]
    %v2472 = vld [vmem:[#allocation10 + $0x5b0] sm:$0xff]
    %v2473 = vld [vmem:[#allocation10 + $0x5b8] sm:$0xff]
    %v2474 = vld [vmem:[#allocation10 + $0x5c0] sm:$0xff]
    %v2475 = vld [vmem:[#allocation10 + $0x5c8] sm:$0xff]
    %v2476 = vld [vmem:[#allocation10 + $0x5d0] sm:$0xff]
    %v2477 = vld [vmem:[#allocation10 + $0x5d8] sm:$0xff]
    %v2478 = vld [vmem:[#allocation10 + $0x5e0] sm:$0xff]
    %v2479 = vld [vmem:[#allocation10 + $0x5e8] sm:$0xff]
    %v2480 = vld [vmem:[#allocation10 + $0x5f0] sm:$0xff]
    %v2481 = vld [vmem:[#allocation10 + $0x5f8] sm:$0xff]
    %v2482 = vld [vmem:[%s8] sm:$0xff]
    %v2484 = vlaneseq
    %v2485 = vshrl.u32 %v2484, 7
    %v2486 = vsub.s32 0, %v2485
    %v2487 = vrot.slane %v2482, %v2486
    %v2488 = vlaneseq
    %v2489 = vshrl.u32 %v2488, 7
    %v2490 = vsub.s32 1, %v2489
    %v2491 = vrot.slane %v2482, %v2490
    %v2492 = vlaneseq
    %v2493 = vshrl.u32 %v2492, 7
    %v2494 = vsub.s32 2, %v2493
    %v2495 = vrot.slane %v2482, %v2494
    %v2496 = vlaneseq
    %v2497 = vshrl.u32 %v2496, 7
    %v2498 = vsub.s32 3, %v2497
    %v2499 = vrot.slane %v2482, %v2498
    %v2500 = vlaneseq
    %v2501 = vshrl.u32 %v2500, 7
    %v2502 = vsub.s32 4, %v2501
    %v2503 = vrot.slane %v2482, %v2502
    %v2504 = vlaneseq
    %v2505 = vshrl.u32 %v2504, 7
    %v2506 = vsub.s32 5, %v2505
    %v2507 = vrot.slane %v2482, %v2506
    %v2508 = vlaneseq
    %v2509 = vshrl.u32 %v2508, 7
    %v2510 = vsub.s32 6, %v2509
    %v2511 = vrot.slane %v2482, %v2510
    %v2512 = vlaneseq
    %v2513 = vshrl.u32 %v2512, 7
    %v2514 = vsub.s32 7, %v2513
    %v2515 = vrot.slane %v2482, %v2514
    %v2716 = vunpack.c.l.b16 %v2290
    %v2717 = vunpack.c.h.b16 %v2290
    %v2718 = vunpack.c.l.b16 %v2291
    %v2719 = vunpack.c.h.b16 %v2291
    %v2720 = vunpack.c.l.b16 %v2292
    %v2721 = vunpack.c.h.b16 %v2292
    %v2722 = vunpack.c.l.b16 %v2293
    %v2723 = vunpack.c.h.b16 %v2293
    %v2724 = vunpack.c.l.b16 %v2294
    %v2725 = vunpack.c.h.b16 %v2294
    %v2726 = vunpack.c.l.b16 %v2295
    %v2727 = vunpack.c.h.b16 %v2295
    %v2728 = vunpack.c.l.b16 %v2296
    %v2729 = vunpack.c.h.b16 %v2296
    %v2730 = vunpack.c.l.b16 %v2297
    %v2731 = vunpack.c.h.b16 %v2297
    %v2732 = vunpack.c.l.b16 %v2298
    %v2733 = vunpack.c.h.b16 %v2298
    %v2734 = vunpack.c.l.b16 %v2299
    %v2735 = vunpack.c.h.b16 %v2299
    %v2736 = vunpack.c.l.b16 %v2300
    %v2737 = vunpack.c.h.b16 %v2300
    %v2738 = vunpack.c.l.b16 %v2301
    %v2739 = vunpack.c.h.b16 %v2301
    %v2740 = vunpack.c.l.b16 %v2302
    %v2741 = vunpack.c.h.b16 %v2302
    %v2742 = vunpack.c.l.b16 %v2303
    %v2743 = vunpack.c.h.b16 %v2303
    %v2744 = vunpack.c.l.b16 %v2304
    %v2745 = vunpack.c.h.b16 %v2304
    %v2746 = vunpack.c.l.b16 %v2305
    %v2747 = vunpack.c.h.b16 %v2305
    %v2748 = vunpack.c.l.b16 %v2306
    %v2749 = vunpack.c.h.b16 %v2306
    %v2750 = vunpack.c.l.b16 %v2307
    %v2751 = vunpack.c.h.b16 %v2307
    %v2752 = vunpack.c.l.b16 %v2308
    %v2753 = vunpack.c.h.b16 %v2308
    %v2754 = vunpack.c.l.b16 %v2309
    %v2755 = vunpack.c.h.b16 %v2309
    %v2756 = vunpack.c.l.b16 %v2310
    %v2757 = vunpack.c.h.b16 %v2310
    %v2758 = vunpack.c.l.b16 %v2311
    %v2759 = vunpack.c.h.b16 %v2311
    %v2760 = vunpack.c.l.b16 %v2312
    %v2761 = vunpack.c.h.b16 %v2312
    %v2762 = vunpack.c.l.b16 %v2313
    %v2763 = vunpack.c.h.b16 %v2313
    %v2764 = vunpack.c.l.b16 %v2314
    %v2765 = vunpack.c.h.b16 %v2314
    %v2766 = vunpack.c.l.b16 %v2315
    %v2767 = vunpack.c.h.b16 %v2315
    %v2768 = vunpack.c.l.b16 %v2316
    %v2769 = vunpack.c.h.b16 %v2316
    %v2770 = vunpack.c.l.b16 %v2317
    %v2771 = vunpack.c.h.b16 %v2317
    %v2772 = vunpack.c.l.b16 %v2318
    %v2773 = vunpack.c.h.b16 %v2318
    %v2774 = vunpack.c.l.b16 %v2319
    %v2775 = vunpack.c.h.b16 %v2319
    %v2776 = vunpack.c.l.b16 %v2320
    %v2777 = vunpack.c.h.b16 %v2320
    %v2778 = vunpack.c.l.b16 %v2321
    %v2779 = vunpack.c.h.b16 %v2321
    %v2780 = vunpack.c.l.b16 %v2322
    %v2781 = vunpack.c.h.b16 %v2322
    %v2782 = vunpack.c.l.b16 %v2323
    %v2783 = vunpack.c.h.b16 %v2323
    %v2784 = vunpack.c.l.b16 %v2324
    %v2785 = vunpack.c.h.b16 %v2324
    %v2786 = vunpack.c.l.b16 %v2325
    %v2787 = vunpack.c.h.b16 %v2325
    %v2788 = vunpack.c.l.b16 %v2326
    %v2789 = vunpack.c.h.b16 %v2326
    %v2790 = vunpack.c.l.b16 %v2327
    %v2791 = vunpack.c.h.b16 %v2327
    %v2792 = vunpack.c.l.b16 %v2328
    %v2793 = vunpack.c.h.b16 %v2328
    %v2794 = vunpack.c.l.b16 %v2329
    %v2795 = vunpack.c.h.b16 %v2329
    %v2796 = vunpack.c.l.b16 %v2330
    %v2797 = vunpack.c.h.b16 %v2330
    %v2798 = vunpack.c.l.b16 %v2331
    %v2799 = vunpack.c.h.b16 %v2331
    %v2800 = vunpack.c.l.b16 %v2332
    %v2801 = vunpack.c.h.b16 %v2332
    %v2802 = vunpack.c.l.b16 %v2333
    %v2803 = vunpack.c.h.b16 %v2333
    %v2804 = vunpack.c.l.b16 %v2334
    %v2805 = vunpack.c.h.b16 %v2334
    %v2806 = vunpack.c.l.b16 %v2335
    %v2807 = vunpack.c.h.b16 %v2335
    %v2808 = vunpack.c.l.b16 %v2336
    %v2809 = vunpack.c.h.b16 %v2336
    %v2810 = vunpack.c.l.b16 %v2337
    %v2811 = vunpack.c.h.b16 %v2337
    %v2812 = vunpack.c.l.b16 %v2338
    %v2813 = vunpack.c.h.b16 %v2338
    %v2814 = vunpack.c.l.b16 %v2339
    %v2815 = vunpack.c.h.b16 %v2339
    %v2816 = vunpack.c.l.b16 %v2340
    %v2817 = vunpack.c.h.b16 %v2340
    %v2818 = vunpack.c.l.b16 %v2341
    %v2819 = vunpack.c.h.b16 %v2341
    %v2820 = vunpack.c.l.b16 %v2342
    %v2821 = vunpack.c.h.b16 %v2342
    %v2822 = vunpack.c.l.b16 %v2343
    %v2823 = vunpack.c.h.b16 %v2343
    %v2824 = vunpack.c.l.b16 %v2344
    %v2825 = vunpack.c.h.b16 %v2344
    %v2826 = vunpack.c.l.b16 %v2345
    %v2827 = vunpack.c.h.b16 %v2345
    %v2828 = vunpack.c.l.b16 %v2346
    %v2829 = vunpack.c.h.b16 %v2346
    %v2830 = vunpack.c.l.b16 %v2347
    %v2831 = vunpack.c.h.b16 %v2347
    %v2832 = vunpack.c.l.b16 %v2348
    %v2833 = vunpack.c.h.b16 %v2348
    %v2834 = vunpack.c.l.b16 %v2349
    %v2835 = vunpack.c.h.b16 %v2349
    %v2836 = vunpack.c.l.b16 %v2350
    %v2837 = vunpack.c.h.b16 %v2350
    %v2838 = vunpack.c.l.b16 %v2351
    %v2839 = vunpack.c.h.b16 %v2351
    %v2840 = vunpack.c.l.b16 %v2352
    %v2841 = vunpack.c.h.b16 %v2352
    %v2842 = vunpack.c.l.b16 %v2353
    %v2843 = vunpack.c.h.b16 %v2353
    %v2844 = vunpack.c.l.b16 %v2354
    %v2845 = vunpack.c.h.b16 %v2354
    %v2846 = vunpack.c.l.b16 %v2355
    %v2847 = vunpack.c.h.b16 %v2355
    %v2848 = vunpack.c.l.b16 %v2356
    %v2849 = vunpack.c.h.b16 %v2356
    %v2850 = vunpack.c.l.b16 %v2357
    %v2851 = vunpack.c.h.b16 %v2357
    %v2852 = vunpack.c.l.b16 %v2358
    %v2853 = vunpack.c.h.b16 %v2358
    %v2854 = vunpack.c.l.b16 %v2359
    %v2855 = vunpack.c.h.b16 %v2359
    %v2856 = vunpack.c.l.b16 %v2360
    %v2857 = vunpack.c.h.b16 %v2360
    %v2858 = vunpack.c.l.b16 %v2361
    %v2859 = vunpack.c.h.b16 %v2361
    %v2860 = vunpack.c.l.b16 %v2362
    %v2861 = vunpack.c.h.b16 %v2362
    %v2862 = vunpack.c.l.b16 %v2363
    %v2863 = vunpack.c.h.b16 %v2363
    %v2864 = vunpack.c.l.b16 %v2364
    %v2865 = vunpack.c.h.b16 %v2364
    %v2866 = vunpack.c.l.b16 %v2365
    %v2867 = vunpack.c.h.b16 %v2365
    %v2868 = vunpack.c.l.b16 %v2366
    %v2869 = vunpack.c.h.b16 %v2366
    %v2870 = vunpack.c.l.b16 %v2367
    %v2871 = vunpack.c.h.b16 %v2367
    %v2872 = vunpack.c.l.b16 %v2368
    %v2873 = vunpack.c.h.b16 %v2368
    %v2874 = vunpack.c.l.b16 %v2369
    %v2875 = vunpack.c.h.b16 %v2369
    %v2876 = vunpack.c.l.b16 %v2370
    %v2877 = vunpack.c.h.b16 %v2370
    %v2878 = vunpack.c.l.b16 %v2371
    %v2879 = vunpack.c.h.b16 %v2371
    %v2880 = vunpack.c.l.b16 %v2372
    %v2881 = vunpack.c.h.b16 %v2372
    %v2882 = vunpack.c.l.b16 %v2373
    %v2883 = vunpack.c.h.b16 %v2373
    %v2884 = vunpack.c.l.b16 %v2374
    %v2885 = vunpack.c.h.b16 %v2374
    %v2886 = vunpack.c.l.b16 %v2375
    %v2887 = vunpack.c.h.b16 %v2375
    %v2888 = vunpack.c.l.b16 %v2376
    %v2889 = vunpack.c.h.b16 %v2376
    %v2890 = vunpack.c.l.b16 %v2377
    %v2891 = vunpack.c.h.b16 %v2377
    %v2892 = vunpack.c.l.b16 %v2378
    %v2893 = vunpack.c.h.b16 %v2378
    %v2894 = vunpack.c.l.b16 %v2379
    %v2895 = vunpack.c.h.b16 %v2379
    %v2896 = vunpack.c.l.b16 %v2380
    %v2897 = vunpack.c.h.b16 %v2380
    %v2898 = vunpack.c.l.b16 %v2381
    %v2899 = vunpack.c.h.b16 %v2381
    %v2900 = vunpack.c.l.b16 %v2382
    %v2901 = vunpack.c.h.b16 %v2382
    %v2902 = vunpack.c.l.b16 %v2383
    %v2903 = vunpack.c.h.b16 %v2383
    %v2904 = vunpack.c.l.b16 %v2384
    %v2905 = vunpack.c.h.b16 %v2384
    %v2906 = vunpack.c.l.b16 %v2385
    %v2907 = vunpack.c.h.b16 %v2385
    %v2908 = vunpack.c.l.b16 %v2386
    %v2909 = vunpack.c.h.b16 %v2386
    %v2910 = vunpack.c.l.b16 %v2387
    %v2911 = vunpack.c.h.b16 %v2387
    %v2912 = vunpack.c.l.b16 %v2388
    %v2913 = vunpack.c.h.b16 %v2388
    %v2914 = vunpack.c.l.b16 %v2389
    %v2915 = vunpack.c.h.b16 %v2389
    %v2916 = vunpack.c.l.b16 %v2390
    %v2917 = vunpack.c.h.b16 %v2390
    %v2918 = vunpack.c.l.b16 %v2391
    %v2919 = vunpack.c.h.b16 %v2391
    %v2920 = vunpack.c.l.b16 %v2392
    %v2921 = vunpack.c.h.b16 %v2392
    %v2922 = vunpack.c.l.b16 %v2393
    %v2923 = vunpack.c.h.b16 %v2393
    %v2924 = vunpack.c.l.b16 %v2394
    %v2925 = vunpack.c.h.b16 %v2394
    %v2926 = vunpack.c.l.b16 %v2395
    %v2927 = vunpack.c.h.b16 %v2395
    %v2928 = vunpack.c.l.b16 %v2396
    %v2929 = vunpack.c.h.b16 %v2396
    %v2930 = vunpack.c.l.b16 %v2397
    %v2931 = vunpack.c.h.b16 %v2397
    %v2932 = vunpack.c.l.b16 %v2398
    %v2933 = vunpack.c.h.b16 %v2398
    %v2934 = vunpack.c.l.b16 %v2399
    %v2935 = vunpack.c.h.b16 %v2399
    %v2936 = vunpack.c.l.b16 %v2400
    %v2937 = vunpack.c.h.b16 %v2400
    %v2938 = vunpack.c.l.b16 %v2401
    %v2939 = vunpack.c.h.b16 %v2401
    %v2940 = vunpack.c.l.b16 %v2402
    %v2941 = vunpack.c.h.b16 %v2402
    %v2942 = vunpack.c.l.b16 %v2403
    %v2943 = vunpack.c.h.b16 %v2403
    %v2944 = vunpack.c.l.b16 %v2404
    %v2945 = vunpack.c.h.b16 %v2404
    %v2946 = vunpack.c.l.b16 %v2405
    %v2947 = vunpack.c.h.b16 %v2405
    %v2948 = vunpack.c.l.b16 %v2406
    %v2949 = vunpack.c.h.b16 %v2406
    %v2950 = vunpack.c.l.b16 %v2407
    %v2951 = vunpack.c.h.b16 %v2407
    %v2952 = vunpack.c.l.b16 %v2408
    %v2953 = vunpack.c.h.b16 %v2408
    %v2954 = vunpack.c.l.b16 %v2409
    %v2955 = vunpack.c.h.b16 %v2409
    %v2956 = vunpack.c.l.b16 %v2410
    %v2957 = vunpack.c.h.b16 %v2410
    %v2958 = vunpack.c.l.b16 %v2411
    %v2959 = vunpack.c.h.b16 %v2411
    %v2960 = vunpack.c.l.b16 %v2412
    %v2961 = vunpack.c.h.b16 %v2412
    %v2962 = vunpack.c.l.b16 %v2413
    %v2963 = vunpack.c.h.b16 %v2413
    %v2964 = vunpack.c.l.b16 %v2414
    %v2965 = vunpack.c.h.b16 %v2414
    %v2966 = vunpack.c.l.b16 %v2415
    %v2967 = vunpack.c.h.b16 %v2415
    %v2968 = vunpack.c.l.b16 %v2416
    %v2969 = vunpack.c.h.b16 %v2416
    %v2970 = vunpack.c.l.b16 %v2417
    %v2971 = vunpack.c.h.b16 %v2417
    %v2972 = vunpack.c.l.b16 %v2418
    %v2973 = vunpack.c.h.b16 %v2418
    %v2974 = vunpack.c.l.b16 %v2419
    %v2975 = vunpack.c.h.b16 %v2419
    %v2976 = vunpack.c.l.b16 %v2420
    %v2977 = vunpack.c.h.b16 %v2420
    %v2978 = vunpack.c.l.b16 %v2421
    %v2979 = vunpack.c.h.b16 %v2421
    %v2980 = vunpack.c.l.b16 %v2422
    %v2981 = vunpack.c.h.b16 %v2422
    %v2982 = vunpack.c.l.b16 %v2423
    %v2983 = vunpack.c.h.b16 %v2423
    %v2984 = vunpack.c.l.b16 %v2424
    %v2985 = vunpack.c.h.b16 %v2424
    %v2986 = vunpack.c.l.b16 %v2425
    %v2987 = vunpack.c.h.b16 %v2425
    %v2988 = vunpack.c.l.b16 %v2426
    %v2989 = vunpack.c.h.b16 %v2426
    %v2990 = vunpack.c.l.b16 %v2427
    %v2991 = vunpack.c.h.b16 %v2427
    %v2992 = vunpack.c.l.b16 %v2428
    %v2993 = vunpack.c.h.b16 %v2428
    %v2994 = vunpack.c.l.b16 %v2429
    %v2995 = vunpack.c.h.b16 %v2429
    %v2996 = vunpack.c.l.b16 %v2430
    %v2997 = vunpack.c.h.b16 %v2430
    %v2998 = vunpack.c.l.b16 %v2431
    %v2999 = vunpack.c.h.b16 %v2431
    %v3000 = vunpack.c.l.b16 %v2432
    %v3001 = vunpack.c.h.b16 %v2432
    %v3002 = vunpack.c.l.b16 %v2433
    %v3003 = vunpack.c.h.b16 %v2433
    %v3004 = vunpack.c.l.b16 %v2434
    %v3005 = vunpack.c.h.b16 %v2434
    %v3006 = vunpack.c.l.b16 %v2435
    %v3007 = vunpack.c.h.b16 %v2435
    %v3008 = vunpack.c.l.b16 %v2436
    %v3009 = vunpack.c.h.b16 %v2436
    %v3010 = vunpack.c.l.b16 %v2437
    %v3011 = vunpack.c.h.b16 %v2437
    %v3012 = vunpack.c.l.b16 %v2438
    %v3013 = vunpack.c.h.b16 %v2438
    %v3014 = vunpack.c.l.b16 %v2439
    %v3015 = vunpack.c.h.b16 %v2439
    %v3016 = vunpack.c.l.b16 %v2440
    %v3017 = vunpack.c.h.b16 %v2440
    %v3018 = vunpack.c.l.b16 %v2441
    %v3019 = vunpack.c.h.b16 %v2441
    %v3020 = vunpack.c.l.b16 %v2442
    %v3021 = vunpack.c.h.b16 %v2442
    %v3022 = vunpack.c.l.b16 %v2443
    %v3023 = vunpack.c.h.b16 %v2443
    %v3024 = vunpack.c.l.b16 %v2444
    %v3025 = vunpack.c.h.b16 %v2444
    %v3026 = vunpack.c.l.b16 %v2445
    %v3027 = vunpack.c.h.b16 %v2445
    %v3028 = vunpack.c.l.b16 %v2446
    %v3029 = vunpack.c.h.b16 %v2446
    %v3030 = vunpack.c.l.b16 %v2447
    %v3031 = vunpack.c.h.b16 %v2447
    %v3032 = vunpack.c.l.b16 %v2448
    %v3033 = vunpack.c.h.b16 %v2448
    %v3034 = vunpack.c.l.b16 %v2449
    %v3035 = vunpack.c.h.b16 %v2449
    %v3036 = vunpack.c.l.b16 %v2450
    %v3037 = vunpack.c.h.b16 %v2450
    %v3038 = vunpack.c.l.b16 %v2451
    %v3039 = vunpack.c.h.b16 %v2451
    %v3040 = vunpack.c.l.b16 %v2452
    %v3041 = vunpack.c.h.b16 %v2452
    %v3042 = vunpack.c.l.b16 %v2453
    %v3043 = vunpack.c.h.b16 %v2453
    %v3044 = vunpack.c.l.b16 %v2454
    %v3045 = vunpack.c.h.b16 %v2454
    %v3046 = vunpack.c.l.b16 %v2455
    %v3047 = vunpack.c.h.b16 %v2455
    %v3048 = vunpack.c.l.b16 %v2456
    %v3049 = vunpack.c.h.b16 %v2456
    %v3050 = vunpack.c.l.b16 %v2457
    %v3051 = vunpack.c.h.b16 %v2457
    %v3052 = vunpack.c.l.b16 %v2458
    %v3053 = vunpack.c.h.b16 %v2458
    %v3054 = vunpack.c.l.b16 %v2459
    %v3055 = vunpack.c.h.b16 %v2459
    %v3056 = vunpack.c.l.b16 %v2460
    %v3057 = vunpack.c.h.b16 %v2460
    %v3058 = vunpack.c.l.b16 %v2461
    %v3059 = vunpack.c.h.b16 %v2461
    %v3060 = vunpack.c.l.b16 %v2462
    %v3061 = vunpack.c.h.b16 %v2462
    %v3062 = vunpack.c.l.b16 %v2463
    %v3063 = vunpack.c.h.b16 %v2463
    %v3064 = vunpack.c.l.b16 %v2464
    %v3065 = vunpack.c.h.b16 %v2464
    %v3066 = vunpack.c.l.b16 %v2465
    %v3067 = vunpack.c.h.b16 %v2465
    %v3068 = vunpack.c.l.b16 %v2466
    %v3069 = vunpack.c.h.b16 %v2466
    %v3070 = vunpack.c.l.b16 %v2467
    %v3071 = vunpack.c.h.b16 %v2467
    %v3072 = vunpack.c.l.b16 %v2468
    %v3073 = vunpack.c.h.b16 %v2468
    %v3074 = vunpack.c.l.b16 %v2469
    %v3075 = vunpack.c.h.b16 %v2469
    %v3076 = vunpack.c.l.b16 %v2470
    %v3077 = vunpack.c.h.b16 %v2470
    %v3078 = vunpack.c.l.b16 %v2471
    %v3079 = vunpack.c.h.b16 %v2471
    %v3080 = vunpack.c.l.b16 %v2472
    %v3081 = vunpack.c.h.b16 %v2472
    %v3082 = vunpack.c.l.b16 %v2473
    %v3083 = vunpack.c.h.b16 %v2473
    %v3084 = vunpack.c.l.b16 %v2474
    %v3085 = vunpack.c.h.b16 %v2474
    %v3086 = vunpack.c.l.b16 %v2475
    %v3087 = vunpack.c.h.b16 %v2475
    %v3088 = vunpack.c.l.b16 %v2476
    %v3089 = vunpack.c.h.b16 %v2476
    %v3090 = vunpack.c.l.b16 %v2477
    %v3091 = vunpack.c.h.b16 %v2477
    %v3092 = vunpack.c.l.b16 %v2478
    %v3093 = vunpack.c.h.b16 %v2478
    %v3094 = vunpack.c.l.b16 %v2479
    %v3095 = vunpack.c.h.b16 %v2479
    %v3096 = vunpack.c.l.b16 %v2480
    %v3097 = vunpack.c.h.b16 %v2480
    %v3098 = vunpack.c.l.b16 %v2481
    %v3099 = vunpack.c.h.b16 %v2481
    %v3100 = vpack.c.b16 %v2724, %v2716
    %v3101 = vpack.c.b16 %v2725, %v2717
    %v3102 = vpack.c.b16 %v2726, %v2718
    %v3103 = vpack.c.b16 %v2727, %v2719
    %v3104 = vpack.c.b16 %v2728, %v2720
    %v3105 = vpack.c.b16 %v2729, %v2721
    %v3106 = vpack.c.b16 %v2730, %v2722
    %v3107 = vpack.c.b16 %v2731, %v2723
    %v3108 = vpack.c.b16 %v2740, %v2732
    %v3109 = vpack.c.b16 %v2741, %v2733
    %v3110 = vpack.c.b16 %v2742, %v2734
    %v3111 = vpack.c.b16 %v2743, %v2735
    %v3112 = vpack.c.b16 %v2744, %v2736
    %v3113 = vpack.c.b16 %v2745, %v2737
    %v3114 = vpack.c.b16 %v2746, %v2738
    %v3115 = vpack.c.b16 %v2747, %v2739
    %v3116 = vpack.c.b16 %v2756, %v2748
    %v3117 = vpack.c.b16 %v2757, %v2749
    %v3118 = vpack.c.b16 %v2758, %v2750
    %v3119 = vpack.c.b16 %v2759, %v2751
    %v3120 = vpack.c.b16 %v2760, %v2752
    %v3121 = vpack.c.b16 %v2761, %v2753
    %v3122 = vpack.c.b16 %v2762, %v2754
    %v3123 = vpack.c.b16 %v2763, %v2755
    %v3124 = vpack.c.b16 %v2772, %v2764
    %v3125 = vpack.c.b16 %v2773, %v2765
    %v3126 = vpack.c.b16 %v2774, %v2766
    %v3127 = vpack.c.b16 %v2775, %v2767
    %v3128 = vpack.c.b16 %v2776, %v2768
    %v3129 = vpack.c.b16 %v2777, %v2769
    %v3130 = vpack.c.b16 %v2778, %v2770
    %v3131 = vpack.c.b16 %v2779, %v2771
    %v3132 = vpack.c.b16 %v2788, %v2780
    %v3133 = vpack.c.b16 %v2789, %v2781
    %v3134 = vpack.c.b16 %v2790, %v2782
    %v3135 = vpack.c.b16 %v2791, %v2783
    %v3136 = vpack.c.b16 %v2792, %v2784
    %v3137 = vpack.c.b16 %v2793, %v2785
    %v3138 = vpack.c.b16 %v2794, %v2786
    %v3139 = vpack.c.b16 %v2795, %v2787
    %v3140 = vpack.c.b16 %v2804, %v2796
    %v3141 = vpack.c.b16 %v2805, %v2797
    %v3142 = vpack.c.b16 %v2806, %v2798
    %v3143 = vpack.c.b16 %v2807, %v2799
    %v3144 = vpack.c.b16 %v2808, %v2800
    %v3145 = vpack.c.b16 %v2809, %v2801
    %v3146 = vpack.c.b16 %v2810, %v2802
    %v3147 = vpack.c.b16 %v2811, %v2803
    %v3148 = vpack.c.b16 %v2820, %v2812
    %v3149 = vpack.c.b16 %v2821, %v2813
    %v3150 = vpack.c.b16 %v2822, %v2814
    %v3151 = vpack.c.b16 %v2823, %v2815
    %v3152 = vpack.c.b16 %v2824, %v2816
    %v3153 = vpack.c.b16 %v2825, %v2817
    %v3154 = vpack.c.b16 %v2826, %v2818
    %v3155 = vpack.c.b16 %v2827, %v2819
    %v3156 = vpack.c.b16 %v2836, %v2828
    %v3157 = vpack.c.b16 %v2837, %v2829
    %v3158 = vpack.c.b16 %v2838, %v2830
    %v3159 = vpack.c.b16 %v2839, %v2831
    %v3160 = vpack.c.b16 %v2840, %v2832
    %v3161 = vpack.c.b16 %v2841, %v2833
    %v3162 = vpack.c.b16 %v2842, %v2834
    %v3163 = vpack.c.b16 %v2843, %v2835
    %v3164 = vpack.c.b16 %v2852, %v2844
    %v3165 = vpack.c.b16 %v2853, %v2845
    %v3166 = vpack.c.b16 %v2854, %v2846
    %v3167 = vpack.c.b16 %v2855, %v2847
    %v3168 = vpack.c.b16 %v2856, %v2848
    %v3169 = vpack.c.b16 %v2857, %v2849
    %v3170 = vpack.c.b16 %v2858, %v2850
    %v3171 = vpack.c.b16 %v2859, %v2851
    %v3172 = vpack.c.b16 %v2868, %v2860
    %v3173 = vpack.c.b16 %v2869, %v2861
    %v3174 = vpack.c.b16 %v2870, %v2862
    %v3175 = vpack.c.b16 %v2871, %v2863
    %v3176 = vpack.c.b16 %v2872, %v2864
    %v3177 = vpack.c.b16 %v2873, %v2865
    %v3178 = vpack.c.b16 %v2874, %v2866
    %v3179 = vpack.c.b16 %v2875, %v2867
    %v3180 = vpack.c.b16 %v2884, %v2876
    %v3181 = vpack.c.b16 %v2885, %v2877
    %v3182 = vpack.c.b16 %v2886, %v2878
    %v3183 = vpack.c.b16 %v2887, %v2879
    %v3184 = vpack.c.b16 %v2888, %v2880
    %v3185 = vpack.c.b16 %v2889, %v2881
    %v3186 = vpack.c.b16 %v2890, %v2882
    %v3187 = vpack.c.b16 %v2891, %v2883
    %v3188 = vpack.c.b16 %v2900, %v2892
    %v3189 = vpack.c.b16 %v2901, %v2893
    %v3190 = vpack.c.b16 %v2902, %v2894
    %v3191 = vpack.c.b16 %v2903, %v2895
    %v3192 = vpack.c.b16 %v2904, %v2896
    %v3193 = vpack.c.b16 %v2905, %v2897
    %v3194 = vpack.c.b16 %v2906, %v2898
    %v3195 = vpack.c.b16 %v2907, %v2899
    %v3196 = vpack.c.b16 %v2916, %v2908
    %v3197 = vpack.c.b16 %v2917, %v2909
    %v3198 = vpack.c.b16 %v2918, %v2910
    %v3199 = vpack.c.b16 %v2919, %v2911
    %v3200 = vpack.c.b16 %v2920, %v2912
    %v3201 = vpack.c.b16 %v2921, %v2913
    %v3202 = vpack.c.b16 %v2922, %v2914
    %v3203 = vpack.c.b16 %v2923, %v2915
    %v3204 = vpack.c.b16 %v2932, %v2924
    %v3205 = vpack.c.b16 %v2933, %v2925
    %v3206 = vpack.c.b16 %v2934, %v2926
    %v3207 = vpack.c.b16 %v2935, %v2927
    %v3208 = vpack.c.b16 %v2936, %v2928
    %v3209 = vpack.c.b16 %v2937, %v2929
    %v3210 = vpack.c.b16 %v2938, %v2930
    %v3211 = vpack.c.b16 %v2939, %v2931
    %v3212 = vpack.c.b16 %v2948, %v2940
    %v3213 = vpack.c.b16 %v2949, %v2941
    %v3214 = vpack.c.b16 %v2950, %v2942
    %v3215 = vpack.c.b16 %v2951, %v2943
    %v3216 = vpack.c.b16 %v2952, %v2944
    %v3217 = vpack.c.b16 %v2953, %v2945
    %v3218 = vpack.c.b16 %v2954, %v2946
    %v3219 = vpack.c.b16 %v2955, %v2947
    %v3220 = vpack.c.b16 %v2964, %v2956
    %v3221 = vpack.c.b16 %v2965, %v2957
    %v3222 = vpack.c.b16 %v2966, %v2958
    %v3223 = vpack.c.b16 %v2967, %v2959
    %v3224 = vpack.c.b16 %v2968, %v2960
    %v3225 = vpack.c.b16 %v2969, %v2961
    %v3226 = vpack.c.b16 %v2970, %v2962
    %v3227 = vpack.c.b16 %v2971, %v2963
    %v3228 = vpack.c.b16 %v2980, %v2972
    %v3229 = vpack.c.b16 %v2981, %v2973
    %v3230 = vpack.c.b16 %v2982, %v2974
    %v3231 = vpack.c.b16 %v2983, %v2975
    %v3232 = vpack.c.b16 %v2984, %v2976
    %v3233 = vpack.c.b16 %v2985, %v2977
    %v3234 = vpack.c.b16 %v2986, %v2978
    %v3235 = vpack.c.b16 %v2987, %v2979
    %v3236 = vpack.c.b16 %v2996, %v2988
    %v3237 = vpack.c.b16 %v2997, %v2989
    %v3238 = vpack.c.b16 %v2998, %v2990
    %v3239 = vpack.c.b16 %v2999, %v2991
    %v3240 = vpack.c.b16 %v3000, %v2992
    %v3241 = vpack.c.b16 %v3001, %v2993
    %v3242 = vpack.c.b16 %v3002, %v2994
    %v3243 = vpack.c.b16 %v3003, %v2995
    %v3244 = vpack.c.b16 %v3012, %v3004
    %v3245 = vpack.c.b16 %v3013, %v3005
    %v3246 = vpack.c.b16 %v3014, %v3006
    %v3247 = vpack.c.b16 %v3015, %v3007
    %v3248 = vpack.c.b16 %v3016, %v3008
    %v3249 = vpack.c.b16 %v3017, %v3009
    %v3250 = vpack.c.b16 %v3018, %v3010
    %v3251 = vpack.c.b16 %v3019, %v3011
    %v3252 = vpack.c.b16 %v3028, %v3020
    %v3253 = vpack.c.b16 %v3029, %v3021
    %v3254 = vpack.c.b16 %v3030, %v3022
    %v3255 = vpack.c.b16 %v3031, %v3023
    %v3256 = vpack.c.b16 %v3032, %v3024
    %v3257 = vpack.c.b16 %v3033, %v3025
    %v3258 = vpack.c.b16 %v3034, %v3026
    %v3259 = vpack.c.b16 %v3035, %v3027
    %v3260 = vpack.c.b16 %v3044, %v3036
    %v3261 = vpack.c.b16 %v3045, %v3037
    %v3262 = vpack.c.b16 %v3046, %v3038
    %v3263 = vpack.c.b16 %v3047, %v3039
    %v3264 = vpack.c.b16 %v3048, %v3040
    %v3265 = vpack.c.b16 %v3049, %v3041
    %v3266 = vpack.c.b16 %v3050, %v3042
    %v3267 = vpack.c.b16 %v3051, %v3043
    %v3268 = vpack.c.b16 %v3060, %v3052
    %v3269 = vpack.c.b16 %v3061, %v3053
    %v3270 = vpack.c.b16 %v3062, %v3054
    %v3271 = vpack.c.b16 %v3063, %v3055
    %v3272 = vpack.c.b16 %v3064, %v3056
    %v3273 = vpack.c.b16 %v3065, %v3057
    %v3274 = vpack.c.b16 %v3066, %v3058
    %v3275 = vpack.c.b16 %v3067, %v3059
    %v3276 = vpack.c.b16 %v3076, %v3068
    %v3277 = vpack.c.b16 %v3077, %v3069
    %v3278 = vpack.c.b16 %v3078, %v3070
    %v3279 = vpack.c.b16 %v3079, %v3071
    %v3280 = vpack.c.b16 %v3080, %v3072
    %v3281 = vpack.c.b16 %v3081, %v3073
    %v3282 = vpack.c.b16 %v3082, %v3074
    %v3283 = vpack.c.b16 %v3083, %v3075
    %v3284 = vpack.c.b16 %v3092, %v3084
    %v3285 = vpack.c.b16 %v3093, %v3085
    %v3286 = vpack.c.b16 %v3094, %v3086
    %v3287 = vpack.c.b16 %v3095, %v3087
    %v3288 = vpack.c.b16 %v3096, %v3088
    %v3289 = vpack.c.b16 %v3097, %v3089
    %v3290 = vpack.c.b16 %v3098, %v3090
    %v3291 = vpack.c.b16 %v3099, %v3091
    %3484 = vmatprep.subr.bf16.mxu0 %v3101
    %3485 = vmatpush1.bf16.msra.mxu0 %v3100
    %3486 = vmatprep.subr.bf16.mxu0 %v3109
    %3487 = vmatpush1.bf16.msra.mxu0 %v3108
    %3488 = vmatprep.subr.bf16.mxu0 %v3117
    %3489 = vmatpush1.bf16.msra.mxu0 %v3116
    %3490 = vmatprep.subr.bf16.mxu0 %v3125
    %3491 = vmatpush1.bf16.msra.mxu0 %v3124
    %3492 = vmatprep.subr.bf16.mxu0 %v3133
    %3493 = vmatpush1.bf16.msra.mxu0 %v3132
    %3494 = vmatprep.subr.bf16.mxu0 %v3141
    %3495 = vmatpush1.bf16.msra.mxu0 %v3140
    %3496 = vmatprep.subr.bf16.mxu0 %v3149
    %3497 = vmatpush1.bf16.msra.mxu0 %v3148
    %3498 = vmatprep.subr.bf16.mxu0 %v3157
    %3499 = vmatpush1.bf16.msra.mxu0 %v3156
    %3500 = vmatprep.subr.bf16.mxu0 %v3165
    %3501 = vmatpush1.bf16.msra.mxu0 %v3164
    %3502 = vmatprep.subr.bf16.mxu0 %v3173
    %3503 = vmatpush1.bf16.msra.mxu0 %v3172
    %3504 = vmatprep.subr.bf16.mxu0 %v3181
    %3505 = vmatpush1.bf16.msra.mxu0 %v3180
    %3506 = vmatprep.subr.bf16.mxu0 %v3189
    %3507 = vmatpush1.bf16.msra.mxu0 %v3188
    %3508 = vmatprep.subr.bf16.mxu0 %v3197
    %3509 = vmatpush1.bf16.msra.mxu0 %v3196
    %3510 = vmatprep.subr.bf16.mxu0 %v3205
    %3511 = vmatpush1.bf16.msra.mxu0 %v3204
    %3512 = vmatprep.subr.bf16.mxu0 %v3213
    %3513 = vmatpush1.bf16.msra.mxu0 %v3212
    %3514 = vmatprep.subr.bf16.mxu0 %v3221
    %3515 = vmatpush1.bf16.msra.mxu0 %v3220
    %3516 = vmatprep.mubr.bf16.mxu0 %v2288
    %3517 = vmatmul.mubr.bf16.gmra.mrb[0].mxu0 %v2287
    %v3518 = vpop.f32.mrb[0].mxu0
    %v3519 = vadd.f32 %v2487, %v3518
    %v3520 = vpop.f32.mrb[0].mxu0
    %v3521 = vadd.f32 %v2491, %v3520
    %v3522 = vpop.f32.mrb[0].mxu0
    %v3523 = vpop.f32.mrb[0].mxu0
    %3524 = vdwg.mxu0
    %3525 = vmatprep.subr.bf16.mxu0 %v3229
    %3526 = vmatpush1.bf16.msra.mxu0 %v3228
    %3527 = vmatprep.subr.bf16.mxu0 %v3237
    %3528 = vmatpush1.bf16.msra.mxu0 %v3236
    %3529 = vmatprep.subr.bf16.mxu0 %v3245
    %3530 = vmatpush1.bf16.msra.mxu0 %v3244
    %3531 = vmatprep.subr.bf16.mxu0 %v3253
    %3532 = vmatpush1.bf16.msra.mxu0 %v3252
    %3533 = vmatprep.subr.bf16.mxu0 %v3261
    %3534 = vmatpush1.bf16.msra.mxu0 %v3260
    %3535 = vmatprep.subr.bf16.mxu0 %v3269
    %3536 = vmatpush1.bf16.msra.mxu0 %v3268
    %3537 = vmatprep.subr.bf16.mxu0 %v3277
    %3538 = vmatpush1.bf16.msra.mxu0 %v3276
    %3539 = vmatprep.subr.bf16.mxu0 %v3285
    %3540 = vmatpush1.bf16.msra.mxu0 %v3284
    %3541 = vmatprep.subr.bf16.mxu0 0
    %3542 = vmatpush1.bf16.msra.mxu0 0
    %3543 = vmatprep.subr.bf16.mxu0 0
    %3544 = vmatpush1.bf16.msra.mxu0 0
    %3545 = vmatprep.subr.bf16.mxu0 0
    %3546 = vmatpush1.bf16.msra.mxu0 0
    %3547 = vmatprep.subr.bf16.mxu0 0
    %3548 = vmatpush1.bf16.msra.mxu0 0
    %3549 = vmatprep.subr.bf16.mxu0 0
    %3550 = vmatpush1.bf16.msra.mxu0 0
    %3551 = vmatprep.subr.bf16.mxu0 0
    %3552 = vmatpush1.bf16.msra.mxu0 0
    %3553 = vmatprep.subr.bf16.mxu0 0
    %3554 = vmatpush1.bf16.msra.mxu0 0
    %3555 = vmatprep.subr.bf16.mxu0 0
    %3556 = vmatpush1.bf16.msra.mxu0 0
    %3557 = vmatprep.mubr.bf16.mxu0 0
    %3558 = vmatmul.mubr.bf16.gmra.mrb[0].mxu0 %v2289
    %v3559 = vpop.f32.mrb[0].mxu0
    %v3560 = vadd.f32 %v3519, %v3559
    %v3561 = vpop.f32.mrb[0].mxu0
    %v3562 = vadd.f32 %v3521, %v3561
    %v3563 = vpop.f32.mrb[0].mxu0
    %v3564 = vpop.f32.mrb[0].mxu0
    %3565 = vdwg.mxu0
    %3566 = vmatprep.subr.bf16.mxu0 %v3103
    %3567 = vmatpush1.bf16.msra.mxu0 %v3102
    %3568 = vmatprep.subr.bf16.mxu0 %v3111
    %3569 = vmatpush1.bf16.msra.mxu0 %v3110
    %3570 = vmatprep.subr.bf16.mxu0 %v3119
    %3571 = vmatpush1.bf16.msra.mxu0 %v3118
    %3572 = vmatprep.subr.bf16.mxu0 %v3127
    %3573 = vmatpush1.bf16.msra.mxu0 %v3126
    %3574 = vmatprep.subr.bf16.mxu0 %v3135
    %3575 = vmatpush1.bf16.msra.mxu0 %v3134
    %3576 = vmatprep.subr.bf16.mxu0 %v3143
    %3577 = vmatpush1.bf16.msra.mxu0 %v3142
    %3578 = vmatprep.subr.bf16.mxu0 %v3151
    %3579 = vmatpush1.bf16.msra.mxu0 %v3150
    %3580 = vmatprep.subr.bf16.mxu0 %v3159
    %3581 = vmatpush1.bf16.msra.mxu0 %v3158
    %3582 = vmatprep.subr.bf16.mxu0 %v3167
    %3583 = vmatpush1.bf16.msra.mxu0 %v3166
    %3584 = vmatprep.subr.bf16.mxu0 %v3175
    %3585 = vmatpush1.bf16.msra.mxu0 %v3174
    %3586 = vmatprep.subr.bf16.mxu0 %v3183
    %3587 = vmatpush1.bf16.msra.mxu0 %v3182
    %3588 = vmatprep.subr.bf16.mxu0 %v3191
    %3589 = vmatpush1.bf16.msra.mxu0 %v3190
    %3590 = vmatprep.subr.bf16.mxu0 %v3199
    %3591 = vmatpush1.bf16.msra.mxu0 %v3198
    %3592 = vmatprep.subr.bf16.mxu0 %v3207
    %3593 = vmatpush1.bf16.msra.mxu0 %v3206
    %3594 = vmatprep.subr.bf16.mxu0 %v3215
    %3595 = vmatpush1.bf16.msra.mxu0 %v3214
    %3596 = vmatprep.subr.bf16.mxu0 %v3223
    %3597 = vmatpush1.bf16.msra.mxu0 %v3222
    %3598 = vmatprep.mubr.bf16.mxu0 %v2288
    %3599 = vmatmul.mubr.bf16.gmra.mrb[0].mxu0 %v2287
    %v3600 = vpop.f32.mrb[0].mxu0
    %v3601 = vadd.f32 %v2495, %v3600
    %v3602 = vpop.f32.mrb[0].mxu0
    %v3603 = vadd.f32 %v2499, %v3602
    %v3604 = vpop.f32.mrb[0].mxu0
    %v3605 = vpop.f32.mrb[0].mxu0
    %3606 = vdwg.mxu0
    %3607 = vmatprep.subr.bf16.mxu0 %v3231
    %3608 = vmatpush1.bf16.msra.mxu0 %v3230
    %3609 = vmatprep.subr.bf16.mxu0 %v3239
    %3610 = vmatpush1.bf16.msra.mxu0 %v3238
    %3611 = vmatprep.subr.bf16.mxu0 %v3247
    %3612 = vmatpush1.bf16.msra.mxu0 %v3246
    %3613 = vmatprep.subr.bf16.mxu0 %v3255
    %3614 = vmatpush1.bf16.msra.mxu0 %v3254
    %3615 = vmatprep.subr.bf16.mxu0 %v3263
    %3616 = vmatpush1.bf16.msra.mxu0 %v3262
    %3617 = vmatprep.subr.bf16.mxu0 %v3271
    %3618 = vmatpush1.bf16.msra.mxu0 %v3270
    %3619 = vmatprep.subr.bf16.mxu0 %v3279
    %3620 = vmatpush1.bf16.msra.mxu0 %v3278
    %3621 = vmatprep.subr.bf16.mxu0 %v3287
    %3622 = vmatpush1.bf16.msra.mxu0 %v3286
    %3623 = vmatprep.subr.bf16.mxu0 0
    %3624 = vmatpush1.bf16.msra.mxu0 0
    %3625 = vmatprep.subr.bf16.mxu0 0
    %3626 = vmatpush1.bf16.msra.mxu0 0
    %3627 = vmatprep.subr.bf16.mxu0 0
    %3628 = vmatpush1.bf16.msra.mxu0 0
    %3629 = vmatprep.subr.bf16.mxu0 0
    %3630 = vmatpush1.bf16.msra.mxu0 0
    %3631 = vmatprep.subr.bf16.mxu0 0
    %3632 = vmatpush1.bf16.msra.mxu0 0
    %3633 = vmatprep.subr.bf16.mxu0 0
    %3634 = vmatpush1.bf16.msra.mxu0 0
    %3635 = vmatprep.subr.bf16.mxu0 0
    %3636 = vmatpush1.bf16.msra.mxu0 0
    %3637 = vmatprep.subr.bf16.mxu0 0
    %3638 = vmatpush1.bf16.msra.mxu0 0
    %3639 = vmatprep.mubr.bf16.mxu0 0
    %3640 = vmatmul.mubr.bf16.gmra.mrb[0].mxu0 %v2289
    %v3641 = vpop.f32.mrb[0].mxu0
    %v3642 = vadd.f32 %v3601, %v3641
    %v3643 = vpop.f32.mrb[0].mxu0
    %v3644 = vadd.f32 %v3603, %v3643
    %v3645 = vpop.f32.mrb[0].mxu0
    %v3646 = vpop.f32.mrb[0].mxu0
    %3647 = vdwg.mxu0
    %3648 = vmatprep.subr.bf16.mxu0 %v3105
    %3649 = vmatpush1.bf16.msra.mxu0 %v3104
    %3650 = vmatprep.subr.bf16.mxu0 %v3113
    %3651 = vmatpush1.bf16.msra.mxu0 %v3112
    %3652 = vmatprep.subr.bf16.mxu0 %v3121
    %3653 = vmatpush1.bf16.msra.mxu0 %v3120
    %3654 = vmatprep.subr.bf16.mxu0 %v3129
    %3655 = vmatpush1.bf16.msra.mxu0 %v3128
    %3656 = vmatprep.subr.bf16.mxu0 %v3137
    %3657 = vmatpush1.bf16.msra.mxu0 %v3136
    %3658 = vmatprep.subr.bf16.mxu0 %v3145
    %3659 = vmatpush1.bf16.msra.mxu0 %v3144
    %3660 = vmatprep.subr.bf16.mxu0 %v3153
    %3661 = vmatpush1.bf16.msra.mxu0 %v3152
    %3662 = vmatprep.subr.bf16.mxu0 %v3161
    %3663 = vmatpush1.bf16.msra.mxu0 %v3160
    %3664 = vmatprep.subr.bf16.mxu0 %v3169
    %3665 = vmatpush1.bf16.msra.mxu0 %v3168
    %3666 = vmatprep.subr.bf16.mxu0 %v3177
    %3667 = vmatpush1.bf16.msra.mxu0 %v3176
    %3668 = vmatprep.subr.bf16.mxu0 %v3185
    %3669 = vmatpush1.bf16.msra.mxu0 %v3184
    %3670 = vmatprep.subr.bf16.mxu0 %v3193
    %3671 = vmatpush1.bf16.msra.mxu0 %v3192
    %3672 = vmatprep.subr.bf16.mxu0 %v3201
    %3673 = vmatpush1.bf16.msra.mxu0 %v3200
    %3674 = vmatprep.subr.bf16.mxu0 %v3209
    %3675 = vmatpush1.bf16.msra.mxu0 %v3208
    %3676 = vmatprep.subr.bf16.mxu0 %v3217
    %3677 = vmatpush1.bf16.msra.mxu0 %v3216
    %3678 = vmatprep.subr.bf16.mxu0 %v3225
    %3679 = vmatpush1.bf16.msra.mxu0 %v3224
    %3680 = vmatprep.mubr.bf16.mxu0 %v2288
    %3681 = vmatmul.mubr.bf16.gmra.mrb[0].mxu0 %v2287
    %v3682 = vpop.f32.mrb[0].mxu0
    %v3683 = vadd.f32 %v2503, %v3682
    %v3684 = vpop.f32.mrb[0].mxu0
    %v3685 = vadd.f32 %v2507, %v3684
    %v3686 = vpop.f32.mrb[0].mxu0
    %v3687 = vpop.f32.mrb[0].mxu0
    %3688 = vdwg.mxu0
    %3689 = vmatprep.subr.bf16.mxu0 %v3233
    %3690 = vmatpush1.bf16.msra.mxu0 %v3232
    %3691 = vmatprep.subr.bf16.mxu0 %v3241
    %3692 = vmatpush1.bf16.msra.mxu0 %v3240
    %3693 = vmatprep.subr.bf16.mxu0 %v3249
    %3694 = vmatpush1.bf16.msra.mxu0 %v3248
    %3695 = vmatprep.subr.bf16.mxu0 %v3257
    %3696 = vmatpush1.bf16.msra.mxu0 %v3256
    %3697 = vmatprep.subr.bf16.mxu0 %v3265
    %3698 = vmatpush1.bf16.msra.mxu0 %v3264
    %3699 = vmatprep.subr.bf16.mxu0 %v3273
    %3700 = vmatpush1.bf16.msra.mxu0 %v3272
    %3701 = vmatprep.subr.bf16.mxu0 %v3281
    %3702 = vmatpush1.bf16.msra.mxu0 %v3280
    %3703 = vmatprep.subr.bf16.mxu0 %v3289
    %3704 = vmatpush1.bf16.msra.mxu0 %v3288
    %3705 = vmatprep.subr.bf16.mxu0 0
    %3706 = vmatpush1.bf16.msra.mxu0 0
    %3707 = vmatprep.subr.bf16.mxu0 0
    %3708 = vmatpush1.bf16.msra.mxu0 0
    %3709 = vmatprep.subr.bf16.mxu0 0
    %3710 = vmatpush1.bf16.msra.mxu0 0
    %3711 = vmatprep.subr.bf16.mxu0 0
    %3712 = vmatpush1.bf16.msra.mxu0 0
    %3713 = vmatprep.subr.bf16.mxu0 0
    %3714 = vmatpush1.bf16.msra.mxu0 0
    %3715 = vmatprep.subr.bf16.mxu0 0
    %3716 = vmatpush1.bf16.msra.mxu0 0
    %3717 = vmatprep.subr.bf16.mxu0 0
    %3718 = vmatpush1.bf16.msra.mxu0 0
    %3719 = vmatprep.subr.bf16.mxu0 0
    %3720 = vmatpush1.bf16.msra.mxu0 0
    %3721 = vmatprep.mubr.bf16.mxu0 0
    %3722 = vmatmul.mubr.bf16.gmra.mrb[0].mxu0 %v2289
    %v3723 = vpop.f32.mrb[0].mxu0
    %v3724 = vadd.f32 %v3683, %v3723
    %v3725 = vpop.f32.mrb[0].mxu0
    %v3726 = vadd.f32 %v3685, %v3725
    %v3727 = vpop.f32.mrb[0].mxu0
    %v3728 = vpop.f32.mrb[0].mxu0
    %3729 = vdwg.mxu0
    %3730 = vmatprep.subr.bf16.mxu0 %v3107
    %3731 = vmatpush1.bf16.msra.mxu0 %v3106
    %3732 = vmatprep.subr.bf16.mxu0 %v3115
    %3733 = vmatpush1.bf16.msra.mxu0 %v3114
    %3734 = vmatprep.subr.bf16.mxu0 %v3123
    %3735 = vmatpush1.bf16.msra.mxu0 %v3122
    %3736 = vmatprep.subr.bf16.mxu0 %v3131
    %3737 = vmatpush1.bf16.msra.mxu0 %v3130
    %3738 = vmatprep.subr.bf16.mxu0 %v3139
    %3739 = vmatpush1.bf16.msra.mxu0 %v3138
    %3740 = vmatprep.subr.bf16.mxu0 %v3147
    %3741 = vmatpush1.bf16.msra.mxu0 %v3146
    %3742 = vmatprep.subr.bf16.mxu0 %v3155
    %3743 = vmatpush1.bf16.msra.mxu0 %v3154
    %3744 = vmatprep.subr.bf16.mxu0 %v3163
    %3745 = vmatpush1.bf16.msra.mxu0 %v3162
    %3746 = vmatprep.subr.bf16.mxu0 %v3171
    %3747 = vmatpush1.bf16.msra.mxu0 %v3170
    %3748 = vmatprep.subr.bf16.mxu0 %v3179
    %3749 = vmatpush1.bf16.msra.mxu0 %v3178
    %3750 = vmatprep.subr.bf16.mxu0 %v3187
    %3751 = vmatpush1.bf16.msra.mxu0 %v3186
    %3752 = vmatprep.subr.bf16.mxu0 %v3195
    %3753 = vmatpush1.bf16.msra.mxu0 %v3194
    %3754 = vmatprep.subr.bf16.mxu0 %v3203
    %3755 = vmatpush1.bf16.msra.mxu0 %v3202
    %3756 = vmatprep.subr.bf16.mxu0 %v3211
    %3757 = vmatpush1.bf16.msra.mxu0 %v3210
    %3758 = vmatprep.subr.bf16.mxu0 %v3219
    %3759 = vmatpush1.bf16.msra.mxu0 %v3218
    %3760 = vmatprep.subr.bf16.mxu0 %v3227
    %3761 = vmatpush1.bf16.msra.mxu0 %v3226
    %3762 = vmatprep.mubr.bf16.mxu0 %v2288
    %3763 = vmatmul.mubr.bf16.gmra.mrb[0].mxu0 %v2287
    %v3764 = vpop.f32.mrb[0].mxu0
    %v3765 = vadd.f32 %v2511, %v3764
    %v3766 = vpop.f32.mrb[0].mxu0
    %v3767 = vadd.f32 %v2515, %v3766
    %v3768 = vpop.f32.mrb[0].mxu0
    %v3769 = vpop.f32.mrb[0].mxu0
    %3770 = vdwg.mxu0
    %3771 = vmatprep.subr.bf16.mxu0 %v3235
    %3772 = vmatpush1.bf16.msra.mxu0 %v3234
    %3773 = vmatprep.subr.bf16.mxu0 %v3243
    %3774 = vmatpush1.bf16.msra.mxu0 %v3242
    %3775 = vmatprep.subr.bf16.mxu0 %v3251
    %3776 = vmatpush1.bf16.msra.mxu0 %v3250
    %3777 = vmatprep.subr.bf16.mxu0 %v3259
    %3778 = vmatpush1.bf16.msra.mxu0 %v3258
    %3779 = vmatprep.subr.bf16.mxu0 %v3267
    %3780 = vmatpush1.bf16.msra.mxu0 %v3266
    %3781 = vmatprep.subr.bf16.mxu0 %v3275
    %3782 = vmatpush1.bf16.msra.mxu0 %v3274
    %3783 = vmatprep.subr.bf16.mxu0 %v3283
    %3784 = vmatpush1.bf16.msra.mxu0 %v3282
    %3785 = vmatprep.subr.bf16.mxu0 %v3291
    %3786 = vmatpush1.bf16.msra.mxu0 %v3290
    %3787 = vmatprep.subr.bf16.mxu0 0
    %3788 = vmatpush1.bf16.msra.mxu0 0
    %3789 = vmatprep.subr.bf16.mxu0 0
    %3790 = vmatpush1.bf16.msra.mxu0 0
    %3791 = vmatprep.subr.bf16.mxu0 0
    %3792 = vmatpush1.bf16.msra.mxu0 0
    %3793 = vmatprep.subr.bf16.mxu0 0
    %3794 = vmatpush1.bf16.msra.mxu0 0
    %3795 = vmatprep.subr.bf16.mxu0 0
    %3796 = vmatpush1.bf16.msra.mxu0 0
    %3797 = vmatprep.subr.bf16.mxu0 0
    %3798 = vmatpush1.bf16.msra.mxu0 0
    %3799 = vmatprep.subr.bf16.mxu0 0
    %3800 = vmatpush1.bf16.msra.mxu0 0
    %3801 = vmatprep.subr.bf16.mxu0 0
    %3802 = vmatpush1.bf16.msra.mxu0 0
    %3803 = vmatprep.mubr.bf16.mxu0 0
    %3804 = vmatmul.mubr.bf16.gmra.mrb[0].mxu0 %v2289
    %v3805 = vpop.f32.mrb[0].mxu0
    %v3806 = vadd.f32 %v3765, %v3805
    %v3807 = vpop.f32.mrb[0].mxu0
    %v3808 = vadd.f32 %v3767, %v3807
    %v3809 = vpop.f32.mrb[0].mxu0
    %v3810 = vpop.f32.mrb[0].mxu0
    %3811 = vdwg.mxu0
    %v3812 = vmul.f32 %v3560, 0.5
    %v3813 = vmul.f32 %v3562, 0.5
    %v3814 = vmul.f32 %v3642, 0.5
    %v3815 = vmul.f32 %v3644, 0.5
    %v3816 = vmul.f32 %v3724, 0.5
    %v3817 = vmul.f32 %v3726, 0.5
    %v3818 = vmul.f32 %v3806, 0.5
    %v3819 = vmul.f32 %v3808, 0.5
    %v3820 = vtanh.pop %v3812
    %v3821 = vtanh.pop %v3813
    %v3822 = vtanh.pop %v3814
    %v3823 = vtanh.pop %v3815
    %v3824 = vtanh.pop %v3816
    %v3825 = vtanh.pop %v3817
    %v3826 = vtanh.pop %v3818
    %v3827 = vtanh.pop %v3819
    %v3828 = vmul.f32 %v3820, 0.5
    %v3829 = vmul.f32 %v3821, 0.5
    %v3830 = vmul.f32 %v3822, 0.5
    %v3831 = vmul.f32 %v3823, 0.5
    %v3832 = vmul.f32 %v3824, 0.5
    %v3833 = vmul.f32 %v3825, 0.5
    %v3834 = vmul.f32 %v3826, 0.5
    %v3835 = vmul.f32 %v3827, 0.5
    %v3836 = vadd.f32 %v3828, 0.5
    %v3837 = vadd.f32 %v3829, 0.5
    %v3838 = vadd.f32 %v3830, 0.5
    %v3839 = vadd.f32 %v3831, 0.5
    %v3840 = vadd.f32 %v3832, 0.5
    %v3841 = vadd.f32 %v3833, 0.5
    %v3842 = vadd.f32 %v3834, 0.5
    %v3843 = vadd.f32 %v3835, 0.5
    %v3844 = vpack.c.bf16 %v3836, %v3836
    %v3845 = vpack.c.bf16 %v3837, %v3837
    %v3846 = vpack.c.bf16 %v3838, %v3838
    %v3847 = vpack.c.bf16 %v3839, %v3839
    %v3848 = vpack.c.bf16 %v3840, %v3840
    %v3849 = vpack.c.bf16 %v3841, %v3841
    %v3850 = vpack.c.bf16 %v3842, %v3842
    %v3851 = vpack.c.bf16 %v3843, %v3843
    %v3860 = vunpack.c.l.b16 %v3844
    %v3861 = vunpack.c.l.b16 %v3845
    %v3862 = vunpack.c.l.b16 %v3846
    %v3863 = vunpack.c.l.b16 %v3847
    %v3864 = vunpack.c.l.b16 %v3848
    %v3865 = vunpack.c.l.b16 %v3849
    %v3866 = vunpack.c.l.b16 %v3850
    %v3867 = vunpack.c.l.b16 %v3851
    %v3868 = vpack.c.b16 %v3861, %v3860
    %v3869 = vpack.c.b16 %v3863, %v3862
    %v3870 = vpack.c.b16 %v3865, %v3864
    %v3871 = vpack.c.b16 %v3867, %v3866
    %3876 = vst [vmem:[#allocation11] sm:$0xff] %v3868
    %3877 = vst [vmem:[#allocation11 + $0x8] sm:$0xff] %v3869
    %3878 = vst [vmem:[#allocation11 + $0x10] sm:$0xff] %v3870
    %3879 = vst [vmem:[#allocation11 + $0x18] sm:$0xff] %v3871
    // Predicated region
    $region58: #{autoencoder_forward.1} parent=1 // pred_check
      _
    $region59: #{autoencoder_forward.1} parent=1 // pred_check_branch
      %3881 = sbr.rel (0) target = $region61
    $region60: #{autoencoder_forward.1} parent=1 // pred_region
      _
    $region61: #{autoencoder_forward.1} parent=1 // pred_fallthru
      _
    // Predicated region
    $region62: #{autoencoder_forward.1} parent=1 // pred_check
      _
    $region63: #{autoencoder_forward.1} parent=1 // pred_check_branch
      %3883 = sbr.rel (0) target = $region65
    $region64: #{autoencoder_forward.1} parent=1 // pred_region
      %s3885 = ssub.s32 512, 512
      %3886 = vsyncadd [#allocation4], %s3885
      %s3888 = sshll.u32 [#allocation11], 4
      %s3889 = int_to_ptr.vmem [resolvable:$true] %s3888
      %3891 = dma.vmem_to_hbm [thread:$0]  %s3889, 512, %s10, [#allocation4]
    $region65: #{autoencoder_forward.1} parent=1 // pred_fallthru
      _
    // Predicated region
    $region66: #{autoencoder_forward.1} parent=1 // pred_check
      _
    $region67: #{autoencoder_forward.1} parent=1 // pred_check_branch
      %3893 = sbr.rel (0) target = $region69
    $region68: #{autoencoder_forward.1} parent=1 // pred_region
      _
    $region69: #{autoencoder_forward.1} parent=1 // pred_fallthru
      _
    // Predicated region
    $region70: #{autoencoder_forward.1} parent=1 // pred_check
      _
    $region71: #{autoencoder_forward.1} parent=1 // pred_check_branch
      %3895 = sbr.rel (0) target = $region73
    $region72: #{autoencoder_forward.1} parent=1 // pred_region
      %3896 = dma.done [#allocation4], 512
    $region73: #{autoencoder_forward.1} parent=1 // pred_fallthru
      _
    %3897 = vsyncpa [#allocation3], 1
    %3898 = vsyncpa [#allocation6], 1
    %3899 = vsyncpa [#allocation9], 1
    %3900 = vsyncpa [#allocation4], 1

</llo_original>
